<compile_context>
chip_gen: v5e
topology: v5e:2x2
jax: 0.10.0
libtpu: 0.0.40
codegen_flags: <defaults>
</compile_context>

<pallas_src>
import functools

import jax
import jax.numpy as jnp
from jax.experimental import pallas as pl
from jax.experimental.pallas import tpu as pltpu


# --------------------------------------------------------------------------
# Kernel bodies
# --------------------------------------------------------------------------
def _expert_tiled_kernel(x_ref, w1_ref, b1_ref, w2_ref, b2_ref, o_ref, acc_ref,
                         *, gelu_approximate):
    """F-streaming path: grid=(T//tm, F//tf); F (reduction) axis is last."""
    f = pl.program_id(1)

    @pl.when(f == 0)
    def _():
        acc_ref[...] = jnp.zeros_like(acc_ref)

    # First matmul on the MXU (bf16 in, f32 out); bias + GELU stay in f32.
    h = jnp.dot(x_ref[...], w1_ref[...], preferred_element_type=jnp.float32)
    h = jax.nn.gelu(h + b1_ref[...].astype(jnp.float32),
                    approximate=gelu_approximate)

    # Second matmul: partial product over this F tile, accumulated in f32.
    acc_ref[...] += jnp.dot(h.astype(w2_ref.dtype), w2_ref[...],
                            preferred_element_type=jnp.float32)

    @pl.when(f == pl.num_programs(1) - 1)
    def _():
        o_ref[...] = (acc_ref[...]
                      + b2_ref[...].astype(jnp.float32)).astype(o_ref.dtype)


def _expert_resident_kernel(x_ref, w1_ref, b1_ref, w2_ref, b2_ref, o_ref,
                            *, gelu_approximate):
    """Small-expert path: weights resident in VMEM, grid=(T//tm,)."""
    h = jnp.dot(x_ref[...], w1_ref[...], preferred_element_type=jnp.float32)
    h = jax.nn.gelu(h + b1_ref[...].astype(jnp.float32),
                    approximate=gelu_approximate)
    y = jnp.dot(h.astype(w2_ref.dtype), w2_ref[...],
                preferred_element_type=jnp.float32)
    o_ref[...] = (y + b2_ref[...].astype(jnp.float32)).astype(o_ref.dtype)


# --------------------------------------------------------------------------
# Tile / VMEM budgeting helpers
# --------------------------------------------------------------------------
def _device_kind():
    try:
        return jax.devices()[0].device_kind.lower()
    except Exception:
        return ""


def _vmem_capacity_bytes():
    try:
        info = pltpu.get_tpu_info()
        cap = getattr(info, "vmem_capacity_bytes", None)
        if cap:
            return int(cap)
    except Exception:
        pass
    # v7x has 64 MiB per TensorCore; v5e/v6e have 128 MiB.
    return (64 << 20) if "v7" in _device_kind() else (128 << 20)


def _default_tiles():
    kind = _device_kind()
    if "v7" in kind:
        return 256, 512      # 64 MiB VMEM per core: keep footprint modest.
    if "v6" in kind:
        return 512, 512      # Fill the 2x256^2 MXU; ~640 FLOP/B roofline.
    return 256, 256          # v5e (4x128^2 MXU, ~240 FLOP/B) and default.


def _fit_tile(total, cap, step):
    """Largest multiple of `step` that divides `total` and is <= cap."""
    cap = max(step, min(cap, total))
    t = (cap // step) * step
    while total % t:
        t -= step
    return t


# --------------------------------------------------------------------------
# Public wrapper
# --------------------------------------------------------------------------
def expert_forward(x, w1, b1, w2, b2, *, tm=None, tf=None,
                   weights_resident=None, gelu_approximate=True):
    """Expert MLP forward: GELU(x @ W1 + b1) @ W2 + b2.

    x: [T, D], w1: [D, F], b1: [1, F], w2: [F, D], b2: [1, D] -> [T, D].

    Tile-size guidance (auto-selected when tm/tf are None):
      v5e:  tm=256, tf=256 (4x128^2 MXU; crossing ~240 FLOP/B roofline).
      v6e:  tm=512, tf=512 (2x256^2 MXU; ~640 FLOP/B roofline).
      v7x:  tm=256, tf=512, re-budgeted against 64 MiB VMEM per core.
    Tiles are clamped to the problem size and shrunk if the double-buffered
    footprint would exceed ~80% of VMEM.
    """
    T, D = x.shape
    Dw, F = w1.shape
    assert Dw == D and w2.shape == (F, D)
    assert b1.shape == (1, F) and b2.shape == (1, D)
    # Lane-dense / (8,128)-aligned tiling (real use would pad first).
    assert D % 128 == 0 and F % 128 == 0, "pad D/F to multiples of 128"
    assert T % 8 == 0, "pad T to a multiple of 8"

    cap = _vmem_capacity_bytes()
    budget = int(cap * 0.8)

    tm_def, tf_def = _default_tiles()
    tm_step = 128 if T % 128 == 0 else 8
    auto_tiles = tm is None and tf is None
    if tm is None:
        tm = _fit_tile(T, tm_def, tm_step)
    if tf is None:
        tf = _fit_tile(F, tf_def, 128)
    assert T % tm == 0 and F % tf == 0

    xb = x.dtype.itemsize
    w1b, w2b = w1.dtype.itemsize, w2.dtype.itemsize
    b1b, b2b = b1.dtype.itemsize, b2.dtype.itemsize
    nbytes = lambda a: a.size * a.dtype.itemsize

    # ---- Weights-resident fast path (small experts): fetch W1/W2 once. ----
    # 2x on weight blocks: conservative allowance for per-input buffering.
    resident_bytes = (2 * (nbytes(w1) + nbytes(w2) + nbytes(b1) + nbytes(b2))
                      + 4 * tm * D * xb            # x + out, double-buffered
                      + tm * F * 4 + tm * D * 4)   # f32 intermediate headroom
    if weights_resident is None:
        weights_resident = resident_bytes <= int(cap * 0.6)

    if weights_resident:
        cost = pl.CostEstimate(
            flops=4 * T * D * F,                   # two matmuls
            transcendentals=T * F,                 # GELU
            bytes_accessed=(nbytes(x) + T * D * xb
                            + nbytes(w1) + nbytes(w2)
                            + nbytes(b1) + nbytes(b2)),
        )
        vmem_limit = min(max(int(resident_bytes * 1.25) + (2 << 20), 32 << 20),
                         int(cap * 0.95))
        return pl.pallas_call(
            functools.partial(_expert_resident_kernel,
                              gelu_approximate=gelu_approximate),
            out_shape=jax.ShapeDtypeStruct((T, D), x.dtype),
            grid_spec=pltpu.PrefetchScalarGridSpec(
                num_scalar_prefetch=0,
                grid=(T // tm,),
                in_specs=[
                    pl.BlockSpec((tm, D), lambda t: (t, 0)),  # x token tile
                    pl.BlockSpec((D, F), lambda t: (0, 0)),   # W1 resident
                    pl.BlockSpec((1, F), lambda t: (0, 0)),   # b1 resident
                    pl.BlockSpec((F, D), lambda t: (0, 0)),   # W2 resident
                    pl.BlockSpec((1, D), lambda t: (0, 0)),   # b2 resident
                ],
                out_specs=pl.BlockSpec((tm, D), lambda t: (t, 0)),
            ),
            compiler_params=pltpu.CompilerParams(
                dimension_semantics=("parallel",),
                vmem_limit_bytes=vmem_limit,
            ),
            cost_estimate=cost,
        )(x, w1, b1, w2, b2)

    # ---- F-tiled streaming path (large experts). ----
    def tiled_vmem(tm_, tf_):
        dbl = 2 * (tm_ * D * xb + D * tf_ * w1b + tf_ * b1b
                   + tf_ * D * w2b + D * b2b + tm_ * D * xb)
        return dbl + tm_ * D * 4        # + f32 accumulator scratch

    if auto_tiles:
        # Shrink tf first (weight streaming), then tm, to fit the VMEM budget.
        while tiled_vmem(tm, tf) > budget and tf > 128:
            tf = _fit_tile(F, tf // 2, 128)
        while tiled_vmem(tm, tf) > budget and tm > tm_step:
            tm = _fit_tile(T, tm // 2, tm_step)

    vmem_needed = tiled_vmem(tm, tf)
    vmem_limit = min(max(int(vmem_needed * 1.25) + (2 << 20), 32 << 20),
                     int(cap * 0.95))

    # Honest memory picture: W1/W2/b1 are re-streamed once per token tile.
    cost = pl.CostEstimate(
        flops=4 * T * D * F,
        transcendentals=T * F,
        bytes_accessed=(nbytes(x) + T * D * xb
                        + (T // tm) * (nbytes(w1) + nbytes(w2) + nbytes(b1))
                        + nbytes(b2)),
    )

    return pl.pallas_call(
        functools.partial(_expert_tiled_kernel,
                          gelu_approximate=gelu_approximate),
        out_shape=jax.ShapeDtypeStruct((T, D), x.dtype),
        grid_spec=pltpu.PrefetchScalarGridSpec(
            num_scalar_prefetch=0,
            grid=(T // tm, F // tf),
            in_specs=[
                pl.BlockSpec((tm, D), lambda t, f: (t, 0)),   # x: resident over F
                pl.BlockSpec((D, tf), lambda t, f: (0, f)),   # W1 column tile
                pl.BlockSpec((1, tf), lambda t, f: (0, f)),   # b1 tile
                pl.BlockSpec((tf, D), lambda t, f: (f, 0)),   # W2 row tile
                pl.BlockSpec((1, D), lambda t, f: (0, 0)),    # b2 (finalize only)
            ],
            out_specs=pl.BlockSpec((tm, D), lambda t, f: (t, 0)),
            scratch_shapes=[pltpu.VMEM((tm, D), jnp.float32)],
        ),
        compiler_params=pltpu.CompilerParams(
            dimension_semantics=("parallel", "arbitrary"),
            vmem_limit_bytes=vmem_limit,
        ),
        cost_estimate=cost,
    )(x, w1, b1, w2, b2)


def expert_forward_ref(x, w1, b1, w2, b2, *, gelu_approximate=True):
    h = (jnp.dot(x, w1, preferred_element_type=jnp.float32)
         + b1.astype(jnp.float32))
    h = jax.nn.gelu(h, approximate=gelu_approximate)
    y = jnp.dot(h.astype(w2.dtype), w2, preferred_element_type=jnp.float32)
    return (y + b2.astype(jnp.float32)).astype(x.dtype)


if __name__ == "__main__":
    # Small but lane-dense, (8,128)-aligned shapes: 256 tokens, D=256, F=512.
    T, D, F = 256, 256, 512
    key = jax.random.PRNGKey(0)
    kx, k1, k2, k3, k4 = jax.random.split(key, 5)

    # Deterministic synthetic parameters (no checkpoint loading).
    # bf16 MXU inputs; biases kept f32 (applied on the f32 accumulator).
    x = jax.random.normal(kx, (T, D), dtype=jnp.float32).astype(jnp.bfloat16)
    w1 = (jax.random.normal(k1, (D, F), dtype=jnp.float32)
          * (1.0 / jnp.sqrt(D))).astype(jnp.bfloat16)
    b1 = jax.random.normal(k2, (1, F), dtype=jnp.float32) * 0.01
    w2 = (jax.random.normal(k3, (F, D), dtype=jnp.float32)
          * (1.0 / jnp.sqrt(F))).astype(jnp.bfloat16)
    b2 = jax.random.normal(k4, (1, D), dtype=jnp.float32) * 0.01

    ref = expert_forward_ref(x, w1, b1, w2, b2)

    # Auto path: small expert -> weights-resident fast path.
    out_auto = jax.block_until_ready(expert_forward(x, w1, b1, w2, b2))

    # Also exercise the F-tiled streaming path (the large-expert code path).
    out_tiled = jax.block_until_ready(
        expert_forward(x, w1, b1, w2, b2, tm=128, tf=128,
                       weights_resident=False))

    for out in (out_auto, out_tiled):
        assert out.shape == (T, D)
        assert out.dtype == x.dtype
        assert jnp.allclose(out.astype(jnp.float32), ref.astype(jnp.float32),
                            atol=2e-2, rtol=2e-2), "mismatch vs JAX reference"

    print("KERNEL_OK")
</pallas_src>

<mosaic_0001>
module attributes {stable_mosaic.version = 11 : i64} {
  func.func @_expert_resident_kernel(%arg0: i32, %arg1: memref<256x256xbf16, #tpu.memory_space<vmem>>, %arg2: memref<256x512xbf16, #tpu.memory_space<vmem>>, %arg3: memref<1x512xf32, #tpu.memory_space<vmem>>, %arg4: memref<512x256xbf16, #tpu.memory_space<vmem>>, %arg5: memref<1x256xf32, #tpu.memory_space<vmem>>, %arg6: memref<256x256xbf16, #tpu.memory_space<vmem>>) attributes {dimension_semantics = [#tpu.dimension_semantics<parallel>], iteration_bounds = array<i64: 1>, scalar_prefetch = 0 : i64, scratch_operands = 0 : i64, tpu.core_type = #tpu.core_type<tc>, window_params = [{transform_indices = @transform_0, window_bounds = array<i64: 256, 256>}, {pipeline_mode = #tpu.pipeline_mode<synchronous>, transform_indices = @transform_1, window_bounds = array<i64: 256, 512>}, {pipeline_mode = #tpu.pipeline_mode<synchronous>, transform_indices = @transform_2, window_bounds = array<i64: 1, 512>}, {pipeline_mode = #tpu.pipeline_mode<synchronous>, transform_indices = @transform_3, window_bounds = array<i64: 512, 256>}, {pipeline_mode = #tpu.pipeline_mode<synchronous>, transform_indices = @transform_4, window_bounds = array<i64: 1, 256>}, {transform_indices = @transform_5, window_bounds = array<i64: 256, 256>}]} {
    %c0 = arith.constant 0 : index
    %c0_0 = arith.constant 0 : index
    %0 = vector.load %arg1[%c0, %c0_0] : memref<256x256xbf16, #tpu.memory_space<vmem>>, vector<256x256xbf16>
    %c0_1 = arith.constant 0 : index
    %c0_2 = arith.constant 0 : index
    %1 = vector.load %arg2[%c0_1, %c0_2] : memref<256x512xbf16, #tpu.memory_space<vmem>>, vector<256x512xbf16>
    %cst = arith.constant dense<0.000000e+00> : vector<256x512xf32>
    %2 = tpu.matmul %0, %1, %cst {dimension_numbers = #tpu.dot_dimension_numbers<[1], [0], [0], [1], [0, 0, 1, 1], [], []>} : vector<256x256xbf16>, vector<256x512xbf16>, vector<256x512xf32> -> vector<256x512xf32>
    %c0_3 = arith.constant 0 : index
    %c0_4 = arith.constant 0 : index
    %3 = vector.load %arg3[%c0_3, %c0_4] : memref<1x512xf32, #tpu.memory_space<vmem>>, vector<1x512xf32>
    %4 = vector.broadcast %3 : vector<1x512xf32> to vector<256x512xf32>
    %5 = arith.addf %2, %4 : vector<256x512xf32>
    %6 = arith.mulf %5, %5 : vector<256x512xf32>
    %7 = arith.mulf %5, %6 : vector<256x512xf32>
    %cst_5 = arith.constant 4.471500e-02 : f32
    %8 = vector.broadcast %cst_5 : f32 to vector<256x512xf32>
    %9 = arith.mulf %8, %7 : vector<256x512xf32>
    %10 = arith.addf %5, %9 : vector<256x512xf32>
    %cst_6 = arith.constant 0.797884583 : f32
    %11 = vector.broadcast %cst_6 : f32 to vector<256x512xf32>
    %12 = arith.mulf %11, %10 : vector<256x512xf32>
    %13 = math.tanh %12 : vector<256x512xf32>
    %cst_7 = arith.constant 1.000000e+00 : f32
    %14 = vector.broadcast %cst_7 : f32 to vector<256x512xf32>
    %15 = arith.addf %14, %13 : vector<256x512xf32>
    %cst_8 = arith.constant 5.000000e-01 : f32
    %16 = vector.broadcast %cst_8 : f32 to vector<256x512xf32>
    %17 = arith.mulf %16, %15 : vector<256x512xf32>
    %18 = arith.mulf %5, %17 : vector<256x512xf32>
    %19 = arith.truncf %18 : vector<256x512xf32> to vector<256x512xbf16>
    %c0_9 = arith.constant 0 : index
    %c0_10 = arith.constant 0 : index
    %20 = vector.load %arg4[%c0_9, %c0_10] : memref<512x256xbf16, #tpu.memory_space<vmem>>, vector<512x256xbf16>
    %cst_11 = arith.constant dense<0.000000e+00> : vector<256x256xf32>
    %21 = tpu.matmul %19, %20, %cst_11 {dimension_numbers = #tpu.dot_dimension_numbers<[1], [0], [0], [1], [0, 0, 1, 1], [], []>} : vector<256x512xbf16>, vector<512x256xbf16>, vector<256x256xf32> -> vector<256x256xf32>
    %c0_12 = arith.constant 0 : index
    %c0_13 = arith.constant 0 : index
    %22 = vector.load %arg5[%c0_12, %c0_13] : memref<1x256xf32, #tpu.memory_space<vmem>>, vector<1x256xf32>
    %23 = vector.broadcast %22 : vector<1x256xf32> to vector<256x256xf32>
    %24 = arith.addf %21, %23 : vector<256x256xf32>
    %25 = arith.truncf %24 : vector<256x256xf32> to vector<256x256xbf16>
    %c0_14 = arith.constant 0 : index
    %c0_15 = arith.constant 0 : index
    %26 = vector.load %arg6[%c0_14, %c0_15] : memref<256x256xbf16, #tpu.memory_space<vmem>>, vector<256x256xbf16>
    tpu.vector_store %arg6[%c0_14, %c0_15], %25 {strides = array<i32>} : memref<256x256xbf16, #tpu.memory_space<vmem>>, vector<256x256xbf16>,
    return
  }
  func.func @transform_0(%arg0: i32) -> (i32, i32) {
    %c0_i32 = arith.constant 0 : i32
    %c0_i32_0 = arith.constant 0 : i32
    return %arg0, %c0_i32 : i32, i32
  }
  func.func @transform_1(%arg0: i32) -> (i32, i32) {
    %c0_i32 = arith.constant 0 : i32
    %c0_i32_0 = arith.constant 0 : i32
    %c0_i32_1 = arith.constant 0 : i32
    return %c0_i32, %c0_i32_0 : i32, i32
  }
  func.func @transform_2(%arg0: i32) -> (i32, i32) {
    %c0_i32 = arith.constant 0 : i32
    %c0_i32_0 = arith.constant 0 : i32
    %c0_i32_1 = arith.constant 0 : i32
    return %c0_i32, %c0_i32_0 : i32, i32
  }
  func.func @transform_3(%arg0: i32) -> (i32, i32) {
    %c0_i32 = arith.constant 0 : i32
    %c0_i32_0 = arith.constant 0 : i32
    %c0_i32_1 = arith.constant 0 : i32
    return %c0_i32, %c0_i32_0 : i32, i32
  }
  func.func @transform_4(%arg0: i32) -> (i32, i32) {
    %c0_i32 = arith.constant 0 : i32
    %c0_i32_0 = arith.constant 0 : i32
    %c0_i32_1 = arith.constant 0 : i32
    return %c0_i32, %c0_i32_0 : i32, i32
  }
  func.func @transform_5(%arg0: i32) -> (i32, i32) {
    %c0_i32 = arith.constant 0 : i32
    %c0_i32_0 = arith.constant 0 : i32
    return %arg0, %c0_i32 : i32, i32
  }
}

</mosaic_0001>

<llo_original>
// kernel: tpu_custom_call.1
$region0: #{tpu_custom_call.1}
  #allocation0 [shape = 'u32[]', space=smem, size = 0x4, offset = 0x4, fixed_abs, tag = 'smem constant byte address 0x4 - core index']
  #allocation1 [shape = 'u32[72,128]{1,0:T(1,128)}', space=vmem, size = 0x9000, scoped, tag = 'internal scratch']
  %s0 = inlined_call_operand.hbm [shape: bf16[256,256], index: 0, kind: input, shape index: {}]
  %s1 = inlined_call_operand.hbm [shape: bf16[256,512], index: 1, kind: input, shape index: {}]
  %s2 = inlined_call_operand.hbm [shape: f32[1,512], index: 2, kind: input, shape index: {}]
  %s3 = inlined_call_operand.hbm [shape: bf16[512,256], index: 3, kind: input, shape index: {}]
  %s4 = inlined_call_operand.vmem [shape: f32[1,256], index: 4, kind: input, shape index: {}]
  %s5 = inlined_call_operand.hbm [shape: bf16[256,256], index: 5, kind: output, shape index: {}]
  %s6 = sld [smem:[#allocation0]]
  $region46: #{tpu_custom_call.1} parent=0
    _
  %s8 = ssub.s32 1, %s6
  %s9 = scalar_select 0, %s8, %s6
  $region1: #{tpu_custom_call.1} parent=0
    #allocation2 [shape = 'u8[131072]{0}', space=vmem, size = 0x20000, scoped, tag = 'input window, operand 0, single buffered']
    #allocation3 [shape = 's32[1]{0}', space=sflag, size = 0x4, scoped, tag = 'scoped memory for tpu_custom_call.1']
    #allocation4 [shape = 's32[1]{0}', space=sflag, size = 0x4, scoped, tag = 'scoped memory for tpu_custom_call.1']
    #allocation5 [shape = 'u8[262144]{0}', space=vmem, size = 0x40000, scoped, tag = 'input window, operand 1, single buffered']
    #allocation6 [shape = 's32[1]{0}', space=sflag, size = 0x4, scoped, tag = 'scoped memory for tpu_custom_call.1']
    #allocation7 [shape = 'u8[2048]{0}', space=vmem, size = 0x800, scoped, tag = 'input window, operand 2, single buffered']
    #allocation8 [shape = 'u8[262144]{0}', space=vmem, size = 0x40000, scoped, tag = 'input window, operand 3, single buffered']
    #allocation9 [shape = 's32[1]{0}', space=sflag, size = 0x4, scoped, tag = 'scoped memory for tpu_custom_call.1']
    #allocation10 [shape = 'u8[131072]{0}', space=vmem, size = 0x20000, scoped, tag = 'output window, operand 0, single buffered']
    %10 = vsyncpa [#allocation3], 0
    %11 = vsyncpa [#allocation6], 0
    %12 = vsyncpa [#allocation9], 0
    %13 = vsyncpa [#allocation4], 0
    // Predicated region
    $region2: #{tpu_custom_call.1} parent=1 // pred_check
      _
    $region3: #{tpu_custom_call.1} parent=1 // pred_check_branch
      %15 = sbr.rel (0) target = $region5
    $region4: #{tpu_custom_call.1} parent=1 // pred_region
      %17 = vsyncadd [#allocation3], 0
      %s18 = sshll.u32 %s0, 4
      %s19 = int_to_ptr.hbm [resolvable:$true] %s18
      %s20 = sshll.u32 [#allocation2], 4
      %s21 = int_to_ptr.vmem [resolvable:$true] %s20
      %26 = dma.hbm_to_vmem [thread:$0]  %s19, 4096, %s21, [#allocation3], 128, 128, 8
    $region5: #{tpu_custom_call.1} parent=1 // pred_fallthru
      _
    // Predicated region
    $region6: #{tpu_custom_call.1} parent=1 // pred_check
      _
    $region7: #{tpu_custom_call.1} parent=1 // pred_check_branch
      %28 = sbr.rel (0) target = $region9
    $region8: #{tpu_custom_call.1} parent=1 // pred_region
      %30 = vsyncadd [#allocation6], 0
      %s31 = sshll.u32 %s1, 4
      %s32 = int_to_ptr.hbm [resolvable:$true] %s31
      %s33 = sshll.u32 [#allocation5], 4
      %s34 = int_to_ptr.vmem [resolvable:$true] %s33
      %39 = dma.hbm_to_vmem [thread:$0]  %s32, 8192, %s34, [#allocation6], 256, 256, 16
    $region9: #{tpu_custom_call.1} parent=1 // pred_fallthru
      _
    // Predicated region
    $region10: #{tpu_custom_call.1} parent=1 // pred_check
      _
    $region11: #{tpu_custom_call.1} parent=1 // pred_check_branch
      %41 = sbr.rel (0) target = $region13
    $region12: #{tpu_custom_call.1} parent=1 // pred_region
      %43 = vsyncadd [#allocation6], 0
      %s45 = sshll.u32 %s2, 4
      %s46 = int_to_ptr.hbm [resolvable:$true] %s45
      %s47 = sshll.u32 [#allocation7], 4
      %s48 = int_to_ptr.vmem [resolvable:$true] %s47
      %50 = dma.hbm_to_vmem [thread:$0]  %s46, 64, %s48, [#allocation6]
    $region13: #{tpu_custom_call.1} parent=1 // pred_fallthru
      _
    // Predicated region
    $region14: #{tpu_custom_call.1} parent=1 // pred_check
      _
    $region15: #{tpu_custom_call.1} parent=1 // pred_check_branch
      %52 = sbr.rel (0) target = $region17
    $region16: #{tpu_custom_call.1} parent=1 // pred_region
      %54 = vsyncadd [#allocation9], 0
      %s55 = sshll.u32 %s3, 4
      %s56 = int_to_ptr.hbm [resolvable:$true] %s55
      %s57 = sshll.u32 [#allocation8], 4
      %s58 = int_to_ptr.vmem [resolvable:$true] %s57
      %63 = dma.hbm_to_vmem [thread:$0]  %s56, 8192, %s58, [#allocation9], 128, 128, 8
    $region17: #{tpu_custom_call.1} parent=1 // pred_fallthru
      _
    // Predicated region
    $region18: #{tpu_custom_call.1} parent=1 // pred_check
      _
    $region19: #{tpu_custom_call.1} parent=1 // pred_check_branch
      %65 = sbr.rel (0) target = $region21
    $region20: #{tpu_custom_call.1} parent=1 // pred_region
      _
    $region21: #{tpu_custom_call.1} parent=1 // pred_fallthru
      _
    // Predicated region
    $region22: #{tpu_custom_call.1} parent=1 // pred_check
      _
    $region23: #{tpu_custom_call.1} parent=1 // pred_check_branch
      %67 = sbr.rel (0) target = $region25
    $region24: #{tpu_custom_call.1} parent=1 // pred_region
      %69 = dma.done [#allocation3], 4096
    $region25: #{tpu_custom_call.1} parent=1 // pred_fallthru
      _
    // Predicated region
    $region26: #{tpu_custom_call.1} parent=1 // pred_check
      _
    $region27: #{tpu_custom_call.1} parent=1 // pred_check_branch
      %71 = sbr.rel (0) target = $region29
    $region28: #{tpu_custom_call.1} parent=1 // pred_region
      %73 = dma.done [#allocation6], 8192
    $region29: #{tpu_custom_call.1} parent=1 // pred_fallthru
      _
    // Predicated region
    $region30: #{tpu_custom_call.1} parent=1 // pred_check
      _
    $region31: #{tpu_custom_call.1} parent=1 // pred_check_branch
      %75 = sbr.rel (0) target = $region33
    $region32: #{tpu_custom_call.1} parent=1 // pred_region
      %77 = dma.done [#allocation6], 64
    $region33: #{tpu_custom_call.1} parent=1 // pred_fallthru
      _
    // Predicated region
    $region34: #{tpu_custom_call.1} parent=1 // pred_check
      _
    $region35: #{tpu_custom_call.1} parent=1 // pred_check_branch
      %79 = sbr.rel (0) target = $region37
    $region36: #{tpu_custom_call.1} parent=1 // pred_region
      %81 = dma.done [#allocation9], 8192
    $region37: #{tpu_custom_call.1} parent=1 // pred_fallthru
      _
    %v82 = vld [vmem:[#allocation2] sm:$0xff]
    %v83 = vld [vmem:[#allocation2 + $0x8] sm:$0xff]
    %v84 = vld [vmem:[#allocation2 + $0x10] sm:$0xff]
    %v85 = vld [vmem:[#allocation2 + $0x18] sm:$0xff]
    %v86 = vld [vmem:[#allocation2 + $0x20] sm:$0xff]
    %v87 = vld [vmem:[#allocation2 + $0x28] sm:$0xff]
    %v88 = vld [vmem:[#allocation2 + $0x30] sm:$0xff]
    %v89 = vld [vmem:[#allocation2 + $0x38] sm:$0xff]
    %v90 = vld [vmem:[#allocation2 + $0x40] sm:$0xff]
    %v91 = vld [vmem:[#allocation2 + $0x48] sm:$0xff]
    %v92 = vld [vmem:[#allocation2 + $0x50] sm:$0xff]
    %v93 = vld [vmem:[#allocation2 + $0x58] sm:$0xff]
    %v94 = vld [vmem:[#allocation2 + $0x60] sm:$0xff]
    %v95 = vld [vmem:[#allocation2 + $0x68] sm:$0xff]
    %v96 = vld [vmem:[#allocation2 + $0x70] sm:$0xff]
    %v97 = vld [vmem:[#allocation2 + $0x78] sm:$0xff]
    %v98 = vld [vmem:[#allocation2 + $0x80] sm:$0xff]
    %v99 = vld [vmem:[#allocation2 + $0x88] sm:$0xff]
    %v100 = vld [vmem:[#allocation2 + $0x90] sm:$0xff]
    %v101 = vld [vmem:[#allocation2 + $0x98] sm:$0xff]
    %v102 = vld [vmem:[#allocation2 + $0xa0] sm:$0xff]
    %v103 = vld [vmem:[#allocation2 + $0xa8] sm:$0xff]
    %v104 = vld [vmem:[#allocation2 + $0xb0] sm:$0xff]
    %v105 = vld [vmem:[#allocation2 + $0xb8] sm:$0xff]
    %v106 = vld [vmem:[#allocation2 + $0xc0] sm:$0xff]
    %v107 = vld [vmem:[#allocation2 + $0xc8] sm:$0xff]
    %v108 = vld [vmem:[#allocation2 + $0xd0] sm:$0xff]
    %v109 = vld [vmem:[#allocation2 + $0xd8] sm:$0xff]
    %v110 = vld [vmem:[#allocation2 + $0xe0] sm:$0xff]
    %v111 = vld [vmem:[#allocation2 + $0xe8] sm:$0xff]
    %v112 = vld [vmem:[#allocation2 + $0xf0] sm:$0xff]
    %v113 = vld [vmem:[#allocation2 + $0xf8] sm:$0xff]
    %v114 = vld [vmem:[#allocation5] sm:$0xff]
    %v115 = vld [vmem:[#allocation5 + $0x8] sm:$0xff]
    %v116 = vld [vmem:[#allocation5 + $0x10] sm:$0xff]
    %v117 = vld [vmem:[#allocation5 + $0x18] sm:$0xff]
    %v118 = vld [vmem:[#allocation5 + $0x20] sm:$0xff]
    %v119 = vld [vmem:[#allocation5 + $0x28] sm:$0xff]
    %v120 = vld [vmem:[#allocation5 + $0x30] sm:$0xff]
    %v121 = vld [vmem:[#allocation5 + $0x38] sm:$0xff]
    %v122 = vld [vmem:[#allocation5 + $0x40] sm:$0xff]
    %v123 = vld [vmem:[#allocation5 + $0x48] sm:$0xff]
    %v124 = vld [vmem:[#allocation5 + $0x50] sm:$0xff]
    %v125 = vld [vmem:[#allocation5 + $0x58] sm:$0xff]
    %v126 = vld [vmem:[#allocation5 + $0x60] sm:$0xff]
    %v127 = vld [vmem:[#allocation5 + $0x68] sm:$0xff]
    %v128 = vld [vmem:[#allocation5 + $0x70] sm:$0xff]
    %v129 = vld [vmem:[#allocation5 + $0x78] sm:$0xff]
    %v130 = vld [vmem:[#allocation5 + $0x80] sm:$0xff]
    %v131 = vld [vmem:[#allocation5 + $0x88] sm:$0xff]
    %v132 = vld [vmem:[#allocation5 + $0x90] sm:$0xff]
    %v133 = vld [vmem:[#allocation5 + $0x98] sm:$0xff]
    %v134 = vld [vmem:[#allocation5 + $0xa0] sm:$0xff]
    %v135 = vld [vmem:[#allocation5 + $0xa8] sm:$0xff]
    %v136 = vld [vmem:[#allocation5 + $0xb0] sm:$0xff]
    %v137 = vld [vmem:[#allocation5 + $0xb8] sm:$0xff]
    %v138 = vld [vmem:[#allocation5 + $0xc0] sm:$0xff]
    %v139 = vld [vmem:[#allocation5 + $0xc8] sm:$0xff]
    %v140 = vld [vmem:[#allocation5 + $0xd0] sm:$0xff]
    %v141 = vld [vmem:[#allocation5 + $0xd8] sm:$0xff]
    %v142 = vld [vmem:[#allocation5 + $0xe0] sm:$0xff]
    %v143 = vld [vmem:[#allocation5 + $0xe8] sm:$0xff]
    %v144 = vld [vmem:[#allocation5 + $0xf0] sm:$0xff]
    %v145 = vld [vmem:[#allocation5 + $0xf8] sm:$0xff]
    %v146 = vld [vmem:[#allocation5 + $0x100] sm:$0xff]
    %v147 = vld [vmem:[#allocation5 + $0x108] sm:$0xff]
    %v148 = vld [vmem:[#allocation5 + $0x110] sm:$0xff]
    %v149 = vld [vmem:[#allocation5 + $0x118] sm:$0xff]
    %v150 = vld [vmem:[#allocation5 + $0x120] sm:$0xff]
    %v151 = vld [vmem:[#allocation5 + $0x128] sm:$0xff]
    %v152 = vld [vmem:[#allocation5 + $0x130] sm:$0xff]
    %v153 = vld [vmem:[#allocation5 + $0x138] sm:$0xff]
    %v154 = vld [vmem:[#allocation5 + $0x140] sm:$0xff]
    %v155 = vld [vmem:[#allocation5 + $0x148] sm:$0xff]
    %v156 = vld [vmem:[#allocation5 + $0x150] sm:$0xff]
    %v157 = vld [vmem:[#allocation5 + $0x158] sm:$0xff]
    %v158 = vld [vmem:[#allocation5 + $0x160] sm:$0xff]
    %v159 = vld [vmem:[#allocation5 + $0x168] sm:$0xff]
    %v160 = vld [vmem:[#allocation5 + $0x170] sm:$0xff]
    %v161 = vld [vmem:[#allocation5 + $0x178] sm:$0xff]
    %v162 = vld [vmem:[#allocation5 + $0x180] sm:$0xff]
    %v163 = vld [vmem:[#allocation5 + $0x188] sm:$0xff]
    %v164 = vld [vmem:[#allocation5 + $0x190] sm:$0xff]
    %v165 = vld [vmem:[#allocation5 + $0x198] sm:$0xff]
    %v166 = vld [vmem:[#allocation5 + $0x1a0] sm:$0xff]
    %v167 = vld [vmem:[#allocation5 + $0x1a8] sm:$0xff]
    %v168 = vld [vmem:[#allocation5 + $0x1b0] sm:$0xff]
    %v169 = vld [vmem:[#allocation5 + $0x1b8] sm:$0xff]
    %v170 = vld [vmem:[#allocation5 + $0x1c0] sm:$0xff]
    %v171 = vld [vmem:[#allocation5 + $0x1c8] sm:$0xff]
    %v172 = vld [vmem:[#allocation5 + $0x1d0] sm:$0xff]
    %v173 = vld [vmem:[#allocation5 + $0x1d8] sm:$0xff]
    %v174 = vld [vmem:[#allocation5 + $0x1e0] sm:$0xff]
    %v175 = vld [vmem:[#allocation5 + $0x1e8] sm:$0xff]
    %v176 = vld [vmem:[#allocation5 + $0x1f0] sm:$0xff]
    %v177 = vld [vmem:[#allocation5 + $0x1f8] sm:$0xff]
    %v178 = vld [vmem:[#allocation7] sm:$0xf]
    %v180 = vperm.slane %v178, 0
    %v181 = vperm.slane %v178, 1
    %v182 = vperm.slane %v178, 2
    %v183 = vperm.slane %v178, 3
    %v220 = vunpack.c.l.b16 %v82
    %v221 = vunpack.c.h.b16 %v82
    %v222 = vunpack.c.l.b16 %v83
    %v223 = vunpack.c.h.b16 %v83
    %v224 = vunpack.c.l.b16 %v84
    %v225 = vunpack.c.h.b16 %v84
    %v226 = vunpack.c.l.b16 %v85
    %v227 = vunpack.c.h.b16 %v85
    %v228 = vunpack.c.l.b16 %v86
    %v229 = vunpack.c.h.b16 %v86
    %v230 = vunpack.c.l.b16 %v87
    %v231 = vunpack.c.h.b16 %v87
    %v232 = vunpack.c.l.b16 %v88
    %v233 = vunpack.c.h.b16 %v88
    %v234 = vunpack.c.l.b16 %v89
    %v235 = vunpack.c.h.b16 %v89
    %v236 = vunpack.c.l.b16 %v90
    %v237 = vunpack.c.h.b16 %v90
    %v238 = vunpack.c.l.b16 %v91
    %v239 = vunpack.c.h.b16 %v91
    %v240 = vunpack.c.l.b16 %v92
    %v241 = vunpack.c.h.b16 %v92
    %v242 = vunpack.c.l.b16 %v93
    %v243 = vunpack.c.h.b16 %v93
    %v244 = vunpack.c.l.b16 %v94
    %v245 = vunpack.c.h.b16 %v94
    %v246 = vunpack.c.l.b16 %v95
    %v247 = vunpack.c.h.b16 %v95
    %v248 = vunpack.c.l.b16 %v96
    %v249 = vunpack.c.h.b16 %v96
    %v250 = vunpack.c.l.b16 %v97
    %v251 = vunpack.c.h.b16 %v97
    %v252 = vunpack.c.l.b16 %v98
    %v253 = vunpack.c.h.b16 %v98
    %v254 = vunpack.c.l.b16 %v99
    %v255 = vunpack.c.h.b16 %v99
    %v256 = vunpack.c.l.b16 %v100
    %v257 = vunpack.c.h.b16 %v100
    %v258 = vunpack.c.l.b16 %v101
    %v259 = vunpack.c.h.b16 %v101
    %v260 = vunpack.c.l.b16 %v102
    %v261 = vunpack.c.h.b16 %v102
    %v262 = vunpack.c.l.b16 %v103
    %v263 = vunpack.c.h.b16 %v103
    %v264 = vunpack.c.l.b16 %v104
    %v265 = vunpack.c.h.b16 %v104
    %v266 = vunpack.c.l.b16 %v105
    %v267 = vunpack.c.h.b16 %v105
    %v268 = vunpack.c.l.b16 %v106
    %v269 = vunpack.c.h.b16 %v106
    %v270 = vunpack.c.l.b16 %v107
    %v271 = vunpack.c.h.b16 %v107
    %v272 = vunpack.c.l.b16 %v108
    %v273 = vunpack.c.h.b16 %v108
    %v274 = vunpack.c.l.b16 %v109
    %v275 = vunpack.c.h.b16 %v109
    %v276 = vunpack.c.l.b16 %v110
    %v277 = vunpack.c.h.b16 %v110
    %v278 = vunpack.c.l.b16 %v111
    %v279 = vunpack.c.h.b16 %v111
    %v280 = vunpack.c.l.b16 %v112
    %v281 = vunpack.c.h.b16 %v112
    %v282 = vunpack.c.l.b16 %v113
    %v283 = vunpack.c.h.b16 %v113
    %v284 = vpack.c.b16 %v222, %v220
    %v285 = vpack.c.b16 %v223, %v221
    %v286 = vpack.c.b16 %v226, %v224
    %v287 = vpack.c.b16 %v227, %v225
    %v288 = vpack.c.b16 %v230, %v228
    %v289 = vpack.c.b16 %v231, %v229
    %v290 = vpack.c.b16 %v234, %v232
    %v291 = vpack.c.b16 %v235, %v233
    %v292 = vpack.c.b16 %v238, %v236
    %v293 = vpack.c.b16 %v239, %v237
    %v294 = vpack.c.b16 %v242, %v240
    %v295 = vpack.c.b16 %v243, %v241
    %v296 = vpack.c.b16 %v246, %v244
    %v297 = vpack.c.b16 %v247, %v245
    %v298 = vpack.c.b16 %v250, %v248
    %v299 = vpack.c.b16 %v251, %v249
    %v300 = vpack.c.b16 %v254, %v252
    %v301 = vpack.c.b16 %v255, %v253
    %v302 = vpack.c.b16 %v258, %v256
    %v303 = vpack.c.b16 %v259, %v257
    %v304 = vpack.c.b16 %v262, %v260
    %v305 = vpack.c.b16 %v263, %v261
    %v306 = vpack.c.b16 %v266, %v264
    %v307 = vpack.c.b16 %v267, %v265
    %v308 = vpack.c.b16 %v270, %v268
    %v309 = vpack.c.b16 %v271, %v269
    %v310 = vpack.c.b16 %v274, %v272
    %v311 = vpack.c.b16 %v275, %v273
    %v312 = vpack.c.b16 %v278, %v276
    %v313 = vpack.c.b16 %v279, %v277
    %v314 = vpack.c.b16 %v282, %v280
    %v315 = vpack.c.b16 %v283, %v281
    %v412 = vunpack.c.l.b16 %v114
    %v413 = vunpack.c.h.b16 %v114
    %v414 = vunpack.c.l.b16 %v115
    %v415 = vunpack.c.h.b16 %v115
    %v416 = vunpack.c.l.b16 %v116
    %v417 = vunpack.c.h.b16 %v116
    %v418 = vunpack.c.l.b16 %v117
    %v419 = vunpack.c.h.b16 %v117
    %v420 = vunpack.c.l.b16 %v118
    %v421 = vunpack.c.h.b16 %v118
    %v422 = vunpack.c.l.b16 %v119
    %v423 = vunpack.c.h.b16 %v119
    %v424 = vunpack.c.l.b16 %v120
    %v425 = vunpack.c.h.b16 %v120
    %v426 = vunpack.c.l.b16 %v121
    %v427 = vunpack.c.h.b16 %v121
    %v428 = vunpack.c.l.b16 %v122
    %v429 = vunpack.c.h.b16 %v122
    %v430 = vunpack.c.l.b16 %v123
    %v431 = vunpack.c.h.b16 %v123
    %v432 = vunpack.c.l.b16 %v124
    %v433 = vunpack.c.h.b16 %v124
    %v434 = vunpack.c.l.b16 %v125
    %v435 = vunpack.c.h.b16 %v125
    %v436 = vunpack.c.l.b16 %v126
    %v437 = vunpack.c.h.b16 %v126
    %v438 = vunpack.c.l.b16 %v127
    %v439 = vunpack.c.h.b16 %v127
    %v440 = vunpack.c.l.b16 %v128
    %v441 = vunpack.c.h.b16 %v128
    %v442 = vunpack.c.l.b16 %v129
    %v443 = vunpack.c.h.b16 %v129
    %v444 = vunpack.c.l.b16 %v130
    %v445 = vunpack.c.h.b16 %v130
    %v446 = vunpack.c.l.b16 %v131
    %v447 = vunpack.c.h.b16 %v131
    %v448 = vunpack.c.l.b16 %v132
    %v449 = vunpack.c.h.b16 %v132
    %v450 = vunpack.c.l.b16 %v133
    %v451 = vunpack.c.h.b16 %v133
    %v452 = vunpack.c.l.b16 %v134
    %v453 = vunpack.c.h.b16 %v134
    %v454 = vunpack.c.l.b16 %v135
    %v455 = vunpack.c.h.b16 %v135
    %v456 = vunpack.c.l.b16 %v136
    %v457 = vunpack.c.h.b16 %v136
    %v458 = vunpack.c.l.b16 %v137
    %v459 = vunpack.c.h.b16 %v137
    %v460 = vunpack.c.l.b16 %v138
    %v461 = vunpack.c.h.b16 %v138
    %v462 = vunpack.c.l.b16 %v139
    %v463 = vunpack.c.h.b16 %v139
    %v464 = vunpack.c.l.b16 %v140
    %v465 = vunpack.c.h.b16 %v140
    %v466 = vunpack.c.l.b16 %v141
    %v467 = vunpack.c.h.b16 %v141
    %v468 = vunpack.c.l.b16 %v142
    %v469 = vunpack.c.h.b16 %v142
    %v470 = vunpack.c.l.b16 %v143
    %v471 = vunpack.c.h.b16 %v143
    %v472 = vunpack.c.l.b16 %v144
    %v473 = vunpack.c.h.b16 %v144
    %v474 = vunpack.c.l.b16 %v145
    %v475 = vunpack.c.h.b16 %v145
    %v476 = vunpack.c.l.b16 %v146
    %v477 = vunpack.c.h.b16 %v146
    %v478 = vunpack.c.l.b16 %v147
    %v479 = vunpack.c.h.b16 %v147
    %v480 = vunpack.c.l.b16 %v148
    %v481 = vunpack.c.h.b16 %v148
    %v482 = vunpack.c.l.b16 %v149
    %v483 = vunpack.c.h.b16 %v149
    %v484 = vunpack.c.l.b16 %v150
    %v485 = vunpack.c.h.b16 %v150
    %v486 = vunpack.c.l.b16 %v151
    %v487 = vunpack.c.h.b16 %v151
    %v488 = vunpack.c.l.b16 %v152
    %v489 = vunpack.c.h.b16 %v152
    %v490 = vunpack.c.l.b16 %v153
    %v491 = vunpack.c.h.b16 %v153
    %v492 = vunpack.c.l.b16 %v154
    %v493 = vunpack.c.h.b16 %v154
    %v494 = vunpack.c.l.b16 %v155
    %v495 = vunpack.c.h.b16 %v155
    %v496 = vunpack.c.l.b16 %v156
    %v497 = vunpack.c.h.b16 %v156
    %v498 = vunpack.c.l.b16 %v157
    %v499 = vunpack.c.h.b16 %v157
    %v500 = vunpack.c.l.b16 %v158
    %v501 = vunpack.c.h.b16 %v158
    %v502 = vunpack.c.l.b16 %v159
    %v503 = vunpack.c.h.b16 %v159
    %v504 = vunpack.c.l.b16 %v160
    %v505 = vunpack.c.h.b16 %v160
    %v506 = vunpack.c.l.b16 %v161
    %v507 = vunpack.c.h.b16 %v161
    %v508 = vunpack.c.l.b16 %v162
    %v509 = vunpack.c.h.b16 %v162
    %v510 = vunpack.c.l.b16 %v163
    %v511 = vunpack.c.h.b16 %v163
    %v512 = vunpack.c.l.b16 %v164
    %v513 = vunpack.c.h.b16 %v164
    %v514 = vunpack.c.l.b16 %v165
    %v515 = vunpack.c.h.b16 %v165
    %v516 = vunpack.c.l.b16 %v166
    %v517 = vunpack.c.h.b16 %v166
    %v518 = vunpack.c.l.b16 %v167
    %v519 = vunpack.c.h.b16 %v167
    %v520 = vunpack.c.l.b16 %v168
    %v521 = vunpack.c.h.b16 %v168
    %v522 = vunpack.c.l.b16 %v169
    %v523 = vunpack.c.h.b16 %v169
    %v524 = vunpack.c.l.b16 %v170
    %v525 = vunpack.c.h.b16 %v170
    %v526 = vunpack.c.l.b16 %v171
    %v527 = vunpack.c.h.b16 %v171
    %v528 = vunpack.c.l.b16 %v172
    %v529 = vunpack.c.h.b16 %v172
    %v530 = vunpack.c.l.b16 %v173
    %v531 = vunpack.c.h.b16 %v173
    %v532 = vunpack.c.l.b16 %v174
    %v533 = vunpack.c.h.b16 %v174
    %v534 = vunpack.c.l.b16 %v175
    %v535 = vunpack.c.h.b16 %v175
    %v536 = vunpack.c.l.b16 %v176
    %v537 = vunpack.c.h.b16 %v176
    %v538 = vunpack.c.l.b16 %v177
    %v539 = vunpack.c.h.b16 %v177
    %v540 = vpack.c.b16 %v416, %v412
    %v541 = vpack.c.b16 %v417, %v413
    %v542 = vpack.c.b16 %v418, %v414
    %v543 = vpack.c.b16 %v419, %v415
    %v544 = vpack.c.b16 %v424, %v420
    %v545 = vpack.c.b16 %v425, %v421
    %v546 = vpack.c.b16 %v426, %v422
    %v547 = vpack.c.b16 %v427, %v423
    %v548 = vpack.c.b16 %v432, %v428
    %v549 = vpack.c.b16 %v433, %v429
    %v550 = vpack.c.b16 %v434, %v430
    %v551 = vpack.c.b16 %v435, %v431
    %v552 = vpack.c.b16 %v440, %v436
    %v553 = vpack.c.b16 %v441, %v437
    %v554 = vpack.c.b16 %v442, %v438
    %v555 = vpack.c.b16 %v443, %v439
    %v556 = vpack.c.b16 %v448, %v444
    %v557 = vpack.c.b16 %v449, %v445
    %v558 = vpack.c.b16 %v450, %v446
    %v559 = vpack.c.b16 %v451, %v447
    %v560 = vpack.c.b16 %v456, %v452
    %v561 = vpack.c.b16 %v457, %v453
    %v562 = vpack.c.b16 %v458, %v454
    %v563 = vpack.c.b16 %v459, %v455
    %v564 = vpack.c.b16 %v464, %v460
    %v565 = vpack.c.b16 %v465, %v461
    %v566 = vpack.c.b16 %v466, %v462
    %v567 = vpack.c.b16 %v467, %v463
    %v568 = vpack.c.b16 %v472, %v468
    %v569 = vpack.c.b16 %v473, %v469
    %v570 = vpack.c.b16 %v474, %v470
    %v571 = vpack.c.b16 %v475, %v471
    %v572 = vpack.c.b16 %v480, %v476
    %v573 = vpack.c.b16 %v481, %v477
    %v574 = vpack.c.b16 %v482, %v478
    %v575 = vpack.c.b16 %v483, %v479
    %v576 = vpack.c.b16 %v488, %v484
    %v577 = vpack.c.b16 %v489, %v485
    %v578 = vpack.c.b16 %v490, %v486
    %v579 = vpack.c.b16 %v491, %v487
    %v580 = vpack.c.b16 %v496, %v492
    %v581 = vpack.c.b16 %v497, %v493
    %v582 = vpack.c.b16 %v498, %v494
    %v583 = vpack.c.b16 %v499, %v495
    %v584 = vpack.c.b16 %v504, %v500
    %v585 = vpack.c.b16 %v505, %v501
    %v586 = vpack.c.b16 %v506, %v502
    %v587 = vpack.c.b16 %v507, %v503
    %v588 = vpack.c.b16 %v512, %v508
    %v589 = vpack.c.b16 %v513, %v509
    %v590 = vpack.c.b16 %v514, %v510
    %v591 = vpack.c.b16 %v515, %v511
    %v592 = vpack.c.b16 %v520, %v516
    %v593 = vpack.c.b16 %v521, %v517
    %v594 = vpack.c.b16 %v522, %v518
    %v595 = vpack.c.b16 %v523, %v519
    %v596 = vpack.c.b16 %v528, %v524
    %v597 = vpack.c.b16 %v529, %v525
    %v598 = vpack.c.b16 %v530, %v526
    %v599 = vpack.c.b16 %v531, %v527
    %v600 = vpack.c.b16 %v536, %v532
    %v601 = vpack.c.b16 %v537, %v533
    %v602 = vpack.c.b16 %v538, %v534
    %v603 = vpack.c.b16 %v539, %v535
    %668 = vmatpush.bf16.msra.mxu0 %v568
    %669 = vmatpush.bf16.msra.mxu0 %v564
    %670 = vmatpush.bf16.msra.mxu0 %v560
    %671 = vmatpush.bf16.msra.mxu0 %v556
    %672 = vmatpush.bf16.msra.mxu0 %v552
    %673 = vmatpush.bf16.msra.mxu0 %v548
    %674 = vmatpush.bf16.msra.mxu0 %v544
    %675 = vmatpush.bf16.msra.mxu0 %v540
    %676 = vmatmul.bf16.gmra.mxu0 %v284
    %v677 = vpop.f32.mrf.mxu0
    %v678 = vadd.f32 %v180, %v677
    %v679 = vpop.f32.mrf.mxu0
    %v680 = vadd.f32 %v180, %v679
    %681 = vmatmul.bf16.gmra.mxu0 %v286
    %v682 = vpop.f32.mrf.mxu0
    %v683 = vadd.f32 %v180, %v682
    %v684 = vpop.f32.mrf.mxu0
    %v685 = vadd.f32 %v180, %v684
    %686 = vmatmul.bf16.gmra.mxu0 %v288
    %v687 = vpop.f32.mrf.mxu0
    %v688 = vadd.f32 %v180, %v687
    %v689 = vpop.f32.mrf.mxu0
    %v690 = vadd.f32 %v180, %v689
    %691 = vmatmul.bf16.gmra.mxu0 %v290
    %v692 = vpop.f32.mrf.mxu0
    %v693 = vadd.f32 %v180, %v692
    %v694 = vpop.f32.mrf.mxu0
    %v695 = vadd.f32 %v180, %v694
    %696 = vmatmul.bf16.gmra.mxu0 %v292
    %v697 = vpop.f32.mrf.mxu0
    %v698 = vadd.f32 %v180, %v697
    %v699 = vpop.f32.mrf.mxu0
    %v700 = vadd.f32 %v180, %v699
    %701 = vmatmul.bf16.gmra.mxu0 %v294
    %v702 = vpop.f32.mrf.mxu0
    %v703 = vadd.f32 %v180, %v702
    %v704 = vpop.f32.mrf.mxu0
    %v705 = vadd.f32 %v180, %v704
    %706 = vmatmul.bf16.gmra.mxu0 %v296
    %v707 = vpop.f32.mrf.mxu0
    %v708 = vadd.f32 %v180, %v707
    %v709 = vpop.f32.mrf.mxu0
    %v710 = vadd.f32 %v180, %v709
    %711 = vmatmul.bf16.gmra.mxu0 %v298
    %v712 = vpop.f32.mrf.mxu0
    %v713 = vadd.f32 %v180, %v712
    %v714 = vpop.f32.mrf.mxu0
    %v715 = vadd.f32 %v180, %v714
    %716 = vmatmul.bf16.gmra.mxu0 %v300
    %v717 = vpop.f32.mrf.mxu0
    %v718 = vadd.f32 %v180, %v717
    %v719 = vpop.f32.mrf.mxu0
    %v720 = vadd.f32 %v180, %v719
    %721 = vmatmul.bf16.gmra.mxu0 %v302
    %v722 = vpop.f32.mrf.mxu0
    %v723 = vadd.f32 %v180, %v722
    %v724 = vpop.f32.mrf.mxu0
    %v725 = vadd.f32 %v180, %v724
    %726 = vmatmul.bf16.gmra.mxu0 %v304
    %v727 = vpop.f32.mrf.mxu0
    %v728 = vadd.f32 %v180, %v727
    %v729 = vpop.f32.mrf.mxu0
    %v730 = vadd.f32 %v180, %v729
    %731 = vmatmul.bf16.gmra.mxu0 %v306
    %v732 = vpop.f32.mrf.mxu0
    %v733 = vadd.f32 %v180, %v732
    %v734 = vpop.f32.mrf.mxu0
    %v735 = vadd.f32 %v180, %v734
    %736 = vmatmul.bf16.gmra.mxu0 %v308
    %v737 = vpop.f32.mrf.mxu0
    %v738 = vadd.f32 %v180, %v737
    %v739 = vpop.f32.mrf.mxu0
    %v740 = vadd.f32 %v180, %v739
    %741 = vmatmul.bf16.gmra.mxu0 %v310
    %v742 = vpop.f32.mrf.mxu0
    %v743 = vadd.f32 %v180, %v742
    %v744 = vpop.f32.mrf.mxu0
    %v745 = vadd.f32 %v180, %v744
    %746 = vmatmul.bf16.gmra.mxu0 %v312
    %v747 = vpop.f32.mrf.mxu0
    %v748 = vadd.f32 %v180, %v747
    %v749 = vpop.f32.mrf.mxu0
    %v750 = vadd.f32 %v180, %v749
    %751 = vmatmul.bf16.gmra.mxu0 %v314
    %v752 = vpop.f32.mrf.mxu0
    %v753 = vadd.f32 %v180, %v752
    %v754 = vpop.f32.mrf.mxu0
    %v755 = vadd.f32 %v180, %v754
    %756 = vdwg.mxu0
    %757 = vmatpush.bf16.msra.mxu0 %v600
    %758 = vmatpush.bf16.msra.mxu0 %v596
    %759 = vmatpush.bf16.msra.mxu0 %v592
    %760 = vmatpush.bf16.msra.mxu0 %v588
    %761 = vmatpush.bf16.msra.mxu0 %v584
    %762 = vmatpush.bf16.msra.mxu0 %v580
    %763 = vmatpush.bf16.msra.mxu0 %v576
    %764 = vmatpush.bf16.msra.mxu0 %v572
    %765 = vmatmul.bf16.gmra.mxu0 %v285
    %v766 = vpop.f32.mrf.mxu0
    %v767 = vadd.f32 %v678, %v766
    %v768 = vpop.f32.mrf.mxu0
    %v769 = vadd.f32 %v680, %v768
    %770 = vmatmul.bf16.gmra.mxu0 %v287
    %v771 = vpop.f32.mrf.mxu0
    %v772 = vadd.f32 %v683, %v771
    %v773 = vpop.f32.mrf.mxu0
    %v774 = vadd.f32 %v685, %v773
    %775 = vmatmul.bf16.gmra.mxu0 %v289
    %v776 = vpop.f32.mrf.mxu0
    %v777 = vadd.f32 %v688, %v776
    %v778 = vpop.f32.mrf.mxu0
    %v779 = vadd.f32 %v690, %v778
    %780 = vmatmul.bf16.gmra.mxu0 %v291
    %v781 = vpop.f32.mrf.mxu0
    %v782 = vadd.f32 %v693, %v781
    %v783 = vpop.f32.mrf.mxu0
    %v784 = vadd.f32 %v695, %v783
    %785 = vmatmul.bf16.gmra.mxu0 %v293
    %v786 = vpop.f32.mrf.mxu0
    %v787 = vadd.f32 %v698, %v786
    %v788 = vpop.f32.mrf.mxu0
    %v789 = vadd.f32 %v700, %v788
    %790 = vmatmul.bf16.gmra.mxu0 %v295
    %v791 = vpop.f32.mrf.mxu0
    %v792 = vadd.f32 %v703, %v791
    %v793 = vpop.f32.mrf.mxu0
    %v794 = vadd.f32 %v705, %v793
    %795 = vmatmul.bf16.gmra.mxu0 %v297
    %v796 = vpop.f32.mrf.mxu0
    %v797 = vadd.f32 %v708, %v796
    %v798 = vpop.f32.mrf.mxu0
    %v799 = vadd.f32 %v710, %v798
    %800 = vmatmul.bf16.gmra.mxu0 %v299
    %v801 = vpop.f32.mrf.mxu0
    %v802 = vadd.f32 %v713, %v801
    %v803 = vpop.f32.mrf.mxu0
    %v804 = vadd.f32 %v715, %v803
    %805 = vmatmul.bf16.gmra.mxu0 %v301
    %v806 = vpop.f32.mrf.mxu0
    %v807 = vadd.f32 %v718, %v806
    %v808 = vpop.f32.mrf.mxu0
    %v809 = vadd.f32 %v720, %v808
    %810 = vmatmul.bf16.gmra.mxu0 %v303
    %v811 = vpop.f32.mrf.mxu0
    %v812 = vadd.f32 %v723, %v811
    %v813 = vpop.f32.mrf.mxu0
    %v814 = vadd.f32 %v725, %v813
    %815 = vmatmul.bf16.gmra.mxu0 %v305
    %v816 = vpop.f32.mrf.mxu0
    %v817 = vadd.f32 %v728, %v816
    %v818 = vpop.f32.mrf.mxu0
    %v819 = vadd.f32 %v730, %v818
    %820 = vmatmul.bf16.gmra.mxu0 %v307
    %v821 = vpop.f32.mrf.mxu0
    %v822 = vadd.f32 %v733, %v821
    %v823 = vpop.f32.mrf.mxu0
    %v824 = vadd.f32 %v735, %v823
    %825 = vmatmul.bf16.gmra.mxu0 %v309
    %v826 = vpop.f32.mrf.mxu0
    %v827 = vadd.f32 %v738, %v826
    %v828 = vpop.f32.mrf.mxu0
    %v829 = vadd.f32 %v740, %v828
    %830 = vmatmul.bf16.gmra.mxu0 %v311
    %v831 = vpop.f32.mrf.mxu0
    %v832 = vadd.f32 %v743, %v831
    %v833 = vpop.f32.mrf.mxu0
    %v834 = vadd.f32 %v745, %v833
    %835 = vmatmul.bf16.gmra.mxu0 %v313
    %v836 = vpop.f32.mrf.mxu0
    %v837 = vadd.f32 %v748, %v836
    %v838 = vpop.f32.mrf.mxu0
    %v839 = vadd.f32 %v750, %v838
    %840 = vmatmul.bf16.gmra.mxu0 %v315
    %v841 = vpop.f32.mrf.mxu0
    %v842 = vadd.f32 %v753, %v841
    %v843 = vpop.f32.mrf.mxu0
    %v844 = vadd.f32 %v755, %v843
    %845 = vdwg.mxu0
    %846 = vmatpush.bf16.msra.mxu0 %v569
    %847 = vmatpush.bf16.msra.mxu0 %v565
    %848 = vmatpush.bf16.msra.mxu0 %v561
    %849 = vmatpush.bf16.msra.mxu0 %v557
    %850 = vmatpush.bf16.msra.mxu0 %v553
    %851 = vmatpush.bf16.msra.mxu0 %v549
    %852 = vmatpush.bf16.msra.mxu0 %v545
    %853 = vmatpush.bf16.msra.mxu0 %v541
    %854 = vmatmul.bf16.gmra.mxu0 %v284
    %v855 = vpop.f32.mrf.mxu0
    %v856 = vadd.f32 %v181, %v855
    %v857 = vpop.f32.mrf.mxu0
    %v858 = vadd.f32 %v181, %v857
    %859 = vmatmul.bf16.gmra.mxu0 %v286
    %v860 = vpop.f32.mrf.mxu0
    %v861 = vadd.f32 %v181, %v860
    %v862 = vpop.f32.mrf.mxu0
    %v863 = vadd.f32 %v181, %v862
    %864 = vmatmul.bf16.gmra.mxu0 %v288
    %v865 = vpop.f32.mrf.mxu0
    %v866 = vadd.f32 %v181, %v865
    %v867 = vpop.f32.mrf.mxu0
    %v868 = vadd.f32 %v181, %v867
    %869 = vmatmul.bf16.gmra.mxu0 %v290
    %v870 = vpop.f32.mrf.mxu0
    %v871 = vadd.f32 %v181, %v870
    %v872 = vpop.f32.mrf.mxu0
    %v873 = vadd.f32 %v181, %v872
    %874 = vmatmul.bf16.gmra.mxu0 %v292
    %v875 = vpop.f32.mrf.mxu0
    %v876 = vadd.f32 %v181, %v875
    %v877 = vpop.f32.mrf.mxu0
    %v878 = vadd.f32 %v181, %v877
    %879 = vmatmul.bf16.gmra.mxu0 %v294
    %v880 = vpop.f32.mrf.mxu0
    %v881 = vadd.f32 %v181, %v880
    %v882 = vpop.f32.mrf.mxu0
    %v883 = vadd.f32 %v181, %v882
    %884 = vmatmul.bf16.gmra.mxu0 %v296
    %v885 = vpop.f32.mrf.mxu0
    %v886 = vadd.f32 %v181, %v885
    %v887 = vpop.f32.mrf.mxu0
    %v888 = vadd.f32 %v181, %v887
    %889 = vmatmul.bf16.gmra.mxu0 %v298
    %v890 = vpop.f32.mrf.mxu0
    %v891 = vadd.f32 %v181, %v890
    %v892 = vpop.f32.mrf.mxu0
    %v893 = vadd.f32 %v181, %v892
    %894 = vmatmul.bf16.gmra.mxu0 %v300
    %v895 = vpop.f32.mrf.mxu0
    %v896 = vadd.f32 %v181, %v895
    %v897 = vpop.f32.mrf.mxu0
    %v898 = vadd.f32 %v181, %v897
    %899 = vmatmul.bf16.gmra.mxu0 %v302
    %v900 = vpop.f32.mrf.mxu0
    %v901 = vadd.f32 %v181, %v900
    %v902 = vpop.f32.mrf.mxu0
    %v903 = vadd.f32 %v181, %v902
    %904 = vmatmul.bf16.gmra.mxu0 %v304
    %v905 = vpop.f32.mrf.mxu0
    %v906 = vadd.f32 %v181, %v905
    %v907 = vpop.f32.mrf.mxu0
    %v908 = vadd.f32 %v181, %v907
    %909 = vmatmul.bf16.gmra.mxu0 %v306
    %v910 = vpop.f32.mrf.mxu0
    %v911 = vadd.f32 %v181, %v910
    %v912 = vpop.f32.mrf.mxu0
    %v913 = vadd.f32 %v181, %v912
    %914 = vmatmul.bf16.gmra.mxu0 %v308
    %v915 = vpop.f32.mrf.mxu0
    %v916 = vadd.f32 %v181, %v915
    %v917 = vpop.f32.mrf.mxu0
    %v918 = vadd.f32 %v181, %v917
    %919 = vmatmul.bf16.gmra.mxu0 %v310
    %v920 = vpop.f32.mrf.mxu0
    %v921 = vadd.f32 %v181, %v920
    %v922 = vpop.f32.mrf.mxu0
    %v923 = vadd.f32 %v181, %v922
    %924 = vmatmul.bf16.gmra.mxu0 %v312
    %v925 = vpop.f32.mrf.mxu0
    %v926 = vadd.f32 %v181, %v925
    %v927 = vpop.f32.mrf.mxu0
    %v928 = vadd.f32 %v181, %v927
    %929 = vmatmul.bf16.gmra.mxu0 %v314
    %v930 = vpop.f32.mrf.mxu0
    %v931 = vadd.f32 %v181, %v930
    %v932 = vpop.f32.mrf.mxu0
    %v933 = vadd.f32 %v181, %v932
    %934 = vdwg.mxu0
    %935 = vmatpush.bf16.msra.mxu0 %v601
    %936 = vmatpush.bf16.msra.mxu0 %v597
    %937 = vmatpush.bf16.msra.mxu0 %v593
    %938 = vmatpush.bf16.msra.mxu0 %v589
    %939 = vmatpush.bf16.msra.mxu0 %v585
    %940 = vmatpush.bf16.msra.mxu0 %v581
    %941 = vmatpush.bf16.msra.mxu0 %v577
    %942 = vmatpush.bf16.msra.mxu0 %v573
    %943 = vmatmul.bf16.gmra.mxu0 %v285
    %v944 = vpop.f32.mrf.mxu0
    %v945 = vadd.f32 %v856, %v944
    %v946 = vpop.f32.mrf.mxu0
    %v947 = vadd.f32 %v858, %v946
    %948 = vmatmul.bf16.gmra.mxu0 %v287
    %v949 = vpop.f32.mrf.mxu0
    %v950 = vadd.f32 %v861, %v949
    %v951 = vpop.f32.mrf.mxu0
    %v952 = vadd.f32 %v863, %v951
    %953 = vmatmul.bf16.gmra.mxu0 %v289
    %v954 = vpop.f32.mrf.mxu0
    %v955 = vadd.f32 %v866, %v954
    %v956 = vpop.f32.mrf.mxu0
    %v957 = vadd.f32 %v868, %v956
    %958 = vmatmul.bf16.gmra.mxu0 %v291
    %v959 = vpop.f32.mrf.mxu0
    %v960 = vadd.f32 %v871, %v959
    %v961 = vpop.f32.mrf.mxu0
    %v962 = vadd.f32 %v873, %v961
    %963 = vmatmul.bf16.gmra.mxu0 %v293
    %v964 = vpop.f32.mrf.mxu0
    %v965 = vadd.f32 %v876, %v964
    %v966 = vpop.f32.mrf.mxu0
    %v967 = vadd.f32 %v878, %v966
    %968 = vmatmul.bf16.gmra.mxu0 %v295
    %v969 = vpop.f32.mrf.mxu0
    %v970 = vadd.f32 %v881, %v969
    %v971 = vpop.f32.mrf.mxu0
    %v972 = vadd.f32 %v883, %v971
    %973 = vmatmul.bf16.gmra.mxu0 %v297
    %v974 = vpop.f32.mrf.mxu0
    %v975 = vadd.f32 %v886, %v974
    %v976 = vpop.f32.mrf.mxu0
    %v977 = vadd.f32 %v888, %v976
    %978 = vmatmul.bf16.gmra.mxu0 %v299
    %v979 = vpop.f32.mrf.mxu0
    %v980 = vadd.f32 %v891, %v979
    %v981 = vpop.f32.mrf.mxu0
    %v982 = vadd.f32 %v893, %v981
    %983 = vmatmul.bf16.gmra.mxu0 %v301
    %v984 = vpop.f32.mrf.mxu0
    %v985 = vadd.f32 %v896, %v984
    %v986 = vpop.f32.mrf.mxu0
    %v987 = vadd.f32 %v898, %v986
    %988 = vmatmul.bf16.gmra.mxu0 %v303
    %v989 = vpop.f32.mrf.mxu0
    %v990 = vadd.f32 %v901, %v989
    %v991 = vpop.f32.mrf.mxu0
    %v992 = vadd.f32 %v903, %v991
    %993 = vmatmul.bf16.gmra.mxu0 %v305
    %v994 = vpop.f32.mrf.mxu0
    %v995 = vadd.f32 %v906, %v994
    %v996 = vpop.f32.mrf.mxu0
    %v997 = vadd.f32 %v908, %v996
    %998 = vmatmul.bf16.gmra.mxu0 %v307
    %v999 = vpop.f32.mrf.mxu0
    %v1000 = vadd.f32 %v911, %v999
    %v1001 = vpop.f32.mrf.mxu0
    %v1002 = vadd.f32 %v913, %v1001
    %1003 = vmatmul.bf16.gmra.mxu0 %v309
    %v1004 = vpop.f32.mrf.mxu0
    %v1005 = vadd.f32 %v916, %v1004
    %v1006 = vpop.f32.mrf.mxu0
    %v1007 = vadd.f32 %v918, %v1006
    %1008 = vmatmul.bf16.gmra.mxu0 %v311
    %v1009 = vpop.f32.mrf.mxu0
    %v1010 = vadd.f32 %v921, %v1009
    %v1011 = vpop.f32.mrf.mxu0
    %v1012 = vadd.f32 %v923, %v1011
    %1013 = vmatmul.bf16.gmra.mxu0 %v313
    %v1014 = vpop.f32.mrf.mxu0
    %v1015 = vadd.f32 %v926, %v1014
    %v1016 = vpop.f32.mrf.mxu0
    %v1017 = vadd.f32 %v928, %v1016
    %1018 = vmatmul.bf16.gmra.mxu0 %v315
    %v1019 = vpop.f32.mrf.mxu0
    %v1020 = vadd.f32 %v931, %v1019
    %v1021 = vpop.f32.mrf.mxu0
    %v1022 = vadd.f32 %v933, %v1021
    %1023 = vdwg.mxu0
    %1024 = vmatpush.bf16.msra.mxu0 %v570
    %1025 = vmatpush.bf16.msra.mxu0 %v566
    %1026 = vmatpush.bf16.msra.mxu0 %v562
    %1027 = vmatpush.bf16.msra.mxu0 %v558
    %1028 = vmatpush.bf16.msra.mxu0 %v554
    %1029 = vmatpush.bf16.msra.mxu0 %v550
    %1030 = vmatpush.bf16.msra.mxu0 %v546
    %1031 = vmatpush.bf16.msra.mxu0 %v542
    %1032 = vmatmul.bf16.gmra.mxu0 %v284
    %v1033 = vpop.f32.mrf.mxu0
    %v1034 = vadd.f32 %v182, %v1033
    %v1035 = vpop.f32.mrf.mxu0
    %v1036 = vadd.f32 %v182, %v1035
    %1037 = vmatmul.bf16.gmra.mxu0 %v286
    %v1038 = vpop.f32.mrf.mxu0
    %v1039 = vadd.f32 %v182, %v1038
    %v1040 = vpop.f32.mrf.mxu0
    %v1041 = vadd.f32 %v182, %v1040
    %1042 = vmatmul.bf16.gmra.mxu0 %v288
    %v1043 = vpop.f32.mrf.mxu0
    %v1044 = vadd.f32 %v182, %v1043
    %v1045 = vpop.f32.mrf.mxu0
    %v1046 = vadd.f32 %v182, %v1045
    %1047 = vmatmul.bf16.gmra.mxu0 %v290
    %v1048 = vpop.f32.mrf.mxu0
    %v1049 = vadd.f32 %v182, %v1048
    %v1050 = vpop.f32.mrf.mxu0
    %v1051 = vadd.f32 %v182, %v1050
    %1052 = vmatmul.bf16.gmra.mxu0 %v292
    %v1053 = vpop.f32.mrf.mxu0
    %v1054 = vadd.f32 %v182, %v1053
    %v1055 = vpop.f32.mrf.mxu0
    %v1056 = vadd.f32 %v182, %v1055
    %1057 = vmatmul.bf16.gmra.mxu0 %v294
    %v1058 = vpop.f32.mrf.mxu0
    %v1059 = vadd.f32 %v182, %v1058
    %v1060 = vpop.f32.mrf.mxu0
    %v1061 = vadd.f32 %v182, %v1060
    %1062 = vmatmul.bf16.gmra.mxu0 %v296
    %v1063 = vpop.f32.mrf.mxu0
    %v1064 = vadd.f32 %v182, %v1063
    %v1065 = vpop.f32.mrf.mxu0
    %v1066 = vadd.f32 %v182, %v1065
    %1067 = vmatmul.bf16.gmra.mxu0 %v298
    %v1068 = vpop.f32.mrf.mxu0
    %v1069 = vadd.f32 %v182, %v1068
    %v1070 = vpop.f32.mrf.mxu0
    %v1071 = vadd.f32 %v182, %v1070
    %1072 = vmatmul.bf16.gmra.mxu0 %v300
    %v1073 = vpop.f32.mrf.mxu0
    %v1074 = vadd.f32 %v182, %v1073
    %v1075 = vpop.f32.mrf.mxu0
    %v1076 = vadd.f32 %v182, %v1075
    %1077 = vmatmul.bf16.gmra.mxu0 %v302
    %v1078 = vpop.f32.mrf.mxu0
    %v1079 = vadd.f32 %v182, %v1078
    %v1080 = vpop.f32.mrf.mxu0
    %v1081 = vadd.f32 %v182, %v1080
    %1082 = vmatmul.bf16.gmra.mxu0 %v304
    %v1083 = vpop.f32.mrf.mxu0
    %v1084 = vadd.f32 %v182, %v1083
    %v1085 = vpop.f32.mrf.mxu0
    %v1086 = vadd.f32 %v182, %v1085
    %1087 = vmatmul.bf16.gmra.mxu0 %v306
    %v1088 = vpop.f32.mrf.mxu0
    %v1089 = vadd.f32 %v182, %v1088
    %v1090 = vpop.f32.mrf.mxu0
    %v1091 = vadd.f32 %v182, %v1090
    %1092 = vmatmul.bf16.gmra.mxu0 %v308
    %v1093 = vpop.f32.mrf.mxu0
    %v1094 = vadd.f32 %v182, %v1093
    %v1095 = vpop.f32.mrf.mxu0
    %v1096 = vadd.f32 %v182, %v1095
    %1097 = vmatmul.bf16.gmra.mxu0 %v310
    %v1098 = vpop.f32.mrf.mxu0
    %v1099 = vadd.f32 %v182, %v1098
    %v1100 = vpop.f32.mrf.mxu0
    %v1101 = vadd.f32 %v182, %v1100
    %1102 = vmatmul.bf16.gmra.mxu0 %v312
    %v1103 = vpop.f32.mrf.mxu0
    %v1104 = vadd.f32 %v182, %v1103
    %v1105 = vpop.f32.mrf.mxu0
    %v1106 = vadd.f32 %v182, %v1105
    %1107 = vmatmul.bf16.gmra.mxu0 %v314
    %v1108 = vpop.f32.mrf.mxu0
    %v1109 = vadd.f32 %v182, %v1108
    %v1110 = vpop.f32.mrf.mxu0
    %v1111 = vadd.f32 %v182, %v1110
    %1112 = vdwg.mxu0
    %1113 = vmatpush.bf16.msra.mxu0 %v602
    %1114 = vmatpush.bf16.msra.mxu0 %v598
    %1115 = vmatpush.bf16.msra.mxu0 %v594
    %1116 = vmatpush.bf16.msra.mxu0 %v590
    %1117 = vmatpush.bf16.msra.mxu0 %v586
    %1118 = vmatpush.bf16.msra.mxu0 %v582
    %1119 = vmatpush.bf16.msra.mxu0 %v578
    %1120 = vmatpush.bf16.msra.mxu0 %v574
    %1121 = vmatmul.bf16.gmra.mxu0 %v285
    %v1122 = vpop.f32.mrf.mxu0
    %v1123 = vadd.f32 %v1034, %v1122
    %v1124 = vpop.f32.mrf.mxu0
    %v1125 = vadd.f32 %v1036, %v1124
    %1126 = vmatmul.bf16.gmra.mxu0 %v287
    %v1127 = vpop.f32.mrf.mxu0
    %v1128 = vadd.f32 %v1039, %v1127
    %v1129 = vpop.f32.mrf.mxu0
    %v1130 = vadd.f32 %v1041, %v1129
    %1131 = vmatmul.bf16.gmra.mxu0 %v289
    %v1132 = vpop.f32.mrf.mxu0
    %v1133 = vadd.f32 %v1044, %v1132
    %v1134 = vpop.f32.mrf.mxu0
    %v1135 = vadd.f32 %v1046, %v1134
    %1136 = vmatmul.bf16.gmra.mxu0 %v291
    %v1137 = vpop.f32.mrf.mxu0
    %v1138 = vadd.f32 %v1049, %v1137
    %v1139 = vpop.f32.mrf.mxu0
    %v1140 = vadd.f32 %v1051, %v1139
    %1141 = vmatmul.bf16.gmra.mxu0 %v293
    %v1142 = vpop.f32.mrf.mxu0
    %v1143 = vadd.f32 %v1054, %v1142
    %v1144 = vpop.f32.mrf.mxu0
    %v1145 = vadd.f32 %v1056, %v1144
    %1146 = vmatmul.bf16.gmra.mxu0 %v295
    %v1147 = vpop.f32.mrf.mxu0
    %v1148 = vadd.f32 %v1059, %v1147
    %v1149 = vpop.f32.mrf.mxu0
    %v1150 = vadd.f32 %v1061, %v1149
    %1151 = vmatmul.bf16.gmra.mxu0 %v297
    %v1152 = vpop.f32.mrf.mxu0
    %v1153 = vadd.f32 %v1064, %v1152
    %v1154 = vpop.f32.mrf.mxu0
    %v1155 = vadd.f32 %v1066, %v1154
    %1156 = vmatmul.bf16.gmra.mxu0 %v299
    %v1157 = vpop.f32.mrf.mxu0
    %v1158 = vadd.f32 %v1069, %v1157
    %v1159 = vpop.f32.mrf.mxu0
    %v1160 = vadd.f32 %v1071, %v1159
    %1161 = vmatmul.bf16.gmra.mxu0 %v301
    %v1162 = vpop.f32.mrf.mxu0
    %v1163 = vadd.f32 %v1074, %v1162
    %v1164 = vpop.f32.mrf.mxu0
    %v1165 = vadd.f32 %v1076, %v1164
    %1166 = vmatmul.bf16.gmra.mxu0 %v303
    %v1167 = vpop.f32.mrf.mxu0
    %v1168 = vadd.f32 %v1079, %v1167
    %v1169 = vpop.f32.mrf.mxu0
    %v1170 = vadd.f32 %v1081, %v1169
    %1171 = vmatmul.bf16.gmra.mxu0 %v305
    %v1172 = vpop.f32.mrf.mxu0
    %v1173 = vadd.f32 %v1084, %v1172
    %v1174 = vpop.f32.mrf.mxu0
    %v1175 = vadd.f32 %v1086, %v1174
    %1176 = vmatmul.bf16.gmra.mxu0 %v307
    %v1177 = vpop.f32.mrf.mxu0
    %v1178 = vadd.f32 %v1089, %v1177
    %v1179 = vpop.f32.mrf.mxu0
    %v1180 = vadd.f32 %v1091, %v1179
    %1181 = vmatmul.bf16.gmra.mxu0 %v309
    %v1182 = vpop.f32.mrf.mxu0
    %v1183 = vadd.f32 %v1094, %v1182
    %v1184 = vpop.f32.mrf.mxu0
    %v1185 = vadd.f32 %v1096, %v1184
    %1186 = vmatmul.bf16.gmra.mxu0 %v311
    %v1187 = vpop.f32.mrf.mxu0
    %v1188 = vadd.f32 %v1099, %v1187
    %v1189 = vpop.f32.mrf.mxu0
    %v1190 = vadd.f32 %v1101, %v1189
    %1191 = vmatmul.bf16.gmra.mxu0 %v313
    %v1192 = vpop.f32.mrf.mxu0
    %v1193 = vadd.f32 %v1104, %v1192
    %v1194 = vpop.f32.mrf.mxu0
    %v1195 = vadd.f32 %v1106, %v1194
    %1196 = vmatmul.bf16.gmra.mxu0 %v315
    %v1197 = vpop.f32.mrf.mxu0
    %v1198 = vadd.f32 %v1109, %v1197
    %v1199 = vpop.f32.mrf.mxu0
    %v1200 = vadd.f32 %v1111, %v1199
    %1201 = vdwg.mxu0
    %1202 = vmatpush.bf16.msra.mxu0 %v571
    %1203 = vmatpush.bf16.msra.mxu0 %v567
    %1204 = vmatpush.bf16.msra.mxu0 %v563
    %1205 = vmatpush.bf16.msra.mxu0 %v559
    %1206 = vmatpush.bf16.msra.mxu0 %v555
    %1207 = vmatpush.bf16.msra.mxu0 %v551
    %1208 = vmatpush.bf16.msra.mxu0 %v547
    %1209 = vmatpush.bf16.msra.mxu0 %v543
    %1210 = vmatmul.bf16.gmra.mxu0 %v284
    %v1211 = vpop.f32.mrf.mxu0
    %v1212 = vadd.f32 %v183, %v1211
    %v1213 = vpop.f32.mrf.mxu0
    %v1214 = vadd.f32 %v183, %v1213
    %1215 = vmatmul.bf16.gmra.mxu0 %v286
    %v1216 = vpop.f32.mrf.mxu0
    %v1217 = vadd.f32 %v183, %v1216
    %v1218 = vpop.f32.mrf.mxu0
    %v1219 = vadd.f32 %v183, %v1218
    %1220 = vmatmul.bf16.gmra.mxu0 %v288
    %v1221 = vpop.f32.mrf.mxu0
    %v1222 = vadd.f32 %v183, %v1221
    %v1223 = vpop.f32.mrf.mxu0
    %v1224 = vadd.f32 %v183, %v1223
    %1225 = vmatmul.bf16.gmra.mxu0 %v290
    %v1226 = vpop.f32.mrf.mxu0
    %v1227 = vadd.f32 %v183, %v1226
    %v1228 = vpop.f32.mrf.mxu0
    %v1229 = vadd.f32 %v183, %v1228
    %1230 = vmatmul.bf16.gmra.mxu0 %v292
    %v1231 = vpop.f32.mrf.mxu0
    %v1232 = vadd.f32 %v183, %v1231
    %v1233 = vpop.f32.mrf.mxu0
    %v1234 = vadd.f32 %v183, %v1233
    %1235 = vmatmul.bf16.gmra.mxu0 %v294
    %v1236 = vpop.f32.mrf.mxu0
    %v1237 = vadd.f32 %v183, %v1236
    %v1238 = vpop.f32.mrf.mxu0
    %v1239 = vadd.f32 %v183, %v1238
    %1240 = vmatmul.bf16.gmra.mxu0 %v296
    %v1241 = vpop.f32.mrf.mxu0
    %v1242 = vadd.f32 %v183, %v1241
    %v1243 = vpop.f32.mrf.mxu0
    %v1244 = vadd.f32 %v183, %v1243
    %1245 = vmatmul.bf16.gmra.mxu0 %v298
    %v1246 = vpop.f32.mrf.mxu0
    %v1247 = vadd.f32 %v183, %v1246
    %v1248 = vpop.f32.mrf.mxu0
    %v1249 = vadd.f32 %v183, %v1248
    %1250 = vmatmul.bf16.gmra.mxu0 %v300
    %v1251 = vpop.f32.mrf.mxu0
    %v1252 = vadd.f32 %v183, %v1251
    %v1253 = vpop.f32.mrf.mxu0
    %v1254 = vadd.f32 %v183, %v1253
    %1255 = vmatmul.bf16.gmra.mxu0 %v302
    %v1256 = vpop.f32.mrf.mxu0
    %v1257 = vadd.f32 %v183, %v1256
    %v1258 = vpop.f32.mrf.mxu0
    %v1259 = vadd.f32 %v183, %v1258
    %1260 = vmatmul.bf16.gmra.mxu0 %v304
    %v1261 = vpop.f32.mrf.mxu0
    %v1262 = vadd.f32 %v183, %v1261
    %v1263 = vpop.f32.mrf.mxu0
    %v1264 = vadd.f32 %v183, %v1263
    %1265 = vmatmul.bf16.gmra.mxu0 %v306
    %v1266 = vpop.f32.mrf.mxu0
    %v1267 = vadd.f32 %v183, %v1266
    %v1268 = vpop.f32.mrf.mxu0
    %v1269 = vadd.f32 %v183, %v1268
    %1270 = vmatmul.bf16.gmra.mxu0 %v308
    %v1271 = vpop.f32.mrf.mxu0
    %v1272 = vadd.f32 %v183, %v1271
    %v1273 = vpop.f32.mrf.mxu0
    %v1274 = vadd.f32 %v183, %v1273
    %1275 = vmatmul.bf16.gmra.mxu0 %v310
    %v1276 = vpop.f32.mrf.mxu0
    %v1277 = vadd.f32 %v183, %v1276
    %v1278 = vpop.f32.mrf.mxu0
    %v1279 = vadd.f32 %v183, %v1278
    %1280 = vmatmul.bf16.gmra.mxu0 %v312
    %v1281 = vpop.f32.mrf.mxu0
    %v1282 = vadd.f32 %v183, %v1281
    %v1283 = vpop.f32.mrf.mxu0
    %v1284 = vadd.f32 %v183, %v1283
    %1285 = vmatmul.bf16.gmra.mxu0 %v314
    %v1286 = vpop.f32.mrf.mxu0
    %v1287 = vadd.f32 %v183, %v1286
    %v1288 = vpop.f32.mrf.mxu0
    %v1289 = vadd.f32 %v183, %v1288
    %1290 = vdwg.mxu0
    %1291 = vmatpush.bf16.msra.mxu0 %v603
    %1292 = vmatpush.bf16.msra.mxu0 %v599
    %1293 = vmatpush.bf16.msra.mxu0 %v595
    %1294 = vmatpush.bf16.msra.mxu0 %v591
    %1295 = vmatpush.bf16.msra.mxu0 %v587
    %1296 = vmatpush.bf16.msra.mxu0 %v583
    %1297 = vmatpush.bf16.msra.mxu0 %v579
    %1298 = vmatpush.bf16.msra.mxu0 %v575
    %1299 = vmatmul.bf16.gmra.mxu0 %v285
    %v1300 = vpop.f32.mrf.mxu0
    %v1301 = vadd.f32 %v1212, %v1300
    %v1302 = vpop.f32.mrf.mxu0
    %v1303 = vadd.f32 %v1214, %v1302
    %1304 = vmatmul.bf16.gmra.mxu0 %v287
    %v1305 = vpop.f32.mrf.mxu0
    %v1306 = vadd.f32 %v1217, %v1305
    %v1307 = vpop.f32.mrf.mxu0
    %v1308 = vadd.f32 %v1219, %v1307
    %1309 = vmatmul.bf16.gmra.mxu0 %v289
    %v1310 = vpop.f32.mrf.mxu0
    %v1311 = vadd.f32 %v1222, %v1310
    %v1312 = vpop.f32.mrf.mxu0
    %v1313 = vadd.f32 %v1224, %v1312
    %1314 = vmatmul.bf16.gmra.mxu0 %v291
    %v1315 = vpop.f32.mrf.mxu0
    %v1316 = vadd.f32 %v1227, %v1315
    %v1317 = vpop.f32.mrf.mxu0
    %v1318 = vadd.f32 %v1229, %v1317
    %1319 = vmatmul.bf16.gmra.mxu0 %v293
    %v1320 = vpop.f32.mrf.mxu0
    %v1321 = vadd.f32 %v1232, %v1320
    %v1322 = vpop.f32.mrf.mxu0
    %v1323 = vadd.f32 %v1234, %v1322
    %1324 = vmatmul.bf16.gmra.mxu0 %v295
    %v1325 = vpop.f32.mrf.mxu0
    %v1326 = vadd.f32 %v1237, %v1325
    %v1327 = vpop.f32.mrf.mxu0
    %v1328 = vadd.f32 %v1239, %v1327
    %1329 = vmatmul.bf16.gmra.mxu0 %v297
    %v1330 = vpop.f32.mrf.mxu0
    %v1331 = vadd.f32 %v1242, %v1330
    %v1332 = vpop.f32.mrf.mxu0
    %v1333 = vadd.f32 %v1244, %v1332
    %1334 = vmatmul.bf16.gmra.mxu0 %v299
    %v1335 = vpop.f32.mrf.mxu0
    %v1336 = vadd.f32 %v1247, %v1335
    %v1337 = vpop.f32.mrf.mxu0
    %v1338 = vadd.f32 %v1249, %v1337
    %1339 = vmatmul.bf16.gmra.mxu0 %v301
    %v1340 = vpop.f32.mrf.mxu0
    %v1341 = vadd.f32 %v1252, %v1340
    %v1342 = vpop.f32.mrf.mxu0
    %v1343 = vadd.f32 %v1254, %v1342
    %1344 = vmatmul.bf16.gmra.mxu0 %v303
    %v1345 = vpop.f32.mrf.mxu0
    %v1346 = vadd.f32 %v1257, %v1345
    %v1347 = vpop.f32.mrf.mxu0
    %v1348 = vadd.f32 %v1259, %v1347
    %1349 = vmatmul.bf16.gmra.mxu0 %v305
    %v1350 = vpop.f32.mrf.mxu0
    %v1351 = vadd.f32 %v1262, %v1350
    %v1352 = vpop.f32.mrf.mxu0
    %v1353 = vadd.f32 %v1264, %v1352
    %1354 = vmatmul.bf16.gmra.mxu0 %v307
    %v1355 = vpop.f32.mrf.mxu0
    %v1356 = vadd.f32 %v1267, %v1355
    %v1357 = vpop.f32.mrf.mxu0
    %v1358 = vadd.f32 %v1269, %v1357
    %1359 = vmatmul.bf16.gmra.mxu0 %v309
    %v1360 = vpop.f32.mrf.mxu0
    %v1361 = vadd.f32 %v1272, %v1360
    %v1362 = vpop.f32.mrf.mxu0
    %v1363 = vadd.f32 %v1274, %v1362
    %1364 = vmatmul.bf16.gmra.mxu0 %v311
    %v1365 = vpop.f32.mrf.mxu0
    %v1366 = vadd.f32 %v1277, %v1365
    %v1367 = vpop.f32.mrf.mxu0
    %v1368 = vadd.f32 %v1279, %v1367
    %1369 = vmatmul.bf16.gmra.mxu0 %v313
    %v1370 = vpop.f32.mrf.mxu0
    %v1371 = vadd.f32 %v1282, %v1370
    %v1372 = vpop.f32.mrf.mxu0
    %v1373 = vadd.f32 %v1284, %v1372
    %1374 = vmatmul.bf16.gmra.mxu0 %v315
    %v1375 = vpop.f32.mrf.mxu0
    %v1376 = vadd.f32 %v1287, %v1375
    %v1377 = vpop.f32.mrf.mxu0
    %v1378 = vadd.f32 %v1289, %v1377
    %1379 = vdwg.mxu0
    %v1380 = vmul.f32 %v767, %v767
    %v1381 = vmul.f32 %v945, %v945
    %v1382 = vmul.f32 %v1123, %v1123
    %v1383 = vmul.f32 %v1301, %v1301
    %v1384 = vmul.f32 %v769, %v769
    %v1385 = vmul.f32 %v947, %v947
    %v1386 = vmul.f32 %v1125, %v1125
    %v1387 = vmul.f32 %v1303, %v1303
    %v1388 = vmul.f32 %v772, %v772
    %v1389 = vmul.f32 %v950, %v950
    %v1390 = vmul.f32 %v1128, %v1128
    %v1391 = vmul.f32 %v1306, %v1306
    %v1392 = vmul.f32 %v774, %v774
    %v1393 = vmul.f32 %v952, %v952
    %v1394 = vmul.f32 %v1130, %v1130
    %v1395 = vmul.f32 %v1308, %v1308
    %v1396 = vmul.f32 %v777, %v777
    %v1397 = vmul.f32 %v955, %v955
    %v1398 = vmul.f32 %v1133, %v1133
    %v1399 = vmul.f32 %v1311, %v1311
    %v1400 = vmul.f32 %v779, %v779
    %v1401 = vmul.f32 %v957, %v957
    %v1402 = vmul.f32 %v1135, %v1135
    %v1403 = vmul.f32 %v1313, %v1313
    %v1404 = vmul.f32 %v782, %v782
    %v1405 = vmul.f32 %v960, %v960
    %v1406 = vmul.f32 %v1138, %v1138
    %v1407 = vmul.f32 %v1316, %v1316
    %v1408 = vmul.f32 %v784, %v784
    %v1409 = vmul.f32 %v962, %v962
    %v1410 = vmul.f32 %v1140, %v1140
    %v1411 = vmul.f32 %v1318, %v1318
    %v1412 = vmul.f32 %v787, %v787
    %v1413 = vmul.f32 %v965, %v965
    %v1414 = vmul.f32 %v1143, %v1143
    %v1415 = vmul.f32 %v1321, %v1321
    %v1416 = vmul.f32 %v789, %v789
    %v1417 = vmul.f32 %v967, %v967
    %v1418 = vmul.f32 %v1145, %v1145
    %v1419 = vmul.f32 %v1323, %v1323
    %v1420 = vmul.f32 %v792, %v792
    %v1421 = vmul.f32 %v970, %v970
    %v1422 = vmul.f32 %v1148, %v1148
    %v1423 = vmul.f32 %v1326, %v1326
    %v1424 = vmul.f32 %v794, %v794
    %v1425 = vmul.f32 %v972, %v972
    %v1426 = vmul.f32 %v1150, %v1150
    %v1427 = vmul.f32 %v1328, %v1328
    %v1428 = vmul.f32 %v797, %v797
    %v1429 = vmul.f32 %v975, %v975
    %v1430 = vmul.f32 %v1153, %v1153
    %v1431 = vmul.f32 %v1331, %v1331
    %v1432 = vmul.f32 %v799, %v799
    %v1433 = vmul.f32 %v977, %v977
    %v1434 = vmul.f32 %v1155, %v1155
    %v1435 = vmul.f32 %v1333, %v1333
    %v1436 = vmul.f32 %v802, %v802
    %v1437 = vmul.f32 %v980, %v980
    %v1438 = vmul.f32 %v1158, %v1158
    %v1439 = vmul.f32 %v1336, %v1336
    %v1440 = vmul.f32 %v804, %v804
    %v1441 = vmul.f32 %v982, %v982
    %v1442 = vmul.f32 %v1160, %v1160
    %v1443 = vmul.f32 %v1338, %v1338
    %v1444 = vmul.f32 %v807, %v807
    %v1445 = vmul.f32 %v985, %v985
    %v1446 = vmul.f32 %v1163, %v1163
    %v1447 = vmul.f32 %v1341, %v1341
    %v1448 = vmul.f32 %v809, %v809
    %v1449 = vmul.f32 %v987, %v987
    %v1450 = vmul.f32 %v1165, %v1165
    %v1451 = vmul.f32 %v1343, %v1343
    %v1452 = vmul.f32 %v812, %v812
    %v1453 = vmul.f32 %v990, %v990
    %v1454 = vmul.f32 %v1168, %v1168
    %v1455 = vmul.f32 %v1346, %v1346
    %v1456 = vmul.f32 %v814, %v814
    %v1457 = vmul.f32 %v992, %v992
    %v1458 = vmul.f32 %v1170, %v1170
    %v1459 = vmul.f32 %v1348, %v1348
    %v1460 = vmul.f32 %v817, %v817
    %v1461 = vmul.f32 %v995, %v995
    %v1462 = vmul.f32 %v1173, %v1173
    %v1463 = vmul.f32 %v1351, %v1351
    %v1464 = vmul.f32 %v819, %v819
    %v1465 = vmul.f32 %v997, %v997
    %v1466 = vmul.f32 %v1175, %v1175
    %v1467 = vmul.f32 %v1353, %v1353
    %v1468 = vmul.f32 %v822, %v822
    %v1469 = vmul.f32 %v1000, %v1000
    %v1470 = vmul.f32 %v1178, %v1178
    %v1471 = vmul.f32 %v1356, %v1356
    %v1472 = vmul.f32 %v824, %v824
    %v1473 = vmul.f32 %v1002, %v1002
    %v1474 = vmul.f32 %v1180, %v1180
    %v1475 = vmul.f32 %v1358, %v1358
    %v1476 = vmul.f32 %v827, %v827
    %v1477 = vmul.f32 %v1005, %v1005
    %v1478 = vmul.f32 %v1183, %v1183
    %v1479 = vmul.f32 %v1361, %v1361
    %v1480 = vmul.f32 %v829, %v829
    %v1481 = vmul.f32 %v1007, %v1007
    %v1482 = vmul.f32 %v1185, %v1185
    %v1483 = vmul.f32 %v1363, %v1363
    %v1484 = vmul.f32 %v832, %v832
    %v1485 = vmul.f32 %v1010, %v1010
    %v1486 = vmul.f32 %v1188, %v1188
    %v1487 = vmul.f32 %v1366, %v1366
    %v1488 = vmul.f32 %v834, %v834
    %v1489 = vmul.f32 %v1012, %v1012
    %v1490 = vmul.f32 %v1190, %v1190
    %v1491 = vmul.f32 %v1368, %v1368
    %v1492 = vmul.f32 %v837, %v837
    %v1493 = vmul.f32 %v1015, %v1015
    %v1494 = vmul.f32 %v1193, %v1193
    %v1495 = vmul.f32 %v1371, %v1371
    %v1496 = vmul.f32 %v839, %v839
    %v1497 = vmul.f32 %v1017, %v1017
    %v1498 = vmul.f32 %v1195, %v1195
    %v1499 = vmul.f32 %v1373, %v1373
    %v1500 = vmul.f32 %v842, %v842
    %v1501 = vmul.f32 %v1020, %v1020
    %v1502 = vmul.f32 %v1198, %v1198
    %v1503 = vmul.f32 %v1376, %v1376
    %v1504 = vmul.f32 %v844, %v844
    %v1505 = vmul.f32 %v1022, %v1022
    %v1506 = vmul.f32 %v1200, %v1200
    %v1507 = vmul.f32 %v1378, %v1378
    %v1508 = vmul.f32 %v767, %v1380
    %v1509 = vmul.f32 %v945, %v1381
    %v1510 = vmul.f32 %v1123, %v1382
    %v1511 = vmul.f32 %v1301, %v1383
    %v1512 = vmul.f32 %v769, %v1384
    %v1513 = vmul.f32 %v947, %v1385
    %v1514 = vmul.f32 %v1125, %v1386
    %v1515 = vmul.f32 %v1303, %v1387
    %v1516 = vmul.f32 %v772, %v1388
    %v1517 = vmul.f32 %v950, %v1389
    %v1518 = vmul.f32 %v1128, %v1390
    %v1519 = vmul.f32 %v1306, %v1391
    %v1520 = vmul.f32 %v774, %v1392
    %v1521 = vmul.f32 %v952, %v1393
    %v1522 = vmul.f32 %v1130, %v1394
    %v1523 = vmul.f32 %v1308, %v1395
    %v1524 = vmul.f32 %v777, %v1396
    %v1525 = vmul.f32 %v955, %v1397
    %v1526 = vmul.f32 %v1133, %v1398
    %v1527 = vmul.f32 %v1311, %v1399
    %v1528 = vmul.f32 %v779, %v1400
    %v1529 = vmul.f32 %v957, %v1401
    %v1530 = vmul.f32 %v1135, %v1402
    %v1531 = vmul.f32 %v1313, %v1403
    %v1532 = vmul.f32 %v782, %v1404
    %v1533 = vmul.f32 %v960, %v1405
    %v1534 = vmul.f32 %v1138, %v1406
    %v1535 = vmul.f32 %v1316, %v1407
    %v1536 = vmul.f32 %v784, %v1408
    %v1537 = vmul.f32 %v962, %v1409
    %v1538 = vmul.f32 %v1140, %v1410
    %v1539 = vmul.f32 %v1318, %v1411
    %v1540 = vmul.f32 %v787, %v1412
    %v1541 = vmul.f32 %v965, %v1413
    %v1542 = vmul.f32 %v1143, %v1414
    %v1543 = vmul.f32 %v1321, %v1415
    %v1544 = vmul.f32 %v789, %v1416
    %v1545 = vmul.f32 %v967, %v1417
    %v1546 = vmul.f32 %v1145, %v1418
    %v1547 = vmul.f32 %v1323, %v1419
    %v1548 = vmul.f32 %v792, %v1420
    %v1549 = vmul.f32 %v970, %v1421
    %v1550 = vmul.f32 %v1148, %v1422
    %v1551 = vmul.f32 %v1326, %v1423
    %v1552 = vmul.f32 %v794, %v1424
    %v1553 = vmul.f32 %v972, %v1425
    %v1554 = vmul.f32 %v1150, %v1426
    %v1555 = vmul.f32 %v1328, %v1427
    %v1556 = vmul.f32 %v797, %v1428
    %v1557 = vmul.f32 %v975, %v1429
    %v1558 = vmul.f32 %v1153, %v1430
    %v1559 = vmul.f32 %v1331, %v1431
    %v1560 = vmul.f32 %v799, %v1432
    %v1561 = vmul.f32 %v977, %v1433
    %v1562 = vmul.f32 %v1155, %v1434
    %v1563 = vmul.f32 %v1333, %v1435
    %v1564 = vmul.f32 %v802, %v1436
    %v1565 = vmul.f32 %v980, %v1437
    %v1566 = vmul.f32 %v1158, %v1438
    %v1567 = vmul.f32 %v1336, %v1439
    %v1568 = vmul.f32 %v804, %v1440
    %v1569 = vmul.f32 %v982, %v1441
    %v1570 = vmul.f32 %v1160, %v1442
    %v1571 = vmul.f32 %v1338, %v1443
    %v1572 = vmul.f32 %v807, %v1444
    %v1573 = vmul.f32 %v985, %v1445
    %v1574 = vmul.f32 %v1163, %v1446
    %v1575 = vmul.f32 %v1341, %v1447
    %v1576 = vmul.f32 %v809, %v1448
    %v1577 = vmul.f32 %v987, %v1449
    %v1578 = vmul.f32 %v1165, %v1450
    %v1579 = vmul.f32 %v1343, %v1451
    %v1580 = vmul.f32 %v812, %v1452
    %v1581 = vmul.f32 %v990, %v1453
    %v1582 = vmul.f32 %v1168, %v1454
    %v1583 = vmul.f32 %v1346, %v1455
    %v1584 = vmul.f32 %v814, %v1456
    %v1585 = vmul.f32 %v992, %v1457
    %v1586 = vmul.f32 %v1170, %v1458
    %v1587 = vmul.f32 %v1348, %v1459
    %v1588 = vmul.f32 %v817, %v1460
    %v1589 = vmul.f32 %v995, %v1461
    %v1590 = vmul.f32 %v1173, %v1462
    %v1591 = vmul.f32 %v1351, %v1463
    %v1592 = vmul.f32 %v819, %v1464
    %v1593 = vmul.f32 %v997, %v1465
    %v1594 = vmul.f32 %v1175, %v1466
    %v1595 = vmul.f32 %v1353, %v1467
    %v1596 = vmul.f32 %v822, %v1468
    %v1597 = vmul.f32 %v1000, %v1469
    %v1598 = vmul.f32 %v1178, %v1470
    %v1599 = vmul.f32 %v1356, %v1471
    %v1600 = vmul.f32 %v824, %v1472
    %v1601 = vmul.f32 %v1002, %v1473
    %v1602 = vmul.f32 %v1180, %v1474
    %v1603 = vmul.f32 %v1358, %v1475
    %v1604 = vmul.f32 %v827, %v1476
    %v1605 = vmul.f32 %v1005, %v1477
    %v1606 = vmul.f32 %v1183, %v1478
    %v1607 = vmul.f32 %v1361, %v1479
    %v1608 = vmul.f32 %v829, %v1480
    %v1609 = vmul.f32 %v1007, %v1481
    %v1610 = vmul.f32 %v1185, %v1482
    %v1611 = vmul.f32 %v1363, %v1483
    %v1612 = vmul.f32 %v832, %v1484
    %v1613 = vmul.f32 %v1010, %v1485
    %v1614 = vmul.f32 %v1188, %v1486
    %v1615 = vmul.f32 %v1366, %v1487
    %v1616 = vmul.f32 %v834, %v1488
    %v1617 = vmul.f32 %v1012, %v1489
    %v1618 = vmul.f32 %v1190, %v1490
    %v1619 = vmul.f32 %v1368, %v1491
    %v1620 = vmul.f32 %v837, %v1492
    %v1621 = vmul.f32 %v1015, %v1493
    %v1622 = vmul.f32 %v1193, %v1494
    %v1623 = vmul.f32 %v1371, %v1495
    %v1624 = vmul.f32 %v839, %v1496
    %v1625 = vmul.f32 %v1017, %v1497
    %v1626 = vmul.f32 %v1195, %v1498
    %v1627 = vmul.f32 %v1373, %v1499
    %v1628 = vmul.f32 %v842, %v1500
    %v1629 = vmul.f32 %v1020, %v1501
    %v1630 = vmul.f32 %v1198, %v1502
    %v1631 = vmul.f32 %v1376, %v1503
    %v1632 = vmul.f32 %v844, %v1504
    %v1633 = vmul.f32 %v1022, %v1505
    %v1634 = vmul.f32 %v1200, %v1506
    %v1635 = vmul.f32 %v1378, %v1507
    %v1636 = vmul.f32 %v1508, 0.044715
    %v1637 = vmul.f32 %v1509, 0.044715
    %v1638 = vmul.f32 %v1510, 0.044715
    %v1639 = vmul.f32 %v1511, 0.044715
    %v1640 = vmul.f32 %v1512, 0.044715
    %v1641 = vmul.f32 %v1513, 0.044715
    %v1642 = vmul.f32 %v1514, 0.044715
    %v1643 = vmul.f32 %v1515, 0.044715
    %v1644 = vmul.f32 %v1516, 0.044715
    %v1645 = vmul.f32 %v1517, 0.044715
    %v1646 = vmul.f32 %v1518, 0.044715
    %v1647 = vmul.f32 %v1519, 0.044715
    %v1648 = vmul.f32 %v1520, 0.044715
    %v1649 = vmul.f32 %v1521, 0.044715
    %v1650 = vmul.f32 %v1522, 0.044715
    %v1651 = vmul.f32 %v1523, 0.044715
    %v1652 = vmul.f32 %v1524, 0.044715
    %v1653 = vmul.f32 %v1525, 0.044715
    %v1654 = vmul.f32 %v1526, 0.044715
    %v1655 = vmul.f32 %v1527, 0.044715
    %v1656 = vmul.f32 %v1528, 0.044715
    %v1657 = vmul.f32 %v1529, 0.044715
    %v1658 = vmul.f32 %v1530, 0.044715
    %v1659 = vmul.f32 %v1531, 0.044715
    %v1660 = vmul.f32 %v1532, 0.044715
    %v1661 = vmul.f32 %v1533, 0.044715
    %v1662 = vmul.f32 %v1534, 0.044715
    %v1663 = vmul.f32 %v1535, 0.044715
    %v1664 = vmul.f32 %v1536, 0.044715
    %v1665 = vmul.f32 %v1537, 0.044715
    %v1666 = vmul.f32 %v1538, 0.044715
    %v1667 = vmul.f32 %v1539, 0.044715
    %v1668 = vmul.f32 %v1540, 0.044715
    %v1669 = vmul.f32 %v1541, 0.044715
    %v1670 = vmul.f32 %v1542, 0.044715
    %v1671 = vmul.f32 %v1543, 0.044715
    %v1672 = vmul.f32 %v1544, 0.044715
    %v1673 = vmul.f32 %v1545, 0.044715
    %v1674 = vmul.f32 %v1546, 0.044715
    %v1675 = vmul.f32 %v1547, 0.044715
    %v1676 = vmul.f32 %v1548, 0.044715
    %v1677 = vmul.f32 %v1549, 0.044715
    %v1678 = vmul.f32 %v1550, 0.044715
    %v1679 = vmul.f32 %v1551, 0.044715
    %v1680 = vmul.f32 %v1552, 0.044715
    %v1681 = vmul.f32 %v1553, 0.044715
    %v1682 = vmul.f32 %v1554, 0.044715
    %v1683 = vmul.f32 %v1555, 0.044715
    %v1684 = vmul.f32 %v1556, 0.044715
    %v1685 = vmul.f32 %v1557, 0.044715
    %v1686 = vmul.f32 %v1558, 0.044715
    %v1687 = vmul.f32 %v1559, 0.044715
    %v1688 = vmul.f32 %v1560, 0.044715
    %v1689 = vmul.f32 %v1561, 0.044715
    %v1690 = vmul.f32 %v1562, 0.044715
    %v1691 = vmul.f32 %v1563, 0.044715
    %v1692 = vmul.f32 %v1564, 0.044715
    %v1693 = vmul.f32 %v1565, 0.044715
    %v1694 = vmul.f32 %v1566, 0.044715
    %v1695 = vmul.f32 %v1567, 0.044715
    %v1696 = vmul.f32 %v1568, 0.044715
    %v1697 = vmul.f32 %v1569, 0.044715
    %v1698 = vmul.f32 %v1570, 0.044715
    %v1699 = vmul.f32 %v1571, 0.044715
    %v1700 = vmul.f32 %v1572, 0.044715
    %v1701 = vmul.f32 %v1573, 0.044715
    %v1702 = vmul.f32 %v1574, 0.044715
    %v1703 = vmul.f32 %v1575, 0.044715
    %v1704 = vmul.f32 %v1576, 0.044715
    %v1705 = vmul.f32 %v1577, 0.044715
    %v1706 = vmul.f32 %v1578, 0.044715
    %v1707 = vmul.f32 %v1579, 0.044715
    %v1708 = vmul.f32 %v1580, 0.044715
    %v1709 = vmul.f32 %v1581, 0.044715
    %v1710 = vmul.f32 %v1582, 0.044715
    %v1711 = vmul.f32 %v1583, 0.044715
    %v1712 = vmul.f32 %v1584, 0.044715
    %v1713 = vmul.f32 %v1585, 0.044715
    %v1714 = vmul.f32 %v1586, 0.044715
    %v1715 = vmul.f32 %v1587, 0.044715
    %v1716 = vmul.f32 %v1588, 0.044715
    %v1717 = vmul.f32 %v1589, 0.044715
    %v1718 = vmul.f32 %v1590, 0.044715
    %v1719 = vmul.f32 %v1591, 0.044715
    %v1720 = vmul.f32 %v1592, 0.044715
    %v1721 = vmul.f32 %v1593, 0.044715
    %v1722 = vmul.f32 %v1594, 0.044715
    %v1723 = vmul.f32 %v1595, 0.044715
    %v1724 = vmul.f32 %v1596, 0.044715
    %v1725 = vmul.f32 %v1597, 0.044715
    %v1726 = vmul.f32 %v1598, 0.044715
    %v1727 = vmul.f32 %v1599, 0.044715
    %v1728 = vmul.f32 %v1600, 0.044715
    %v1729 = vmul.f32 %v1601, 0.044715
    %v1730 = vmul.f32 %v1602, 0.044715
    %v1731 = vmul.f32 %v1603, 0.044715
    %v1732 = vmul.f32 %v1604, 0.044715
    %v1733 = vmul.f32 %v1605, 0.044715
    %v1734 = vmul.f32 %v1606, 0.044715
    %v1735 = vmul.f32 %v1607, 0.044715
    %v1736 = vmul.f32 %v1608, 0.044715
    %v1737 = vmul.f32 %v1609, 0.044715
    %v1738 = vmul.f32 %v1610, 0.044715
    %v1739 = vmul.f32 %v1611, 0.044715
    %v1740 = vmul.f32 %v1612, 0.044715
    %v1741 = vmul.f32 %v1613, 0.044715
    %v1742 = vmul.f32 %v1614, 0.044715
    %v1743 = vmul.f32 %v1615, 0.044715
    %v1744 = vmul.f32 %v1616, 0.044715
    %v1745 = vmul.f32 %v1617, 0.044715
    %v1746 = vmul.f32 %v1618, 0.044715
    %v1747 = vmul.f32 %v1619, 0.044715
    %v1748 = vmul.f32 %v1620, 0.044715
    %v1749 = vmul.f32 %v1621, 0.044715
    %v1750 = vmul.f32 %v1622, 0.044715
    %v1751 = vmul.f32 %v1623, 0.044715
    %v1752 = vmul.f32 %v1624, 0.044715
    %v1753 = vmul.f32 %v1625, 0.044715
    %v1754 = vmul.f32 %v1626, 0.044715
    %v1755 = vmul.f32 %v1627, 0.044715
    %v1756 = vmul.f32 %v1628, 0.044715
    %v1757 = vmul.f32 %v1629, 0.044715
    %v1758 = vmul.f32 %v1630, 0.044715
    %v1759 = vmul.f32 %v1631, 0.044715
    %v1760 = vmul.f32 %v1632, 0.044715
    %v1761 = vmul.f32 %v1633, 0.044715
    %v1762 = vmul.f32 %v1634, 0.044715
    %v1763 = vmul.f32 %v1635, 0.044715
    %v1764 = vadd.f32 %v767, %v1636
    %v1765 = vadd.f32 %v945, %v1637
    %v1766 = vadd.f32 %v1123, %v1638
    %v1767 = vadd.f32 %v1301, %v1639
    %v1768 = vadd.f32 %v769, %v1640
    %v1769 = vadd.f32 %v947, %v1641
    %v1770 = vadd.f32 %v1125, %v1642
    %v1771 = vadd.f32 %v1303, %v1643
    %v1772 = vadd.f32 %v772, %v1644
    %v1773 = vadd.f32 %v950, %v1645
    %v1774 = vadd.f32 %v1128, %v1646
    %v1775 = vadd.f32 %v1306, %v1647
    %v1776 = vadd.f32 %v774, %v1648
    %v1777 = vadd.f32 %v952, %v1649
    %v1778 = vadd.f32 %v1130, %v1650
    %v1779 = vadd.f32 %v1308, %v1651
    %v1780 = vadd.f32 %v777, %v1652
    %v1781 = vadd.f32 %v955, %v1653
    %v1782 = vadd.f32 %v1133, %v1654
    %v1783 = vadd.f32 %v1311, %v1655
    %v1784 = vadd.f32 %v779, %v1656
    %v1785 = vadd.f32 %v957, %v1657
    %v1786 = vadd.f32 %v1135, %v1658
    %v1787 = vadd.f32 %v1313, %v1659
    %v1788 = vadd.f32 %v782, %v1660
    %v1789 = vadd.f32 %v960, %v1661
    %v1790 = vadd.f32 %v1138, %v1662
    %v1791 = vadd.f32 %v1316, %v1663
    %v1792 = vadd.f32 %v784, %v1664
    %v1793 = vadd.f32 %v962, %v1665
    %v1794 = vadd.f32 %v1140, %v1666
    %v1795 = vadd.f32 %v1318, %v1667
    %v1796 = vadd.f32 %v787, %v1668
    %v1797 = vadd.f32 %v965, %v1669
    %v1798 = vadd.f32 %v1143, %v1670
    %v1799 = vadd.f32 %v1321, %v1671
    %v1800 = vadd.f32 %v789, %v1672
    %v1801 = vadd.f32 %v967, %v1673
    %v1802 = vadd.f32 %v1145, %v1674
    %v1803 = vadd.f32 %v1323, %v1675
    %v1804 = vadd.f32 %v792, %v1676
    %v1805 = vadd.f32 %v970, %v1677
    %v1806 = vadd.f32 %v1148, %v1678
    %v1807 = vadd.f32 %v1326, %v1679
    %v1808 = vadd.f32 %v794, %v1680
    %v1809 = vadd.f32 %v972, %v1681
    %v1810 = vadd.f32 %v1150, %v1682
    %v1811 = vadd.f32 %v1328, %v1683
    %v1812 = vadd.f32 %v797, %v1684
    %v1813 = vadd.f32 %v975, %v1685
    %v1814 = vadd.f32 %v1153, %v1686
    %v1815 = vadd.f32 %v1331, %v1687
    %v1816 = vadd.f32 %v799, %v1688
    %v1817 = vadd.f32 %v977, %v1689
    %v1818 = vadd.f32 %v1155, %v1690
    %v1819 = vadd.f32 %v1333, %v1691
    %v1820 = vadd.f32 %v802, %v1692
    %v1821 = vadd.f32 %v980, %v1693
    %v1822 = vadd.f32 %v1158, %v1694
    %v1823 = vadd.f32 %v1336, %v1695
    %v1824 = vadd.f32 %v804, %v1696
    %v1825 = vadd.f32 %v982, %v1697
    %v1826 = vadd.f32 %v1160, %v1698
    %v1827 = vadd.f32 %v1338, %v1699
    %v1828 = vadd.f32 %v807, %v1700
    %v1829 = vadd.f32 %v985, %v1701
    %v1830 = vadd.f32 %v1163, %v1702
    %v1831 = vadd.f32 %v1341, %v1703
    %v1832 = vadd.f32 %v809, %v1704
    %v1833 = vadd.f32 %v987, %v1705
    %v1834 = vadd.f32 %v1165, %v1706
    %v1835 = vadd.f32 %v1343, %v1707
    %v1836 = vadd.f32 %v812, %v1708
    %v1837 = vadd.f32 %v990, %v1709
    %v1838 = vadd.f32 %v1168, %v1710
    %v1839 = vadd.f32 %v1346, %v1711
    %v1840 = vadd.f32 %v814, %v1712
    %v1841 = vadd.f32 %v992, %v1713
    %v1842 = vadd.f32 %v1170, %v1714
    %v1843 = vadd.f32 %v1348, %v1715
    %v1844 = vadd.f32 %v817, %v1716
    %v1845 = vadd.f32 %v995, %v1717
    %v1846 = vadd.f32 %v1173, %v1718
    %v1847 = vadd.f32 %v1351, %v1719
    %v1848 = vadd.f32 %v819, %v1720
    %v1849 = vadd.f32 %v997, %v1721
    %v1850 = vadd.f32 %v1175, %v1722
    %v1851 = vadd.f32 %v1353, %v1723
    %v1852 = vadd.f32 %v822, %v1724
    %v1853 = vadd.f32 %v1000, %v1725
    %v1854 = vadd.f32 %v1178, %v1726
    %v1855 = vadd.f32 %v1356, %v1727
    %v1856 = vadd.f32 %v824, %v1728
    %v1857 = vadd.f32 %v1002, %v1729
    %v1858 = vadd.f32 %v1180, %v1730
    %v1859 = vadd.f32 %v1358, %v1731
    %v1860 = vadd.f32 %v827, %v1732
    %v1861 = vadd.f32 %v1005, %v1733
    %v1862 = vadd.f32 %v1183, %v1734
    %v1863 = vadd.f32 %v1361, %v1735
    %v1864 = vadd.f32 %v829, %v1736
    %v1865 = vadd.f32 %v1007, %v1737
    %v1866 = vadd.f32 %v1185, %v1738
    %v1867 = vadd.f32 %v1363, %v1739
    %v1868 = vadd.f32 %v832, %v1740
    %v1869 = vadd.f32 %v1010, %v1741
    %v1870 = vadd.f32 %v1188, %v1742
    %v1871 = vadd.f32 %v1366, %v1743
    %v1872 = vadd.f32 %v834, %v1744
    %v1873 = vadd.f32 %v1012, %v1745
    %v1874 = vadd.f32 %v1190, %v1746
    %v1875 = vadd.f32 %v1368, %v1747
    %v1876 = vadd.f32 %v837, %v1748
    %v1877 = vadd.f32 %v1015, %v1749
    %v1878 = vadd.f32 %v1193, %v1750
    %v1879 = vadd.f32 %v1371, %v1751
    %v1880 = vadd.f32 %v839, %v1752
    %v1881 = vadd.f32 %v1017, %v1753
    %v1882 = vadd.f32 %v1195, %v1754
    %v1883 = vadd.f32 %v1373, %v1755
    %v1884 = vadd.f32 %v842, %v1756
    %v1885 = vadd.f32 %v1020, %v1757
    %v1886 = vadd.f32 %v1198, %v1758
    %v1887 = vadd.f32 %v1376, %v1759
    %v1888 = vadd.f32 %v844, %v1760
    %v1889 = vadd.f32 %v1022, %v1761
    %v1890 = vadd.f32 %v1200, %v1762
    %v1891 = vadd.f32 %v1378, %v1763
    %v1892 = vmul.f32 %v1764, 0.7978846
    %v1893 = vmul.f32 %v1765, 0.7978846
    %v1894 = vmul.f32 %v1766, 0.7978846
    %v1895 = vmul.f32 %v1767, 0.7978846
    %v1896 = vmul.f32 %v1768, 0.7978846
    %v1897 = vmul.f32 %v1769, 0.7978846
    %v1898 = vmul.f32 %v1770, 0.7978846
    %v1899 = vmul.f32 %v1771, 0.7978846
    %v1900 = vmul.f32 %v1772, 0.7978846
    %v1901 = vmul.f32 %v1773, 0.7978846
    %v1902 = vmul.f32 %v1774, 0.7978846
    %v1903 = vmul.f32 %v1775, 0.7978846
    %v1904 = vmul.f32 %v1776, 0.7978846
    %v1905 = vmul.f32 %v1777, 0.7978846
    %v1906 = vmul.f32 %v1778, 0.7978846
    %v1907 = vmul.f32 %v1779, 0.7978846
    %v1908 = vmul.f32 %v1780, 0.7978846
    %v1909 = vmul.f32 %v1781, 0.7978846
    %v1910 = vmul.f32 %v1782, 0.7978846
    %v1911 = vmul.f32 %v1783, 0.7978846
    %v1912 = vmul.f32 %v1784, 0.7978846
    %v1913 = vmul.f32 %v1785, 0.7978846
    %v1914 = vmul.f32 %v1786, 0.7978846
    %v1915 = vmul.f32 %v1787, 0.7978846
    %v1916 = vmul.f32 %v1788, 0.7978846
    %v1917 = vmul.f32 %v1789, 0.7978846
    %v1918 = vmul.f32 %v1790, 0.7978846
    %v1919 = vmul.f32 %v1791, 0.7978846
    %v1920 = vmul.f32 %v1792, 0.7978846
    %v1921 = vmul.f32 %v1793, 0.7978846
    %v1922 = vmul.f32 %v1794, 0.7978846
    %v1923 = vmul.f32 %v1795, 0.7978846
    %v1924 = vmul.f32 %v1796, 0.7978846
    %v1925 = vmul.f32 %v1797, 0.7978846
    %v1926 = vmul.f32 %v1798, 0.7978846
    %v1927 = vmul.f32 %v1799, 0.7978846
    %v1928 = vmul.f32 %v1800, 0.7978846
    %v1929 = vmul.f32 %v1801, 0.7978846
    %v1930 = vmul.f32 %v1802, 0.7978846
    %v1931 = vmul.f32 %v1803, 0.7978846
    %v1932 = vmul.f32 %v1804, 0.7978846
    %v1933 = vmul.f32 %v1805, 0.7978846
    %v1934 = vmul.f32 %v1806, 0.7978846
    %v1935 = vmul.f32 %v1807, 0.7978846
    %v1936 = vmul.f32 %v1808, 0.7978846
    %v1937 = vmul.f32 %v1809, 0.7978846
    %v1938 = vmul.f32 %v1810, 0.7978846
    %v1939 = vmul.f32 %v1811, 0.7978846
    %v1940 = vmul.f32 %v1812, 0.7978846
    %v1941 = vmul.f32 %v1813, 0.7978846
    %v1942 = vmul.f32 %v1814, 0.7978846
    %v1943 = vmul.f32 %v1815, 0.7978846
    %v1944 = vmul.f32 %v1816, 0.7978846
    %v1945 = vmul.f32 %v1817, 0.7978846
    %v1946 = vmul.f32 %v1818, 0.7978846
    %v1947 = vmul.f32 %v1819, 0.7978846
    %v1948 = vmul.f32 %v1820, 0.7978846
    %v1949 = vmul.f32 %v1821, 0.7978846
    %v1950 = vmul.f32 %v1822, 0.7978846
    %v1951 = vmul.f32 %v1823, 0.7978846
    %v1952 = vmul.f32 %v1824, 0.7978846
    %v1953 = vmul.f32 %v1825, 0.7978846
    %v1954 = vmul.f32 %v1826, 0.7978846
    %v1955 = vmul.f32 %v1827, 0.7978846
    %v1956 = vmul.f32 %v1828, 0.7978846
    %v1957 = vmul.f32 %v1829, 0.7978846
    %v1958 = vmul.f32 %v1830, 0.7978846
    %v1959 = vmul.f32 %v1831, 0.7978846
    %v1960 = vmul.f32 %v1832, 0.7978846
    %v1961 = vmul.f32 %v1833, 0.7978846
    %v1962 = vmul.f32 %v1834, 0.7978846
    %v1963 = vmul.f32 %v1835, 0.7978846
    %v1964 = vmul.f32 %v1836, 0.7978846
    %v1965 = vmul.f32 %v1837, 0.7978846
    %v1966 = vmul.f32 %v1838, 0.7978846
    %v1967 = vmul.f32 %v1839, 0.7978846
    %v1968 = vmul.f32 %v1840, 0.7978846
    %v1969 = vmul.f32 %v1841, 0.7978846
    %v1970 = vmul.f32 %v1842, 0.7978846
    %v1971 = vmul.f32 %v1843, 0.7978846
    %v1972 = vmul.f32 %v1844, 0.7978846
    %v1973 = vmul.f32 %v1845, 0.7978846
    %v1974 = vmul.f32 %v1846, 0.7978846
    %v1975 = vmul.f32 %v1847, 0.7978846
    %v1976 = vmul.f32 %v1848, 0.7978846
    %v1977 = vmul.f32 %v1849, 0.7978846
    %v1978 = vmul.f32 %v1850, 0.7978846
    %v1979 = vmul.f32 %v1851, 0.7978846
    %v1980 = vmul.f32 %v1852, 0.7978846
    %v1981 = vmul.f32 %v1853, 0.7978846
    %v1982 = vmul.f32 %v1854, 0.7978846
    %v1983 = vmul.f32 %v1855, 0.7978846
    %v1984 = vmul.f32 %v1856, 0.7978846
    %v1985 = vmul.f32 %v1857, 0.7978846
    %v1986 = vmul.f32 %v1858, 0.7978846
    %v1987 = vmul.f32 %v1859, 0.7978846
    %v1988 = vmul.f32 %v1860, 0.7978846
    %v1989 = vmul.f32 %v1861, 0.7978846
    %v1990 = vmul.f32 %v1862, 0.7978846
    %v1991 = vmul.f32 %v1863, 0.7978846
    %v1992 = vmul.f32 %v1864, 0.7978846
    %v1993 = vmul.f32 %v1865, 0.7978846
    %v1994 = vmul.f32 %v1866, 0.7978846
    %v1995 = vmul.f32 %v1867, 0.7978846
    %v1996 = vmul.f32 %v1868, 0.7978846
    %v1997 = vmul.f32 %v1869, 0.7978846
    %v1998 = vmul.f32 %v1870, 0.7978846
    %v1999 = vmul.f32 %v1871, 0.7978846
    %v2000 = vmul.f32 %v1872, 0.7978846
    %v2001 = vmul.f32 %v1873, 0.7978846
    %v2002 = vmul.f32 %v1874, 0.7978846
    %v2003 = vmul.f32 %v1875, 0.7978846
    %v2004 = vmul.f32 %v1876, 0.7978846
    %v2005 = vmul.f32 %v1877, 0.7978846
    %v2006 = vmul.f32 %v1878, 0.7978846
    %v2007 = vmul.f32 %v1879, 0.7978846
    %v2008 = vmul.f32 %v1880, 0.7978846
    %v2009 = vmul.f32 %v1881, 0.7978846
    %v2010 = vmul.f32 %v1882, 0.7978846
    %v2011 = vmul.f32 %v1883, 0.7978846
    %v2012 = vmul.f32 %v1884, 0.7978846
    %v2013 = vmul.f32 %v1885, 0.7978846
    %v2014 = vmul.f32 %v1886, 0.7978846
    %v2015 = vmul.f32 %v1887, 0.7978846
    %v2016 = vmul.f32 %v1888, 0.7978846
    %v2017 = vmul.f32 %v1889, 0.7978846
    %v2018 = vmul.f32 %v1890, 0.7978846
    %v2019 = vmul.f32 %v1891, 0.7978846
    %v2020 = vtanh.pop %v1892
    %v2021 = vtanh.pop %v1893
    %v2022 = vtanh.pop %v1894
    %v2023 = vtanh.pop %v1895
    %v2024 = vtanh.pop %v1896
    %v2025 = vtanh.pop %v1897
    %v2026 = vtanh.pop %v1898
    %v2027 = vtanh.pop %v1899
    %v2028 = vtanh.pop %v1900
    %v2029 = vtanh.pop %v1901
    %v2030 = vtanh.pop %v1902
    %v2031 = vtanh.pop %v1903
    %v2032 = vtanh.pop %v1904
    %v2033 = vtanh.pop %v1905
    %v2034 = vtanh.pop %v1906
    %v2035 = vtanh.pop %v1907
    %v2036 = vtanh.pop %v1908
    %v2037 = vtanh.pop %v1909
    %v2038 = vtanh.pop %v1910
    %v2039 = vtanh.pop %v1911
    %v2040 = vtanh.pop %v1912
    %v2041 = vtanh.pop %v1913
    %v2042 = vtanh.pop %v1914
    %v2043 = vtanh.pop %v1915
    %v2044 = vtanh.pop %v1916
    %v2045 = vtanh.pop %v1917
    %v2046 = vtanh.pop %v1918
    %v2047 = vtanh.pop %v1919
    %v2048 = vtanh.pop %v1920
    %v2049 = vtanh.pop %v1921
    %v2050 = vtanh.pop %v1922
    %v2051 = vtanh.pop %v1923
    %v2052 = vtanh.pop %v1924
    %v2053 = vtanh.pop %v1925
    %v2054 = vtanh.pop %v1926
    %v2055 = vtanh.pop %v1927
    %v2056 = vtanh.pop %v1928
    %v2057 = vtanh.pop %v1929
    %v2058 = vtanh.pop %v1930
    %v2059 = vtanh.pop %v1931
    %v2060 = vtanh.pop %v1932
    %v2061 = vtanh.pop %v1933
    %v2062 = vtanh.pop %v1934
    %v2063 = vtanh.pop %v1935
    %v2064 = vtanh.pop %v1936
    %v2065 = vtanh.pop %v1937
    %v2066 = vtanh.pop %v1938
    %v2067 = vtanh.pop %v1939
    %v2068 = vtanh.pop %v1940
    %v2069 = vtanh.pop %v1941
    %v2070 = vtanh.pop %v1942
    %v2071 = vtanh.pop %v1943
    %v2072 = vtanh.pop %v1944
    %v2073 = vtanh.pop %v1945
    %v2074 = vtanh.pop %v1946
    %v2075 = vtanh.pop %v1947
    %v2076 = vtanh.pop %v1948
    %v2077 = vtanh.pop %v1949
    %v2078 = vtanh.pop %v1950
    %v2079 = vtanh.pop %v1951
    %v2080 = vtanh.pop %v1952
    %v2081 = vtanh.pop %v1953
    %v2082 = vtanh.pop %v1954
    %v2083 = vtanh.pop %v1955
    %v2084 = vtanh.pop %v1956
    %v2085 = vtanh.pop %v1957
    %v2086 = vtanh.pop %v1958
    %v2087 = vtanh.pop %v1959
    %v2088 = vtanh.pop %v1960
    %v2089 = vtanh.pop %v1961
    %v2090 = vtanh.pop %v1962
    %v2091 = vtanh.pop %v1963
    %v2092 = vtanh.pop %v1964
    %v2093 = vtanh.pop %v1965
    %v2094 = vtanh.pop %v1966
    %v2095 = vtanh.pop %v1967
    %v2096 = vtanh.pop %v1968
    %v2097 = vtanh.pop %v1969
    %v2098 = vtanh.pop %v1970
    %v2099 = vtanh.pop %v1971
    %v2100 = vtanh.pop %v1972
    %v2101 = vtanh.pop %v1973
    %v2102 = vtanh.pop %v1974
    %v2103 = vtanh.pop %v1975
    %v2104 = vtanh.pop %v1976
    %v2105 = vtanh.pop %v1977
    %v2106 = vtanh.pop %v1978
    %v2107 = vtanh.pop %v1979
    %v2108 = vtanh.pop %v1980
    %v2109 = vtanh.pop %v1981
    %v2110 = vtanh.pop %v1982
    %v2111 = vtanh.pop %v1983
    %v2112 = vtanh.pop %v1984
    %v2113 = vtanh.pop %v1985
    %v2114 = vtanh.pop %v1986
    %v2115 = vtanh.pop %v1987
    %v2116 = vtanh.pop %v1988
    %v2117 = vtanh.pop %v1989
    %v2118 = vtanh.pop %v1990
    %v2119 = vtanh.pop %v1991
    %v2120 = vtanh.pop %v1992
    %v2121 = vtanh.pop %v1993
    %v2122 = vtanh.pop %v1994
    %v2123 = vtanh.pop %v1995
    %v2124 = vtanh.pop %v1996
    %v2125 = vtanh.pop %v1997
    %v2126 = vtanh.pop %v1998
    %v2127 = vtanh.pop %v1999
    %v2128 = vtanh.pop %v2000
    %v2129 = vtanh.pop %v2001
    %v2130 = vtanh.pop %v2002
    %v2131 = vtanh.pop %v2003
    %v2132 = vtanh.pop %v2004
    %v2133 = vtanh.pop %v2005
    %v2134 = vtanh.pop %v2006
    %v2135 = vtanh.pop %v2007
    %v2136 = vtanh.pop %v2008
    %v2137 = vtanh.pop %v2009
    %v2138 = vtanh.pop %v2010
    %v2139 = vtanh.pop %v2011
    %v2140 = vtanh.pop %v2012
    %v2141 = vtanh.pop %v2013
    %v2142 = vtanh.pop %v2014
    %v2143 = vtanh.pop %v2015
    %v2144 = vtanh.pop %v2016
    %v2145 = vtanh.pop %v2017
    %v2146 = vtanh.pop %v2018
    %v2147 = vtanh.pop %v2019
    %v2148 = vadd.f32 %v2020, 1.0
    %v2149 = vadd.f32 %v2021, 1.0
    %v2150 = vadd.f32 %v2022, 1.0
    %v2151 = vadd.f32 %v2023, 1.0
    %v2152 = vadd.f32 %v2024, 1.0
    %v2153 = vadd.f32 %v2025, 1.0
    %v2154 = vadd.f32 %v2026, 1.0
    %v2155 = vadd.f32 %v2027, 1.0
    %v2156 = vadd.f32 %v2028, 1.0
    %v2157 = vadd.f32 %v2029, 1.0
    %v2158 = vadd.f32 %v2030, 1.0
    %v2159 = vadd.f32 %v2031, 1.0
    %v2160 = vadd.f32 %v2032, 1.0
    %v2161 = vadd.f32 %v2033, 1.0
    %v2162 = vadd.f32 %v2034, 1.0
    %v2163 = vadd.f32 %v2035, 1.0
    %v2164 = vadd.f32 %v2036, 1.0
    %v2165 = vadd.f32 %v2037, 1.0
    %v2166 = vadd.f32 %v2038, 1.0
    %v2167 = vadd.f32 %v2039, 1.0
    %v2168 = vadd.f32 %v2040, 1.0
    %v2169 = vadd.f32 %v2041, 1.0
    %v2170 = vadd.f32 %v2042, 1.0
    %v2171 = vadd.f32 %v2043, 1.0
    %v2172 = vadd.f32 %v2044, 1.0
    %v2173 = vadd.f32 %v2045, 1.0
    %v2174 = vadd.f32 %v2046, 1.0
    %v2175 = vadd.f32 %v2047, 1.0
    %v2176 = vadd.f32 %v2048, 1.0
    %v2177 = vadd.f32 %v2049, 1.0
    %v2178 = vadd.f32 %v2050, 1.0
    %v2179 = vadd.f32 %v2051, 1.0
    %v2180 = vadd.f32 %v2052, 1.0
    %v2181 = vadd.f32 %v2053, 1.0
    %v2182 = vadd.f32 %v2054, 1.0
    %v2183 = vadd.f32 %v2055, 1.0
    %v2184 = vadd.f32 %v2056, 1.0
    %v2185 = vadd.f32 %v2057, 1.0
    %v2186 = vadd.f32 %v2058, 1.0
    %v2187 = vadd.f32 %v2059, 1.0
    %v2188 = vadd.f32 %v2060, 1.0
    %v2189 = vadd.f32 %v2061, 1.0
    %v2190 = vadd.f32 %v2062, 1.0
    %v2191 = vadd.f32 %v2063, 1.0
    %v2192 = vadd.f32 %v2064, 1.0
    %v2193 = vadd.f32 %v2065, 1.0
    %v2194 = vadd.f32 %v2066, 1.0
    %v2195 = vadd.f32 %v2067, 1.0
    %v2196 = vadd.f32 %v2068, 1.0
    %v2197 = vadd.f32 %v2069, 1.0
    %v2198 = vadd.f32 %v2070, 1.0
    %v2199 = vadd.f32 %v2071, 1.0
    %v2200 = vadd.f32 %v2072, 1.0
    %v2201 = vadd.f32 %v2073, 1.0
    %v2202 = vadd.f32 %v2074, 1.0
    %v2203 = vadd.f32 %v2075, 1.0
    %v2204 = vadd.f32 %v2076, 1.0
    %v2205 = vadd.f32 %v2077, 1.0
    %v2206 = vadd.f32 %v2078, 1.0
    %v2207 = vadd.f32 %v2079, 1.0
    %v2208 = vadd.f32 %v2080, 1.0
    %v2209 = vadd.f32 %v2081, 1.0
    %v2210 = vadd.f32 %v2082, 1.0
    %v2211 = vadd.f32 %v2083, 1.0
    %v2212 = vadd.f32 %v2084, 1.0
    %v2213 = vadd.f32 %v2085, 1.0
    %v2214 = vadd.f32 %v2086, 1.0
    %v2215 = vadd.f32 %v2087, 1.0
    %v2216 = vadd.f32 %v2088, 1.0
    %v2217 = vadd.f32 %v2089, 1.0
    %v2218 = vadd.f32 %v2090, 1.0
    %v2219 = vadd.f32 %v2091, 1.0
    %v2220 = vadd.f32 %v2092, 1.0
    %v2221 = vadd.f32 %v2093, 1.0
    %v2222 = vadd.f32 %v2094, 1.0
    %v2223 = vadd.f32 %v2095, 1.0
    %v2224 = vadd.f32 %v2096, 1.0
    %v2225 = vadd.f32 %v2097, 1.0
    %v2226 = vadd.f32 %v2098, 1.0
    %v2227 = vadd.f32 %v2099, 1.0
    %v2228 = vadd.f32 %v2100, 1.0
    %v2229 = vadd.f32 %v2101, 1.0
    %v2230 = vadd.f32 %v2102, 1.0
    %v2231 = vadd.f32 %v2103, 1.0
    %v2232 = vadd.f32 %v2104, 1.0
    %v2233 = vadd.f32 %v2105, 1.0
    %v2234 = vadd.f32 %v2106, 1.0
    %v2235 = vadd.f32 %v2107, 1.0
    %v2236 = vadd.f32 %v2108, 1.0
    %v2237 = vadd.f32 %v2109, 1.0
    %v2238 = vadd.f32 %v2110, 1.0
    %v2239 = vadd.f32 %v2111, 1.0
    %v2240 = vadd.f32 %v2112, 1.0
    %v2241 = vadd.f32 %v2113, 1.0
    %v2242 = vadd.f32 %v2114, 1.0
    %v2243 = vadd.f32 %v2115, 1.0
    %v2244 = vadd.f32 %v2116, 1.0
    %v2245 = vadd.f32 %v2117, 1.0
    %v2246 = vadd.f32 %v2118, 1.0
    %v2247 = vadd.f32 %v2119, 1.0
    %v2248 = vadd.f32 %v2120, 1.0
    %v2249 = vadd.f32 %v2121, 1.0
    %v2250 = vadd.f32 %v2122, 1.0
    %v2251 = vadd.f32 %v2123, 1.0
    %v2252 = vadd.f32 %v2124, 1.0
    %v2253 = vadd.f32 %v2125, 1.0
    %v2254 = vadd.f32 %v2126, 1.0
    %v2255 = vadd.f32 %v2127, 1.0
    %v2256 = vadd.f32 %v2128, 1.0
    %v2257 = vadd.f32 %v2129, 1.0
    %v2258 = vadd.f32 %v2130, 1.0
    %v2259 = vadd.f32 %v2131, 1.0
    %v2260 = vadd.f32 %v2132, 1.0
    %v2261 = vadd.f32 %v2133, 1.0
    %v2262 = vadd.f32 %v2134, 1.0
    %v2263 = vadd.f32 %v2135, 1.0
    %v2264 = vadd.f32 %v2136, 1.0
    %v2265 = vadd.f32 %v2137, 1.0
    %v2266 = vadd.f32 %v2138, 1.0
    %v2267 = vadd.f32 %v2139, 1.0
    %v2268 = vadd.f32 %v2140, 1.0
    %v2269 = vadd.f32 %v2141, 1.0
    %v2270 = vadd.f32 %v2142, 1.0
    %v2271 = vadd.f32 %v2143, 1.0
    %v2272 = vadd.f32 %v2144, 1.0
    %v2273 = vadd.f32 %v2145, 1.0
    %v2274 = vadd.f32 %v2146, 1.0
    %v2275 = vadd.f32 %v2147, 1.0
    %v2276 = vmul.f32 %v2148, 0.5
    %v2277 = vmul.f32 %v2149, 0.5
    %v2278 = vmul.f32 %v2150, 0.5
    %v2279 = vmul.f32 %v2151, 0.5
    %v2280 = vmul.f32 %v2152, 0.5
    %v2281 = vmul.f32 %v2153, 0.5
    %v2282 = vmul.f32 %v2154, 0.5
    %v2283 = vmul.f32 %v2155, 0.5
    %v2284 = vmul.f32 %v2156, 0.5
    %v2285 = vmul.f32 %v2157, 0.5
    %v2286 = vmul.f32 %v2158, 0.5
    %v2287 = vmul.f32 %v2159, 0.5
    %v2288 = vmul.f32 %v2160, 0.5
    %v2289 = vmul.f32 %v2161, 0.5
    %v2290 = vmul.f32 %v2162, 0.5
    %v2291 = vmul.f32 %v2163, 0.5
    %v2292 = vmul.f32 %v2164, 0.5
    %v2293 = vmul.f32 %v2165, 0.5
    %v2294 = vmul.f32 %v2166, 0.5
    %v2295 = vmul.f32 %v2167, 0.5
    %v2296 = vmul.f32 %v2168, 0.5
    %v2297 = vmul.f32 %v2169, 0.5
    %v2298 = vmul.f32 %v2170, 0.5
    %v2299 = vmul.f32 %v2171, 0.5
    %v2300 = vmul.f32 %v2172, 0.5
    %v2301 = vmul.f32 %v2173, 0.5
    %v2302 = vmul.f32 %v2174, 0.5
    %v2303 = vmul.f32 %v2175, 0.5
    %v2304 = vmul.f32 %v2176, 0.5
    %v2305 = vmul.f32 %v2177, 0.5
    %v2306 = vmul.f32 %v2178, 0.5
    %v2307 = vmul.f32 %v2179, 0.5
    %v2308 = vmul.f32 %v2180, 0.5
    %v2309 = vmul.f32 %v2181, 0.5
    %v2310 = vmul.f32 %v2182, 0.5
    %v2311 = vmul.f32 %v2183, 0.5
    %v2312 = vmul.f32 %v2184, 0.5
    %v2313 = vmul.f32 %v2185, 0.5
    %v2314 = vmul.f32 %v2186, 0.5
    %v2315 = vmul.f32 %v2187, 0.5
    %v2316 = vmul.f32 %v2188, 0.5
    %v2317 = vmul.f32 %v2189, 0.5
    %v2318 = vmul.f32 %v2190, 0.5
    %v2319 = vmul.f32 %v2191, 0.5
    %v2320 = vmul.f32 %v2192, 0.5
    %v2321 = vmul.f32 %v2193, 0.5
    %v2322 = vmul.f32 %v2194, 0.5
    %v2323 = vmul.f32 %v2195, 0.5
    %v2324 = vmul.f32 %v2196, 0.5
    %v2325 = vmul.f32 %v2197, 0.5
    %v2326 = vmul.f32 %v2198, 0.5
    %v2327 = vmul.f32 %v2199, 0.5
    %v2328 = vmul.f32 %v2200, 0.5
    %v2329 = vmul.f32 %v2201, 0.5
    %v2330 = vmul.f32 %v2202, 0.5
    %v2331 = vmul.f32 %v2203, 0.5
    %v2332 = vmul.f32 %v2204, 0.5
    %v2333 = vmul.f32 %v2205, 0.5
    %v2334 = vmul.f32 %v2206, 0.5
    %v2335 = vmul.f32 %v2207, 0.5
    %v2336 = vmul.f32 %v2208, 0.5
    %v2337 = vmul.f32 %v2209, 0.5
    %v2338 = vmul.f32 %v2210, 0.5
    %v2339 = vmul.f32 %v2211, 0.5
    %v2340 = vmul.f32 %v2212, 0.5
    %v2341 = vmul.f32 %v2213, 0.5
    %v2342 = vmul.f32 %v2214, 0.5
    %v2343 = vmul.f32 %v2215, 0.5
    %v2344 = vmul.f32 %v2216, 0.5
    %v2345 = vmul.f32 %v2217, 0.5
    %v2346 = vmul.f32 %v2218, 0.5
    %v2347 = vmul.f32 %v2219, 0.5
    %v2348 = vmul.f32 %v2220, 0.5
    %v2349 = vmul.f32 %v2221, 0.5
    %v2350 = vmul.f32 %v2222, 0.5
    %v2351 = vmul.f32 %v2223, 0.5
    %v2352 = vmul.f32 %v2224, 0.5
    %v2353 = vmul.f32 %v2225, 0.5
    %v2354 = vmul.f32 %v2226, 0.5
    %v2355 = vmul.f32 %v2227, 0.5
    %v2356 = vmul.f32 %v2228, 0.5
    %v2357 = vmul.f32 %v2229, 0.5
    %v2358 = vmul.f32 %v2230, 0.5
    %v2359 = vmul.f32 %v2231, 0.5
    %v2360 = vmul.f32 %v2232, 0.5
    %v2361 = vmul.f32 %v2233, 0.5
    %v2362 = vmul.f32 %v2234, 0.5
    %v2363 = vmul.f32 %v2235, 0.5
    %v2364 = vmul.f32 %v2236, 0.5
    %v2365 = vmul.f32 %v2237, 0.5
    %v2366 = vmul.f32 %v2238, 0.5
    %v2367 = vmul.f32 %v2239, 0.5
    %v2368 = vmul.f32 %v2240, 0.5
    %v2369 = vmul.f32 %v2241, 0.5
    %v2370 = vmul.f32 %v2242, 0.5
    %v2371 = vmul.f32 %v2243, 0.5
    %v2372 = vmul.f32 %v2244, 0.5
    %v2373 = vmul.f32 %v2245, 0.5
    %v2374 = vmul.f32 %v2246, 0.5
    %v2375 = vmul.f32 %v2247, 0.5
    %v2376 = vmul.f32 %v2248, 0.5
    %v2377 = vmul.f32 %v2249, 0.5
    %v2378 = vmul.f32 %v2250, 0.5
    %v2379 = vmul.f32 %v2251, 0.5
    %v2380 = vmul.f32 %v2252, 0.5
    %v2381 = vmul.f32 %v2253, 0.5
    %v2382 = vmul.f32 %v2254, 0.5
    %v2383 = vmul.f32 %v2255, 0.5
    %v2384 = vmul.f32 %v2256, 0.5
    %v2385 = vmul.f32 %v2257, 0.5
    %v2386 = vmul.f32 %v2258, 0.5
    %v2387 = vmul.f32 %v2259, 0.5
    %v2388 = vmul.f32 %v2260, 0.5
    %v2389 = vmul.f32 %v2261, 0.5
    %v2390 = vmul.f32 %v2262, 0.5
    %v2391 = vmul.f32 %v2263, 0.5
    %v2392 = vmul.f32 %v2264, 0.5
    %v2393 = vmul.f32 %v2265, 0.5
    %v2394 = vmul.f32 %v2266, 0.5
    %v2395 = vmul.f32 %v2267, 0.5
    %v2396 = vmul.f32 %v2268, 0.5
    %v2397 = vmul.f32 %v2269, 0.5
    %v2398 = vmul.f32 %v2270, 0.5
    %v2399 = vmul.f32 %v2271, 0.5
    %v2400 = vmul.f32 %v2272, 0.5
    %v2401 = vmul.f32 %v2273, 0.5
    %v2402 = vmul.f32 %v2274, 0.5
    %v2403 = vmul.f32 %v2275, 0.5
    %v2404 = vmul.f32 %v767, %v2276
    %v2405 = vmul.f32 %v945, %v2277
    %v2406 = vmul.f32 %v1123, %v2278
    %v2407 = vmul.f32 %v1301, %v2279
    %v2408 = vmul.f32 %v769, %v2280
    %v2409 = vmul.f32 %v947, %v2281
    %v2410 = vmul.f32 %v1125, %v2282
    %v2411 = vmul.f32 %v1303, %v2283
    %v2412 = vmul.f32 %v772, %v2284
    %v2413 = vmul.f32 %v950, %v2285
    %v2414 = vmul.f32 %v1128, %v2286
    %v2415 = vmul.f32 %v1306, %v2287
    %v2416 = vmul.f32 %v774, %v2288
    %v2417 = vmul.f32 %v952, %v2289
    %v2418 = vmul.f32 %v1130, %v2290
    %v2419 = vmul.f32 %v1308, %v2291
    %v2420 = vmul.f32 %v777, %v2292
    %v2421 = vmul.f32 %v955, %v2293
    %v2422 = vmul.f32 %v1133, %v2294
    %v2423 = vmul.f32 %v1311, %v2295
    %v2424 = vmul.f32 %v779, %v2296
    %v2425 = vmul.f32 %v957, %v2297
    %v2426 = vmul.f32 %v1135, %v2298
    %v2427 = vmul.f32 %v1313, %v2299
    %v2428 = vmul.f32 %v782, %v2300
    %v2429 = vmul.f32 %v960, %v2301
    %v2430 = vmul.f32 %v1138, %v2302
    %v2431 = vmul.f32 %v1316, %v2303
    %v2432 = vmul.f32 %v784, %v2304
    %v2433 = vmul.f32 %v962, %v2305
    %v2434 = vmul.f32 %v1140, %v2306
    %v2435 = vmul.f32 %v1318, %v2307
    %v2436 = vmul.f32 %v787, %v2308
    %v2437 = vmul.f32 %v965, %v2309
    %v2438 = vmul.f32 %v1143, %v2310
    %v2439 = vmul.f32 %v1321, %v2311
    %v2440 = vmul.f32 %v789, %v2312
    %v2441 = vmul.f32 %v967, %v2313
    %v2442 = vmul.f32 %v1145, %v2314
    %v2443 = vmul.f32 %v1323, %v2315
    %v2444 = vmul.f32 %v792, %v2316
    %v2445 = vmul.f32 %v970, %v2317
    %v2446 = vmul.f32 %v1148, %v2318
    %v2447 = vmul.f32 %v1326, %v2319
    %v2448 = vmul.f32 %v794, %v2320
    %v2449 = vmul.f32 %v972, %v2321
    %v2450 = vmul.f32 %v1150, %v2322
    %v2451 = vmul.f32 %v1328, %v2323
    %v2452 = vmul.f32 %v797, %v2324
    %v2453 = vmul.f32 %v975, %v2325
    %v2454 = vmul.f32 %v1153, %v2326
    %v2455 = vmul.f32 %v1331, %v2327
    %v2456 = vmul.f32 %v799, %v2328
    %v2457 = vmul.f32 %v977, %v2329
    %v2458 = vmul.f32 %v1155, %v2330
    %v2459 = vmul.f32 %v1333, %v2331
    %v2460 = vmul.f32 %v802, %v2332
    %v2461 = vmul.f32 %v980, %v2333
    %v2462 = vmul.f32 %v1158, %v2334
    %v2463 = vmul.f32 %v1336, %v2335
    %v2464 = vmul.f32 %v804, %v2336
    %v2465 = vmul.f32 %v982, %v2337
    %v2466 = vmul.f32 %v1160, %v2338
    %v2467 = vmul.f32 %v1338, %v2339
    %v2468 = vmul.f32 %v807, %v2340
    %v2469 = vmul.f32 %v985, %v2341
    %v2470 = vmul.f32 %v1163, %v2342
    %v2471 = vmul.f32 %v1341, %v2343
    %v2472 = vmul.f32 %v809, %v2344
    %v2473 = vmul.f32 %v987, %v2345
    %v2474 = vmul.f32 %v1165, %v2346
    %v2475 = vmul.f32 %v1343, %v2347
    %v2476 = vmul.f32 %v812, %v2348
    %v2477 = vmul.f32 %v990, %v2349
    %v2478 = vmul.f32 %v1168, %v2350
    %v2479 = vmul.f32 %v1346, %v2351
    %v2480 = vmul.f32 %v814, %v2352
    %v2481 = vmul.f32 %v992, %v2353
    %v2482 = vmul.f32 %v1170, %v2354
    %v2483 = vmul.f32 %v1348, %v2355
    %v2484 = vmul.f32 %v817, %v2356
    %v2485 = vmul.f32 %v995, %v2357
    %v2486 = vmul.f32 %v1173, %v2358
    %v2487 = vmul.f32 %v1351, %v2359
    %v2488 = vmul.f32 %v819, %v2360
    %v2489 = vmul.f32 %v997, %v2361
    %v2490 = vmul.f32 %v1175, %v2362
    %v2491 = vmul.f32 %v1353, %v2363
    %v2492 = vmul.f32 %v822, %v2364
    %v2493 = vmul.f32 %v1000, %v2365
    %v2494 = vmul.f32 %v1178, %v2366
    %v2495 = vmul.f32 %v1356, %v2367
    %v2496 = vmul.f32 %v824, %v2368
    %v2497 = vmul.f32 %v1002, %v2369
    %v2498 = vmul.f32 %v1180, %v2370
    %v2499 = vmul.f32 %v1358, %v2371
    %v2500 = vmul.f32 %v827, %v2372
    %v2501 = vmul.f32 %v1005, %v2373
    %v2502 = vmul.f32 %v1183, %v2374
    %v2503 = vmul.f32 %v1361, %v2375
    %v2504 = vmul.f32 %v829, %v2376
    %v2505 = vmul.f32 %v1007, %v2377
    %v2506 = vmul.f32 %v1185, %v2378
    %v2507 = vmul.f32 %v1363, %v2379
    %v2508 = vmul.f32 %v832, %v2380
    %v2509 = vmul.f32 %v1010, %v2381
    %v2510 = vmul.f32 %v1188, %v2382
    %v2511 = vmul.f32 %v1366, %v2383
    %v2512 = vmul.f32 %v834, %v2384
    %v2513 = vmul.f32 %v1012, %v2385
    %v2514 = vmul.f32 %v1190, %v2386
    %v2515 = vmul.f32 %v1368, %v2387
    %v2516 = vmul.f32 %v837, %v2388
    %v2517 = vmul.f32 %v1015, %v2389
    %v2518 = vmul.f32 %v1193, %v2390
    %v2519 = vmul.f32 %v1371, %v2391
    %v2520 = vmul.f32 %v839, %v2392
    %v2521 = vmul.f32 %v1017, %v2393
    %v2522 = vmul.f32 %v1195, %v2394
    %v2523 = vmul.f32 %v1373, %v2395
    %v2524 = vmul.f32 %v842, %v2396
    %v2525 = vmul.f32 %v1020, %v2397
    %v2526 = vmul.f32 %v1198, %v2398
    %v2527 = vmul.f32 %v1376, %v2399
    %v2528 = vmul.f32 %v844, %v2400
    %v2529 = vmul.f32 %v1022, %v2401
    %v2530 = vmul.f32 %v1200, %v2402
    %v2531 = vmul.f32 %v1378, %v2403
    %v2532 = vpack.c.bf16 %v2408, %v2404
    %v2533 = vpack.c.bf16 %v2409, %v2405
    %v2534 = vpack.c.bf16 %v2410, %v2406
    %v2535 = vpack.c.bf16 %v2411, %v2407
    %v2536 = vpack.c.bf16 %v2416, %v2412
    %v2537 = vpack.c.bf16 %v2417, %v2413
    %v2538 = vpack.c.bf16 %v2418, %v2414
    %v2539 = vpack.c.bf16 %v2419, %v2415
    %v2540 = vpack.c.bf16 %v2424, %v2420
    %v2541 = vpack.c.bf16 %v2425, %v2421
    %v2542 = vpack.c.bf16 %v2426, %v2422
    %v2543 = vpack.c.bf16 %v2427, %v2423
    %v2544 = vpack.c.bf16 %v2432, %v2428
    %v2545 = vpack.c.bf16 %v2433, %v2429
    %v2546 = vpack.c.bf16 %v2434, %v2430
    %v2547 = vpack.c.bf16 %v2435, %v2431
    %v2548 = vpack.c.bf16 %v2440, %v2436
    %v2549 = vpack.c.bf16 %v2441, %v2437
    %v2550 = vpack.c.bf16 %v2442, %v2438
    %v2551 = vpack.c.bf16 %v2443, %v2439
    %v2552 = vpack.c.bf16 %v2448, %v2444
    %v2553 = vpack.c.bf16 %v2449, %v2445
    %v2554 = vpack.c.bf16 %v2450, %v2446
    %v2555 = vpack.c.bf16 %v2451, %v2447
    %v2556 = vpack.c.bf16 %v2456, %v2452
    %v2557 = vpack.c.bf16 %v2457, %v2453
    %v2558 = vpack.c.bf16 %v2458, %v2454
    %v2559 = vpack.c.bf16 %v2459, %v2455
    %v2560 = vpack.c.bf16 %v2464, %v2460
    %v2561 = vpack.c.bf16 %v2465, %v2461
    %v2562 = vpack.c.bf16 %v2466, %v2462
    %v2563 = vpack.c.bf16 %v2467, %v2463
    %v2564 = vpack.c.bf16 %v2472, %v2468
    %v2565 = vpack.c.bf16 %v2473, %v2469
    %v2566 = vpack.c.bf16 %v2474, %v2470
    %v2567 = vpack.c.bf16 %v2475, %v2471
    %v2568 = vpack.c.bf16 %v2480, %v2476
    %v2569 = vpack.c.bf16 %v2481, %v2477
    %v2570 = vpack.c.bf16 %v2482, %v2478
    %v2571 = vpack.c.bf16 %v2483, %v2479
    %v2572 = vpack.c.bf16 %v2488, %v2484
    %v2573 = vpack.c.bf16 %v2489, %v2485
    %v2574 = vpack.c.bf16 %v2490, %v2486
    %v2575 = vpack.c.bf16 %v2491, %v2487
    %v2576 = vpack.c.bf16 %v2496, %v2492
    %v2577 = vpack.c.bf16 %v2497, %v2493
    %v2578 = vpack.c.bf16 %v2498, %v2494
    %v2579 = vpack.c.bf16 %v2499, %v2495
    %v2580 = vpack.c.bf16 %v2504, %v2500
    %v2581 = vpack.c.bf16 %v2505, %v2501
    %v2582 = vpack.c.bf16 %v2506, %v2502
    %v2583 = vpack.c.bf16 %v2507, %v2503
    %v2584 = vpack.c.bf16 %v2512, %v2508
    %v2585 = vpack.c.bf16 %v2513, %v2509
    %v2586 = vpack.c.bf16 %v2514, %v2510
    %v2587 = vpack.c.bf16 %v2515, %v2511
    %v2588 = vpack.c.bf16 %v2520, %v2516
    %v2589 = vpack.c.bf16 %v2521, %v2517
    %v2590 = vpack.c.bf16 %v2522, %v2518
    %v2591 = vpack.c.bf16 %v2523, %v2519
    %v2592 = vpack.c.bf16 %v2528, %v2524
    %v2593 = vpack.c.bf16 %v2529, %v2525
    %v2594 = vpack.c.bf16 %v2530, %v2526
    %v2595 = vpack.c.bf16 %v2531, %v2527
    %v2596 = vld [vmem:[#allocation8] sm:$0xff]
    %v2597 = vld [vmem:[#allocation8 + $0x8] sm:$0xff]
    %v2598 = vld [vmem:[#allocation8 + $0x10] sm:$0xff]
    %v2599 = vld [vmem:[#allocation8 + $0x18] sm:$0xff]
    %v2600 = vld [vmem:[#allocation8 + $0x20] sm:$0xff]
    %v2601 = vld [vmem:[#allocation8 + $0x28] sm:$0xff]
    %v2602 = vld [vmem:[#allocation8 + $0x30] sm:$0xff]
    %v2603 = vld [vmem:[#allocation8 + $0x38] sm:$0xff]
    %v2604 = vld [vmem:[#allocation8 + $0x40] sm:$0xff]
    %v2605 = vld [vmem:[#allocation8 + $0x48] sm:$0xff]
    %v2606 = vld [vmem:[#allocation8 + $0x50] sm:$0xff]
    %v2607 = vld [vmem:[#allocation8 + $0x58] sm:$0xff]
    %v2608 = vld [vmem:[#allocation8 + $0x60] sm:$0xff]
    %v2609 = vld [vmem:[#allocation8 + $0x68] sm:$0xff]
    %v2610 = vld [vmem:[#allocation8 + $0x70] sm:$0xff]
    %v2611 = vld [vmem:[#allocation8 + $0x78] sm:$0xff]
    %v2612 = vld [vmem:[#allocation8 + $0x80] sm:$0xff]
    %v2613 = vld [vmem:[#allocation8 + $0x88] sm:$0xff]
    %v2614 = vld [vmem:[#allocation8 + $0x90] sm:$0xff]
    %v2615 = vld [vmem:[#allocation8 + $0x98] sm:$0xff]
    %v2616 = vld [vmem:[#allocation8 + $0xa0] sm:$0xff]
    %v2617 = vld [vmem:[#allocation8 + $0xa8] sm:$0xff]
    %v2618 = vld [vmem:[#allocation8 + $0xb0] sm:$0xff]
    %v2619 = vld [vmem:[#allocation8 + $0xb8] sm:$0xff]
    %v2620 = vld [vmem:[#allocation8 + $0xc0] sm:$0xff]
    %v2621 = vld [vmem:[#allocation8 + $0xc8] sm:$0xff]
    %v2622 = vld [vmem:[#allocation8 + $0xd0] sm:$0xff]
    %v2623 = vld [vmem:[#allocation8 + $0xd8] sm:$0xff]
    %v2624 = vld [vmem:[#allocation8 + $0xe0] sm:$0xff]
    %v2625 = vld [vmem:[#allocation8 + $0xe8] sm:$0xff]
    %v2626 = vld [vmem:[#allocation8 + $0xf0] sm:$0xff]
    %v2627 = vld [vmem:[#allocation8 + $0xf8] sm:$0xff]
    %v2628 = vld [vmem:[#allocation8 + $0x100] sm:$0xff]
    %v2629 = vld [vmem:[#allocation8 + $0x108] sm:$0xff]
    %v2630 = vld [vmem:[#allocation8 + $0x110] sm:$0xff]
    %v2631 = vld [vmem:[#allocation8 + $0x118] sm:$0xff]
    %v2632 = vld [vmem:[#allocation8 + $0x120] sm:$0xff]
    %v2633 = vld [vmem:[#allocation8 + $0x128] sm:$0xff]
    %v2634 = vld [vmem:[#allocation8 + $0x130] sm:$0xff]
    %v2635 = vld [vmem:[#allocation8 + $0x138] sm:$0xff]
    %v2636 = vld [vmem:[#allocation8 + $0x140] sm:$0xff]
    %v2637 = vld [vmem:[#allocation8 + $0x148] sm:$0xff]
    %v2638 = vld [vmem:[#allocation8 + $0x150] sm:$0xff]
    %v2639 = vld [vmem:[#allocation8 + $0x158] sm:$0xff]
    %v2640 = vld [vmem:[#allocation8 + $0x160] sm:$0xff]
    %v2641 = vld [vmem:[#allocation8 + $0x168] sm:$0xff]
    %v2642 = vld [vmem:[#allocation8 + $0x170] sm:$0xff]
    %v2643 = vld [vmem:[#allocation8 + $0x178] sm:$0xff]
    %v2644 = vld [vmem:[#allocation8 + $0x180] sm:$0xff]
    %v2645 = vld [vmem:[#allocation8 + $0x188] sm:$0xff]
    %v2646 = vld [vmem:[#allocation8 + $0x190] sm:$0xff]
    %v2647 = vld [vmem:[#allocation8 + $0x198] sm:$0xff]
    %v2648 = vld [vmem:[#allocation8 + $0x1a0] sm:$0xff]
    %v2649 = vld [vmem:[#allocation8 + $0x1a8] sm:$0xff]
    %v2650 = vld [vmem:[#allocation8 + $0x1b0] sm:$0xff]
    %v2651 = vld [vmem:[#allocation8 + $0x1b8] sm:$0xff]
    %v2652 = vld [vmem:[#allocation8 + $0x1c0] sm:$0xff]
    %v2653 = vld [vmem:[#allocation8 + $0x1c8] sm:$0xff]
    %v2654 = vld [vmem:[#allocation8 + $0x1d0] sm:$0xff]
    %v2655 = vld [vmem:[#allocation8 + $0x1d8] sm:$0xff]
    %v2656 = vld [vmem:[#allocation8 + $0x1e0] sm:$0xff]
    %v2657 = vld [vmem:[#allocation8 + $0x1e8] sm:$0xff]
    %v2658 = vld [vmem:[#allocation8 + $0x1f0] sm:$0xff]
    %v2659 = vld [vmem:[#allocation8 + $0x1f8] sm:$0xff]
    %v2660 = vld [vmem:[%s4] sm:$0x3]
    %v2662 = vperm.slane %v2660, 0
    %v2663 = vperm.slane %v2660, 1
    %v2730 = vunpack.c.l.b16 %v2596
    %v2731 = vunpack.c.h.b16 %v2596
    %v2732 = vunpack.c.l.b16 %v2597
    %v2733 = vunpack.c.h.b16 %v2597
    %v2734 = vunpack.c.l.b16 %v2598
    %v2735 = vunpack.c.h.b16 %v2598
    %v2736 = vunpack.c.l.b16 %v2599
    %v2737 = vunpack.c.h.b16 %v2599
    %v2738 = vunpack.c.l.b16 %v2600
    %v2739 = vunpack.c.h.b16 %v2600
    %v2740 = vunpack.c.l.b16 %v2601
    %v2741 = vunpack.c.h.b16 %v2601
    %v2742 = vunpack.c.l.b16 %v2602
    %v2743 = vunpack.c.h.b16 %v2602
    %v2744 = vunpack.c.l.b16 %v2603
    %v2745 = vunpack.c.h.b16 %v2603
    %v2746 = vunpack.c.l.b16 %v2604
    %v2747 = vunpack.c.h.b16 %v2604
    %v2748 = vunpack.c.l.b16 %v2605
    %v2749 = vunpack.c.h.b16 %v2605
    %v2750 = vunpack.c.l.b16 %v2606
    %v2751 = vunpack.c.h.b16 %v2606
    %v2752 = vunpack.c.l.b16 %v2607
    %v2753 = vunpack.c.h.b16 %v2607
    %v2754 = vunpack.c.l.b16 %v2608
    %v2755 = vunpack.c.h.b16 %v2608
    %v2756 = vunpack.c.l.b16 %v2609
    %v2757 = vunpack.c.h.b16 %v2609
    %v2758 = vunpack.c.l.b16 %v2610
    %v2759 = vunpack.c.h.b16 %v2610
    %v2760 = vunpack.c.l.b16 %v2611
    %v2761 = vunpack.c.h.b16 %v2611
    %v2762 = vunpack.c.l.b16 %v2612
    %v2763 = vunpack.c.h.b16 %v2612
    %v2764 = vunpack.c.l.b16 %v2613
    %v2765 = vunpack.c.h.b16 %v2613
    %v2766 = vunpack.c.l.b16 %v2614
    %v2767 = vunpack.c.h.b16 %v2614
    %v2768 = vunpack.c.l.b16 %v2615
    %v2769 = vunpack.c.h.b16 %v2615
    %v2770 = vunpack.c.l.b16 %v2616
    %v2771 = vunpack.c.h.b16 %v2616
    %v2772 = vunpack.c.l.b16 %v2617
    %v2773 = vunpack.c.h.b16 %v2617
    %v2774 = vunpack.c.l.b16 %v2618
    %v2775 = vunpack.c.h.b16 %v2618
    %v2776 = vunpack.c.l.b16 %v2619
    %v2777 = vunpack.c.h.b16 %v2619
    %v2778 = vunpack.c.l.b16 %v2620
    %v2779 = vunpack.c.h.b16 %v2620
    %v2780 = vunpack.c.l.b16 %v2621
    %v2781 = vunpack.c.h.b16 %v2621
    %v2782 = vunpack.c.l.b16 %v2622
    %v2783 = vunpack.c.h.b16 %v2622
    %v2784 = vunpack.c.l.b16 %v2623
    %v2785 = vunpack.c.h.b16 %v2623
    %v2786 = vunpack.c.l.b16 %v2624
    %v2787 = vunpack.c.h.b16 %v2624
    %v2788 = vunpack.c.l.b16 %v2625
    %v2789 = vunpack.c.h.b16 %v2625
    %v2790 = vunpack.c.l.b16 %v2626
    %v2791 = vunpack.c.h.b16 %v2626
    %v2792 = vunpack.c.l.b16 %v2627
    %v2793 = vunpack.c.h.b16 %v2627
    %v2794 = vunpack.c.l.b16 %v2628
    %v2795 = vunpack.c.h.b16 %v2628
    %v2796 = vunpack.c.l.b16 %v2629
    %v2797 = vunpack.c.h.b16 %v2629
    %v2798 = vunpack.c.l.b16 %v2630
    %v2799 = vunpack.c.h.b16 %v2630
    %v2800 = vunpack.c.l.b16 %v2631
    %v2801 = vunpack.c.h.b16 %v2631
    %v2802 = vunpack.c.l.b16 %v2632
    %v2803 = vunpack.c.h.b16 %v2632
    %v2804 = vunpack.c.l.b16 %v2633
    %v2805 = vunpack.c.h.b16 %v2633
    %v2806 = vunpack.c.l.b16 %v2634
    %v2807 = vunpack.c.h.b16 %v2634
    %v2808 = vunpack.c.l.b16 %v2635
    %v2809 = vunpack.c.h.b16 %v2635
    %v2810 = vunpack.c.l.b16 %v2636
    %v2811 = vunpack.c.h.b16 %v2636
    %v2812 = vunpack.c.l.b16 %v2637
    %v2813 = vunpack.c.h.b16 %v2637
    %v2814 = vunpack.c.l.b16 %v2638
    %v2815 = vunpack.c.h.b16 %v2638
    %v2816 = vunpack.c.l.b16 %v2639
    %v2817 = vunpack.c.h.b16 %v2639
    %v2818 = vunpack.c.l.b16 %v2640
    %v2819 = vunpack.c.h.b16 %v2640
    %v2820 = vunpack.c.l.b16 %v2641
    %v2821 = vunpack.c.h.b16 %v2641
    %v2822 = vunpack.c.l.b16 %v2642
    %v2823 = vunpack.c.h.b16 %v2642
    %v2824 = vunpack.c.l.b16 %v2643
    %v2825 = vunpack.c.h.b16 %v2643
    %v2826 = vunpack.c.l.b16 %v2644
    %v2827 = vunpack.c.h.b16 %v2644
    %v2828 = vunpack.c.l.b16 %v2645
    %v2829 = vunpack.c.h.b16 %v2645
    %v2830 = vunpack.c.l.b16 %v2646
    %v2831 = vunpack.c.h.b16 %v2646
    %v2832 = vunpack.c.l.b16 %v2647
    %v2833 = vunpack.c.h.b16 %v2647
    %v2834 = vunpack.c.l.b16 %v2648
    %v2835 = vunpack.c.h.b16 %v2648
    %v2836 = vunpack.c.l.b16 %v2649
    %v2837 = vunpack.c.h.b16 %v2649
    %v2838 = vunpack.c.l.b16 %v2650
    %v2839 = vunpack.c.h.b16 %v2650
    %v2840 = vunpack.c.l.b16 %v2651
    %v2841 = vunpack.c.h.b16 %v2651
    %v2842 = vunpack.c.l.b16 %v2652
    %v2843 = vunpack.c.h.b16 %v2652
    %v2844 = vunpack.c.l.b16 %v2653
    %v2845 = vunpack.c.h.b16 %v2653
    %v2846 = vunpack.c.l.b16 %v2654
    %v2847 = vunpack.c.h.b16 %v2654
    %v2848 = vunpack.c.l.b16 %v2655
    %v2849 = vunpack.c.h.b16 %v2655
    %v2850 = vunpack.c.l.b16 %v2656
    %v2851 = vunpack.c.h.b16 %v2656
    %v2852 = vunpack.c.l.b16 %v2657
    %v2853 = vunpack.c.h.b16 %v2657
    %v2854 = vunpack.c.l.b16 %v2658
    %v2855 = vunpack.c.h.b16 %v2658
    %v2856 = vunpack.c.l.b16 %v2659
    %v2857 = vunpack.c.h.b16 %v2659
    %v2858 = vpack.c.b16 %v2732, %v2730
    %v2859 = vpack.c.b16 %v2733, %v2731
    %v2860 = vpack.c.b16 %v2736, %v2734
    %v2861 = vpack.c.b16 %v2737, %v2735
    %v2862 = vpack.c.b16 %v2740, %v2738
    %v2863 = vpack.c.b16 %v2741, %v2739
    %v2864 = vpack.c.b16 %v2744, %v2742
    %v2865 = vpack.c.b16 %v2745, %v2743
    %v2866 = vpack.c.b16 %v2748, %v2746
    %v2867 = vpack.c.b16 %v2749, %v2747
    %v2868 = vpack.c.b16 %v2752, %v2750
    %v2869 = vpack.c.b16 %v2753, %v2751
    %v2870 = vpack.c.b16 %v2756, %v2754
    %v2871 = vpack.c.b16 %v2757, %v2755
    %v2872 = vpack.c.b16 %v2760, %v2758
    %v2873 = vpack.c.b16 %v2761, %v2759
    %v2874 = vpack.c.b16 %v2764, %v2762
    %v2875 = vpack.c.b16 %v2765, %v2763
    %v2876 = vpack.c.b16 %v2768, %v2766
    %v2877 = vpack.c.b16 %v2769, %v2767
    %v2878 = vpack.c.b16 %v2772, %v2770
    %v2879 = vpack.c.b16 %v2773, %v2771
    %v2880 = vpack.c.b16 %v2776, %v2774
    %v2881 = vpack.c.b16 %v2777, %v2775
    %v2882 = vpack.c.b16 %v2780, %v2778
    %v2883 = vpack.c.b16 %v2781, %v2779
    %v2884 = vpack.c.b16 %v2784, %v2782
    %v2885 = vpack.c.b16 %v2785, %v2783
    %v2886 = vpack.c.b16 %v2788, %v2786
    %v2887 = vpack.c.b16 %v2789, %v2787
    %v2888 = vpack.c.b16 %v2792, %v2790
    %v2889 = vpack.c.b16 %v2793, %v2791
    %v2890 = vpack.c.b16 %v2796, %v2794
    %v2891 = vpack.c.b16 %v2797, %v2795
    %v2892 = vpack.c.b16 %v2800, %v2798
    %v2893 = vpack.c.b16 %v2801, %v2799
    %v2894 = vpack.c.b16 %v2804, %v2802
    %v2895 = vpack.c.b16 %v2805, %v2803
    %v2896 = vpack.c.b16 %v2808, %v2806
    %v2897 = vpack.c.b16 %v2809, %v2807
    %v2898 = vpack.c.b16 %v2812, %v2810
    %v2899 = vpack.c.b16 %v2813, %v2811
    %v2900 = vpack.c.b16 %v2816, %v2814
    %v2901 = vpack.c.b16 %v2817, %v2815
    %v2902 = vpack.c.b16 %v2820, %v2818
    %v2903 = vpack.c.b16 %v2821, %v2819
    %v2904 = vpack.c.b16 %v2824, %v2822
    %v2905 = vpack.c.b16 %v2825, %v2823
    %v2906 = vpack.c.b16 %v2828, %v2826
    %v2907 = vpack.c.b16 %v2829, %v2827
    %v2908 = vpack.c.b16 %v2832, %v2830
    %v2909 = vpack.c.b16 %v2833, %v2831
    %v2910 = vpack.c.b16 %v2836, %v2834
    %v2911 = vpack.c.b16 %v2837, %v2835
    %v2912 = vpack.c.b16 %v2840, %v2838
    %v2913 = vpack.c.b16 %v2841, %v2839
    %v2914 = vpack.c.b16 %v2844, %v2842
    %v2915 = vpack.c.b16 %v2845, %v2843
    %v2916 = vpack.c.b16 %v2848, %v2846
    %v2917 = vpack.c.b16 %v2849, %v2847
    %v2918 = vpack.c.b16 %v2852, %v2850
    %v2919 = vpack.c.b16 %v2853, %v2851
    %v2920 = vpack.c.b16 %v2856, %v2854
    %v2921 = vpack.c.b16 %v2857, %v2855
    %2986 = vmatpush.bf16.msra.mxu0 %v2872
    %2987 = vmatpush.bf16.msra.mxu0 %v2870
    %2988 = vmatpush.bf16.msra.mxu0 %v2868
    %2989 = vmatpush.bf16.msra.mxu0 %v2866
    %2990 = vmatpush.bf16.msra.mxu0 %v2864
    %2991 = vmatpush.bf16.msra.mxu0 %v2862
    %2992 = vmatpush.bf16.msra.mxu0 %v2860
    %2993 = vmatpush.bf16.msra.mxu0 %v2858
    %2994 = vmatmul.bf16.gmra.mxu0 %v2532
    %v2995 = vpop.f32.mrf.mxu0
    %v2996 = vadd.f32 %v2662, %v2995
    %v2997 = vpop.f32.mrf.mxu0
    %v2998 = vadd.f32 %v2662, %v2997
    %2999 = vmatmul.bf16.gmra.mxu0 %v2536
    %v3000 = vpop.f32.mrf.mxu0
    %v3001 = vadd.f32 %v2662, %v3000
    %v3002 = vpop.f32.mrf.mxu0
    %v3003 = vadd.f32 %v2662, %v3002
    %3004 = vmatmul.bf16.gmra.mxu0 %v2540
    %v3005 = vpop.f32.mrf.mxu0
    %v3006 = vadd.f32 %v2662, %v3005
    %v3007 = vpop.f32.mrf.mxu0
    %v3008 = vadd.f32 %v2662, %v3007
    %3009 = vmatmul.bf16.gmra.mxu0 %v2544
    %v3010 = vpop.f32.mrf.mxu0
    %v3011 = vadd.f32 %v2662, %v3010
    %v3012 = vpop.f32.mrf.mxu0
    %v3013 = vadd.f32 %v2662, %v3012
    %3014 = vmatmul.bf16.gmra.mxu0 %v2548
    %v3015 = vpop.f32.mrf.mxu0
    %v3016 = vadd.f32 %v2662, %v3015
    %v3017 = vpop.f32.mrf.mxu0
    %v3018 = vadd.f32 %v2662, %v3017
    %3019 = vmatmul.bf16.gmra.mxu0 %v2552
    %v3020 = vpop.f32.mrf.mxu0
    %v3021 = vadd.f32 %v2662, %v3020
    %v3022 = vpop.f32.mrf.mxu0
    %v3023 = vadd.f32 %v2662, %v3022
    %3024 = vmatmul.bf16.gmra.mxu0 %v2556
    %v3025 = vpop.f32.mrf.mxu0
    %v3026 = vadd.f32 %v2662, %v3025
    %v3027 = vpop.f32.mrf.mxu0
    %v3028 = vadd.f32 %v2662, %v3027
    %3029 = vmatmul.bf16.gmra.mxu0 %v2560
    %v3030 = vpop.f32.mrf.mxu0
    %v3031 = vadd.f32 %v2662, %v3030
    %v3032 = vpop.f32.mrf.mxu0
    %v3033 = vadd.f32 %v2662, %v3032
    %3034 = vmatmul.bf16.gmra.mxu0 %v2564
    %v3035 = vpop.f32.mrf.mxu0
    %v3036 = vadd.f32 %v2662, %v3035
    %v3037 = vpop.f32.mrf.mxu0
    %v3038 = vadd.f32 %v2662, %v3037
    %3039 = vmatmul.bf16.gmra.mxu0 %v2568
    %v3040 = vpop.f32.mrf.mxu0
    %v3041 = vadd.f32 %v2662, %v3040
    %v3042 = vpop.f32.mrf.mxu0
    %v3043 = vadd.f32 %v2662, %v3042
    %3044 = vmatmul.bf16.gmra.mxu0 %v2572
    %v3045 = vpop.f32.mrf.mxu0
    %v3046 = vadd.f32 %v2662, %v3045
    %v3047 = vpop.f32.mrf.mxu0
    %v3048 = vadd.f32 %v2662, %v3047
    %3049 = vmatmul.bf16.gmra.mxu0 %v2576
    %v3050 = vpop.f32.mrf.mxu0
    %v3051 = vadd.f32 %v2662, %v3050
    %v3052 = vpop.f32.mrf.mxu0
    %v3053 = vadd.f32 %v2662, %v3052
    %3054 = vmatmul.bf16.gmra.mxu0 %v2580
    %v3055 = vpop.f32.mrf.mxu0
    %v3056 = vadd.f32 %v2662, %v3055
    %v3057 = vpop.f32.mrf.mxu0
    %v3058 = vadd.f32 %v2662, %v3057
    %3059 = vmatmul.bf16.gmra.mxu0 %v2584
    %v3060 = vpop.f32.mrf.mxu0
    %v3061 = vadd.f32 %v2662, %v3060
    %v3062 = vpop.f32.mrf.mxu0
    %v3063 = vadd.f32 %v2662, %v3062
    %3064 = vmatmul.bf16.gmra.mxu0 %v2588
    %v3065 = vpop.f32.mrf.mxu0
    %v3066 = vadd.f32 %v2662, %v3065
    %v3067 = vpop.f32.mrf.mxu0
    %v3068 = vadd.f32 %v2662, %v3067
    %3069 = vmatmul.bf16.gmra.mxu0 %v2592
    %v3070 = vpop.f32.mrf.mxu0
    %v3071 = vadd.f32 %v2662, %v3070
    %v3072 = vpop.f32.mrf.mxu0
    %v3073 = vadd.f32 %v2662, %v3072
    %3074 = vdwg.mxu0
    %3075 = vmatpush.bf16.msra.mxu0 %v2888
    %3076 = vmatpush.bf16.msra.mxu0 %v2886
    %3077 = vmatpush.bf16.msra.mxu0 %v2884
    %3078 = vmatpush.bf16.msra.mxu0 %v2882
    %3079 = vmatpush.bf16.msra.mxu0 %v2880
    %3080 = vmatpush.bf16.msra.mxu0 %v2878
    %3081 = vmatpush.bf16.msra.mxu0 %v2876
    %3082 = vmatpush.bf16.msra.mxu0 %v2874
    %3083 = vmatmul.bf16.gmra.mxu0 %v2533
    %v3084 = vpop.f32.mrf.mxu0
    %v3085 = vadd.f32 %v2996, %v3084
    %v3086 = vpop.f32.mrf.mxu0
    %v3087 = vadd.f32 %v2998, %v3086
    %3088 = vmatmul.bf16.gmra.mxu0 %v2537
    %v3089 = vpop.f32.mrf.mxu0
    %v3090 = vadd.f32 %v3001, %v3089
    %v3091 = vpop.f32.mrf.mxu0
    %v3092 = vadd.f32 %v3003, %v3091
    %3093 = vmatmul.bf16.gmra.mxu0 %v2541
    %v3094 = vpop.f32.mrf.mxu0
    %v3095 = vadd.f32 %v3006, %v3094
    %v3096 = vpop.f32.mrf.mxu0
    %v3097 = vadd.f32 %v3008, %v3096
    %3098 = vmatmul.bf16.gmra.mxu0 %v2545
    %v3099 = vpop.f32.mrf.mxu0
    %v3100 = vadd.f32 %v3011, %v3099
    %v3101 = vpop.f32.mrf.mxu0
    %v3102 = vadd.f32 %v3013, %v3101
    %3103 = vmatmul.bf16.gmra.mxu0 %v2549
    %v3104 = vpop.f32.mrf.mxu0
    %v3105 = vadd.f32 %v3016, %v3104
    %v3106 = vpop.f32.mrf.mxu0
    %v3107 = vadd.f32 %v3018, %v3106
    %3108 = vmatmul.bf16.gmra.mxu0 %v2553
    %v3109 = vpop.f32.mrf.mxu0
    %v3110 = vadd.f32 %v3021, %v3109
    %v3111 = vpop.f32.mrf.mxu0
    %v3112 = vadd.f32 %v3023, %v3111
    %3113 = vmatmul.bf16.gmra.mxu0 %v2557
    %v3114 = vpop.f32.mrf.mxu0
    %v3115 = vadd.f32 %v3026, %v3114
    %v3116 = vpop.f32.mrf.mxu0
    %v3117 = vadd.f32 %v3028, %v3116
    %3118 = vmatmul.bf16.gmra.mxu0 %v2561
    %v3119 = vpop.f32.mrf.mxu0
    %v3120 = vadd.f32 %v3031, %v3119
    %v3121 = vpop.f32.mrf.mxu0
    %v3122 = vadd.f32 %v3033, %v3121
    %3123 = vmatmul.bf16.gmra.mxu0 %v2565
    %v3124 = vpop.f32.mrf.mxu0
    %v3125 = vadd.f32 %v3036, %v3124
    %v3126 = vpop.f32.mrf.mxu0
    %v3127 = vadd.f32 %v3038, %v3126
    %3128 = vmatmul.bf16.gmra.mxu0 %v2569
    %v3129 = vpop.f32.mrf.mxu0
    %v3130 = vadd.f32 %v3041, %v3129
    %v3131 = vpop.f32.mrf.mxu0
    %v3132 = vadd.f32 %v3043, %v3131
    %3133 = vmatmul.bf16.gmra.mxu0 %v2573
    %v3134 = vpop.f32.mrf.mxu0
    %v3135 = vadd.f32 %v3046, %v3134
    %v3136 = vpop.f32.mrf.mxu0
    %v3137 = vadd.f32 %v3048, %v3136
    %3138 = vmatmul.bf16.gmra.mxu0 %v2577
    %v3139 = vpop.f32.mrf.mxu0
    %v3140 = vadd.f32 %v3051, %v3139
    %v3141 = vpop.f32.mrf.mxu0
    %v3142 = vadd.f32 %v3053, %v3141
    %3143 = vmatmul.bf16.gmra.mxu0 %v2581
    %v3144 = vpop.f32.mrf.mxu0
    %v3145 = vadd.f32 %v3056, %v3144
    %v3146 = vpop.f32.mrf.mxu0
    %v3147 = vadd.f32 %v3058, %v3146
    %3148 = vmatmul.bf16.gmra.mxu0 %v2585
    %v3149 = vpop.f32.mrf.mxu0
    %v3150 = vadd.f32 %v3061, %v3149
    %v3151 = vpop.f32.mrf.mxu0
    %v3152 = vadd.f32 %v3063, %v3151
    %3153 = vmatmul.bf16.gmra.mxu0 %v2589
    %v3154 = vpop.f32.mrf.mxu0
    %v3155 = vadd.f32 %v3066, %v3154
    %v3156 = vpop.f32.mrf.mxu0
    %v3157 = vadd.f32 %v3068, %v3156
    %3158 = vmatmul.bf16.gmra.mxu0 %v2593
    %v3159 = vpop.f32.mrf.mxu0
    %v3160 = vadd.f32 %v3071, %v3159
    %v3161 = vpop.f32.mrf.mxu0
    %v3162 = vadd.f32 %v3073, %v3161
    %3163 = vdwg.mxu0
    %3164 = vmatpush.bf16.msra.mxu0 %v2904
    %3165 = vmatpush.bf16.msra.mxu0 %v2902
    %3166 = vmatpush.bf16.msra.mxu0 %v2900
    %3167 = vmatpush.bf16.msra.mxu0 %v2898
    %3168 = vmatpush.bf16.msra.mxu0 %v2896
    %3169 = vmatpush.bf16.msra.mxu0 %v2894
    %3170 = vmatpush.bf16.msra.mxu0 %v2892
    %3171 = vmatpush.bf16.msra.mxu0 %v2890
    %3172 = vmatmul.bf16.gmra.mxu0 %v2534
    %v3173 = vpop.f32.mrf.mxu0
    %v3174 = vadd.f32 %v3085, %v3173
    %v3175 = vpop.f32.mrf.mxu0
    %v3176 = vadd.f32 %v3087, %v3175
    %3177 = vmatmul.bf16.gmra.mxu0 %v2538
    %v3178 = vpop.f32.mrf.mxu0
    %v3179 = vadd.f32 %v3090, %v3178
    %v3180 = vpop.f32.mrf.mxu0
    %v3181 = vadd.f32 %v3092, %v3180
    %3182 = vmatmul.bf16.gmra.mxu0 %v2542
    %v3183 = vpop.f32.mrf.mxu0
    %v3184 = vadd.f32 %v3095, %v3183
    %v3185 = vpop.f32.mrf.mxu0
    %v3186 = vadd.f32 %v3097, %v3185
    %3187 = vmatmul.bf16.gmra.mxu0 %v2546
    %v3188 = vpop.f32.mrf.mxu0
    %v3189 = vadd.f32 %v3100, %v3188
    %v3190 = vpop.f32.mrf.mxu0
    %v3191 = vadd.f32 %v3102, %v3190
    %3192 = vmatmul.bf16.gmra.mxu0 %v2550
    %v3193 = vpop.f32.mrf.mxu0
    %v3194 = vadd.f32 %v3105, %v3193
    %v3195 = vpop.f32.mrf.mxu0
    %v3196 = vadd.f32 %v3107, %v3195
    %3197 = vmatmul.bf16.gmra.mxu0 %v2554
    %v3198 = vpop.f32.mrf.mxu0
    %v3199 = vadd.f32 %v3110, %v3198
    %v3200 = vpop.f32.mrf.mxu0
    %v3201 = vadd.f32 %v3112, %v3200
    %3202 = vmatmul.bf16.gmra.mxu0 %v2558
    %v3203 = vpop.f32.mrf.mxu0
    %v3204 = vadd.f32 %v3115, %v3203
    %v3205 = vpop.f32.mrf.mxu0
    %v3206 = vadd.f32 %v3117, %v3205
    %3207 = vmatmul.bf16.gmra.mxu0 %v2562
    %v3208 = vpop.f32.mrf.mxu0
    %v3209 = vadd.f32 %v3120, %v3208
    %v3210 = vpop.f32.mrf.mxu0
    %v3211 = vadd.f32 %v3122, %v3210
    %3212 = vmatmul.bf16.gmra.mxu0 %v2566
    %v3213 = vpop.f32.mrf.mxu0
    %v3214 = vadd.f32 %v3125, %v3213
    %v3215 = vpop.f32.mrf.mxu0
    %v3216 = vadd.f32 %v3127, %v3215
    %3217 = vmatmul.bf16.gmra.mxu0 %v2570
    %v3218 = vpop.f32.mrf.mxu0
    %v3219 = vadd.f32 %v3130, %v3218
    %v3220 = vpop.f32.mrf.mxu0
    %v3221 = vadd.f32 %v3132, %v3220
    %3222 = vmatmul.bf16.gmra.mxu0 %v2574
    %v3223 = vpop.f32.mrf.mxu0
    %v3224 = vadd.f32 %v3135, %v3223
    %v3225 = vpop.f32.mrf.mxu0
    %v3226 = vadd.f32 %v3137, %v3225
    %3227 = vmatmul.bf16.gmra.mxu0 %v2578
    %v3228 = vpop.f32.mrf.mxu0
    %v3229 = vadd.f32 %v3140, %v3228
    %v3230 = vpop.f32.mrf.mxu0
    %v3231 = vadd.f32 %v3142, %v3230
    %3232 = vmatmul.bf16.gmra.mxu0 %v2582
    %v3233 = vpop.f32.mrf.mxu0
    %v3234 = vadd.f32 %v3145, %v3233
    %v3235 = vpop.f32.mrf.mxu0
    %v3236 = vadd.f32 %v3147, %v3235
    %3237 = vmatmul.bf16.gmra.mxu0 %v2586
    %v3238 = vpop.f32.mrf.mxu0
    %v3239 = vadd.f32 %v3150, %v3238
    %v3240 = vpop.f32.mrf.mxu0
    %v3241 = vadd.f32 %v3152, %v3240
    %3242 = vmatmul.bf16.gmra.mxu0 %v2590
    %v3243 = vpop.f32.mrf.mxu0
    %v3244 = vadd.f32 %v3155, %v3243
    %v3245 = vpop.f32.mrf.mxu0
    %v3246 = vadd.f32 %v3157, %v3245
    %3247 = vmatmul.bf16.gmra.mxu0 %v2594
    %v3248 = vpop.f32.mrf.mxu0
    %v3249 = vadd.f32 %v3160, %v3248
    %v3250 = vpop.f32.mrf.mxu0
    %v3251 = vadd.f32 %v3162, %v3250
    %3252 = vdwg.mxu0
    %3253 = vmatpush.bf16.msra.mxu0 %v2920
    %3254 = vmatpush.bf16.msra.mxu0 %v2918
    %3255 = vmatpush.bf16.msra.mxu0 %v2916
    %3256 = vmatpush.bf16.msra.mxu0 %v2914
    %3257 = vmatpush.bf16.msra.mxu0 %v2912
    %3258 = vmatpush.bf16.msra.mxu0 %v2910
    %3259 = vmatpush.bf16.msra.mxu0 %v2908
    %3260 = vmatpush.bf16.msra.mxu0 %v2906
    %3261 = vmatmul.bf16.gmra.mxu0 %v2535
    %v3262 = vpop.f32.mrf.mxu0
    %v3263 = vadd.f32 %v3174, %v3262
    %v3264 = vpop.f32.mrf.mxu0
    %v3265 = vadd.f32 %v3176, %v3264
    %3266 = vmatmul.bf16.gmra.mxu0 %v2539
    %v3267 = vpop.f32.mrf.mxu0
    %v3268 = vadd.f32 %v3179, %v3267
    %v3269 = vpop.f32.mrf.mxu0
    %v3270 = vadd.f32 %v3181, %v3269
    %3271 = vmatmul.bf16.gmra.mxu0 %v2543
    %v3272 = vpop.f32.mrf.mxu0
    %v3273 = vadd.f32 %v3184, %v3272
    %v3274 = vpop.f32.mrf.mxu0
    %v3275 = vadd.f32 %v3186, %v3274
    %3276 = vmatmul.bf16.gmra.mxu0 %v2547
    %v3277 = vpop.f32.mrf.mxu0
    %v3278 = vadd.f32 %v3189, %v3277
    %v3279 = vpop.f32.mrf.mxu0
    %v3280 = vadd.f32 %v3191, %v3279
    %3281 = vmatmul.bf16.gmra.mxu0 %v2551
    %v3282 = vpop.f32.mrf.mxu0
    %v3283 = vadd.f32 %v3194, %v3282
    %v3284 = vpop.f32.mrf.mxu0
    %v3285 = vadd.f32 %v3196, %v3284
    %3286 = vmatmul.bf16.gmra.mxu0 %v2555
    %v3287 = vpop.f32.mrf.mxu0
    %v3288 = vadd.f32 %v3199, %v3287
    %v3289 = vpop.f32.mrf.mxu0
    %v3290 = vadd.f32 %v3201, %v3289
    %3291 = vmatmul.bf16.gmra.mxu0 %v2559
    %v3292 = vpop.f32.mrf.mxu0
    %v3293 = vadd.f32 %v3204, %v3292
    %v3294 = vpop.f32.mrf.mxu0
    %v3295 = vadd.f32 %v3206, %v3294
    %3296 = vmatmul.bf16.gmra.mxu0 %v2563
    %v3297 = vpop.f32.mrf.mxu0
    %v3298 = vadd.f32 %v3209, %v3297
    %v3299 = vpop.f32.mrf.mxu0
    %v3300 = vadd.f32 %v3211, %v3299
    %3301 = vmatmul.bf16.gmra.mxu0 %v2567
    %v3302 = vpop.f32.mrf.mxu0
    %v3303 = vadd.f32 %v3214, %v3302
    %v3304 = vpop.f32.mrf.mxu0
    %v3305 = vadd.f32 %v3216, %v3304
    %3306 = vmatmul.bf16.gmra.mxu0 %v2571
    %v3307 = vpop.f32.mrf.mxu0
    %v3308 = vadd.f32 %v3219, %v3307
    %v3309 = vpop.f32.mrf.mxu0
    %v3310 = vadd.f32 %v3221, %v3309
    %3311 = vmatmul.bf16.gmra.mxu0 %v2575
    %v3312 = vpop.f32.mrf.mxu0
    %v3313 = vadd.f32 %v3224, %v3312
    %v3314 = vpop.f32.mrf.mxu0
    %v3315 = vadd.f32 %v3226, %v3314
    %3316 = vmatmul.bf16.gmra.mxu0 %v2579
    %v3317 = vpop.f32.mrf.mxu0
    %v3318 = vadd.f32 %v3229, %v3317
    %v3319 = vpop.f32.mrf.mxu0
    %v3320 = vadd.f32 %v3231, %v3319
    %3321 = vmatmul.bf16.gmra.mxu0 %v2583
    %v3322 = vpop.f32.mrf.mxu0
    %v3323 = vadd.f32 %v3234, %v3322
    %v3324 = vpop.f32.mrf.mxu0
    %v3325 = vadd.f32 %v3236, %v3324
    %3326 = vmatmul.bf16.gmra.mxu0 %v2587
    %v3327 = vpop.f32.mrf.mxu0
    %v3328 = vadd.f32 %v3239, %v3327
    %v3329 = vpop.f32.mrf.mxu0
    %v3330 = vadd.f32 %v3241, %v3329
    %3331 = vmatmul.bf16.gmra.mxu0 %v2591
    %v3332 = vpop.f32.mrf.mxu0
    %v3333 = vadd.f32 %v3244, %v3332
    %v3334 = vpop.f32.mrf.mxu0
    %v3335 = vadd.f32 %v3246, %v3334
    %3336 = vmatmul.bf16.gmra.mxu0 %v2595
    %v3337 = vpop.f32.mrf.mxu0
    %v3338 = vadd.f32 %v3249, %v3337
    %v3339 = vpop.f32.mrf.mxu0
    %v3340 = vadd.f32 %v3251, %v3339
    %3341 = vdwg.mxu0
    %3342 = vmatpush.bf16.msra.mxu0 %v2873
    %3343 = vmatpush.bf16.msra.mxu0 %v2871
    %3344 = vmatpush.bf16.msra.mxu0 %v2869
    %3345 = vmatpush.bf16.msra.mxu0 %v2867
    %3346 = vmatpush.bf16.msra.mxu0 %v2865
    %3347 = vmatpush.bf16.msra.mxu0 %v2863
    %3348 = vmatpush.bf16.msra.mxu0 %v2861
    %3349 = vmatpush.bf16.msra.mxu0 %v2859
    %3350 = vmatmul.bf16.gmra.mxu0 %v2532
    %v3351 = vpop.f32.mrf.mxu0
    %v3352 = vadd.f32 %v2663, %v3351
    %v3353 = vpop.f32.mrf.mxu0
    %v3354 = vadd.f32 %v2663, %v3353
    %3355 = vmatmul.bf16.gmra.mxu0 %v2536
    %v3356 = vpop.f32.mrf.mxu0
    %v3357 = vadd.f32 %v2663, %v3356
    %v3358 = vpop.f32.mrf.mxu0
    %v3359 = vadd.f32 %v2663, %v3358
    %3360 = vmatmul.bf16.gmra.mxu0 %v2540
    %v3361 = vpop.f32.mrf.mxu0
    %v3362 = vadd.f32 %v2663, %v3361
    %v3363 = vpop.f32.mrf.mxu0
    %v3364 = vadd.f32 %v2663, %v3363
    %3365 = vmatmul.bf16.gmra.mxu0 %v2544
    %v3366 = vpop.f32.mrf.mxu0
    %v3367 = vadd.f32 %v2663, %v3366
    %v3368 = vpop.f32.mrf.mxu0
    %v3369 = vadd.f32 %v2663, %v3368
    %3370 = vmatmul.bf16.gmra.mxu0 %v2548
    %v3371 = vpop.f32.mrf.mxu0
    %v3372 = vadd.f32 %v2663, %v3371
    %v3373 = vpop.f32.mrf.mxu0
    %v3374 = vadd.f32 %v2663, %v3373
    %3375 = vmatmul.bf16.gmra.mxu0 %v2552
    %v3376 = vpop.f32.mrf.mxu0
    %v3377 = vadd.f32 %v2663, %v3376
    %v3378 = vpop.f32.mrf.mxu0
    %v3379 = vadd.f32 %v2663, %v3378
    %3380 = vmatmul.bf16.gmra.mxu0 %v2556
    %v3381 = vpop.f32.mrf.mxu0
    %v3382 = vadd.f32 %v2663, %v3381
    %v3383 = vpop.f32.mrf.mxu0
    %v3384 = vadd.f32 %v2663, %v3383
    %3385 = vmatmul.bf16.gmra.mxu0 %v2560
    %v3386 = vpop.f32.mrf.mxu0
    %v3387 = vadd.f32 %v2663, %v3386
    %v3388 = vpop.f32.mrf.mxu0
    %v3389 = vadd.f32 %v2663, %v3388
    %3390 = vmatmul.bf16.gmra.mxu0 %v2564
    %v3391 = vpop.f32.mrf.mxu0
    %v3392 = vadd.f32 %v2663, %v3391
    %v3393 = vpop.f32.mrf.mxu0
    %v3394 = vadd.f32 %v2663, %v3393
    %3395 = vmatmul.bf16.gmra.mxu0 %v2568
    %v3396 = vpop.f32.mrf.mxu0
    %v3397 = vadd.f32 %v2663, %v3396
    %v3398 = vpop.f32.mrf.mxu0
    %v3399 = vadd.f32 %v2663, %v3398
    %3400 = vmatmul.bf16.gmra.mxu0 %v2572
    %v3401 = vpop.f32.mrf.mxu0
    %v3402 = vadd.f32 %v2663, %v3401
    %v3403 = vpop.f32.mrf.mxu0
    %v3404 = vadd.f32 %v2663, %v3403
    %3405 = vmatmul.bf16.gmra.mxu0 %v2576
    %v3406 = vpop.f32.mrf.mxu0
    %v3407 = vadd.f32 %v2663, %v3406
    %v3408 = vpop.f32.mrf.mxu0
    %v3409 = vadd.f32 %v2663, %v3408
    %3410 = vmatmul.bf16.gmra.mxu0 %v2580
    %v3411 = vpop.f32.mrf.mxu0
    %v3412 = vadd.f32 %v2663, %v3411
    %v3413 = vpop.f32.mrf.mxu0
    %v3414 = vadd.f32 %v2663, %v3413
    %3415 = vmatmul.bf16.gmra.mxu0 %v2584
    %v3416 = vpop.f32.mrf.mxu0
    %v3417 = vadd.f32 %v2663, %v3416
    %v3418 = vpop.f32.mrf.mxu0
    %v3419 = vadd.f32 %v2663, %v3418
    %3420 = vmatmul.bf16.gmra.mxu0 %v2588
    %v3421 = vpop.f32.mrf.mxu0
    %v3422 = vadd.f32 %v2663, %v3421
    %v3423 = vpop.f32.mrf.mxu0
    %v3424 = vadd.f32 %v2663, %v3423
    %3425 = vmatmul.bf16.gmra.mxu0 %v2592
    %v3426 = vpop.f32.mrf.mxu0
    %v3427 = vadd.f32 %v2663, %v3426
    %v3428 = vpop.f32.mrf.mxu0
    %v3429 = vadd.f32 %v2663, %v3428
    %3430 = vdwg.mxu0
    %3431 = vmatpush.bf16.msra.mxu0 %v2889
    %3432 = vmatpush.bf16.msra.mxu0 %v2887
    %3433 = vmatpush.bf16.msra.mxu0 %v2885
    %3434 = vmatpush.bf16.msra.mxu0 %v2883
    %3435 = vmatpush.bf16.msra.mxu0 %v2881
    %3436 = vmatpush.bf16.msra.mxu0 %v2879
    %3437 = vmatpush.bf16.msra.mxu0 %v2877
    %3438 = vmatpush.bf16.msra.mxu0 %v2875
    %3439 = vmatmul.bf16.gmra.mxu0 %v2533
    %v3440 = vpop.f32.mrf.mxu0
    %v3441 = vadd.f32 %v3352, %v3440
    %v3442 = vpop.f32.mrf.mxu0
    %v3443 = vadd.f32 %v3354, %v3442
    %3444 = vmatmul.bf16.gmra.mxu0 %v2537
    %v3445 = vpop.f32.mrf.mxu0
    %v3446 = vadd.f32 %v3357, %v3445
    %v3447 = vpop.f32.mrf.mxu0
    %v3448 = vadd.f32 %v3359, %v3447
    %3449 = vmatmul.bf16.gmra.mxu0 %v2541
    %v3450 = vpop.f32.mrf.mxu0
    %v3451 = vadd.f32 %v3362, %v3450
    %v3452 = vpop.f32.mrf.mxu0
    %v3453 = vadd.f32 %v3364, %v3452
    %3454 = vmatmul.bf16.gmra.mxu0 %v2545
    %v3455 = vpop.f32.mrf.mxu0
    %v3456 = vadd.f32 %v3367, %v3455
    %v3457 = vpop.f32.mrf.mxu0
    %v3458 = vadd.f32 %v3369, %v3457
    %3459 = vmatmul.bf16.gmra.mxu0 %v2549
    %v3460 = vpop.f32.mrf.mxu0
    %v3461 = vadd.f32 %v3372, %v3460
    %v3462 = vpop.f32.mrf.mxu0
    %v3463 = vadd.f32 %v3374, %v3462
    %3464 = vmatmul.bf16.gmra.mxu0 %v2553
    %v3465 = vpop.f32.mrf.mxu0
    %v3466 = vadd.f32 %v3377, %v3465
    %v3467 = vpop.f32.mrf.mxu0
    %v3468 = vadd.f32 %v3379, %v3467
    %3469 = vmatmul.bf16.gmra.mxu0 %v2557
    %v3470 = vpop.f32.mrf.mxu0
    %v3471 = vadd.f32 %v3382, %v3470
    %v3472 = vpop.f32.mrf.mxu0
    %v3473 = vadd.f32 %v3384, %v3472
    %3474 = vmatmul.bf16.gmra.mxu0 %v2561
    %v3475 = vpop.f32.mrf.mxu0
    %v3476 = vadd.f32 %v3387, %v3475
    %v3477 = vpop.f32.mrf.mxu0
    %v3478 = vadd.f32 %v3389, %v3477
    %3479 = vmatmul.bf16.gmra.mxu0 %v2565
    %v3480 = vpop.f32.mrf.mxu0
    %v3481 = vadd.f32 %v3392, %v3480
    %v3482 = vpop.f32.mrf.mxu0
    %v3483 = vadd.f32 %v3394, %v3482
    %3484 = vmatmul.bf16.gmra.mxu0 %v2569
    %v3485 = vpop.f32.mrf.mxu0
    %v3486 = vadd.f32 %v3397, %v3485
    %v3487 = vpop.f32.mrf.mxu0
    %v3488 = vadd.f32 %v3399, %v3487
    %3489 = vmatmul.bf16.gmra.mxu0 %v2573
    %v3490 = vpop.f32.mrf.mxu0
    %v3491 = vadd.f32 %v3402, %v3490
    %v3492 = vpop.f32.mrf.mxu0
    %v3493 = vadd.f32 %v3404, %v3492
    %3494 = vmatmul.bf16.gmra.mxu0 %v2577
    %v3495 = vpop.f32.mrf.mxu0
    %v3496 = vadd.f32 %v3407, %v3495
    %v3497 = vpop.f32.mrf.mxu0
    %v3498 = vadd.f32 %v3409, %v3497
    %3499 = vmatmul.bf16.gmra.mxu0 %v2581
    %v3500 = vpop.f32.mrf.mxu0
    %v3501 = vadd.f32 %v3412, %v3500
    %v3502 = vpop.f32.mrf.mxu0
    %v3503 = vadd.f32 %v3414, %v3502
    %3504 = vmatmul.bf16.gmra.mxu0 %v2585
    %v3505 = vpop.f32.mrf.mxu0
    %v3506 = vadd.f32 %v3417, %v3505
    %v3507 = vpop.f32.mrf.mxu0
    %v3508 = vadd.f32 %v3419, %v3507
    %3509 = vmatmul.bf16.gmra.mxu0 %v2589
    %v3510 = vpop.f32.mrf.mxu0
    %v3511 = vadd.f32 %v3422, %v3510
    %v3512 = vpop.f32.mrf.mxu0
    %v3513 = vadd.f32 %v3424, %v3512
    %3514 = vmatmul.bf16.gmra.mxu0 %v2593
    %v3515 = vpop.f32.mrf.mxu0
    %v3516 = vadd.f32 %v3427, %v3515
    %v3517 = vpop.f32.mrf.mxu0
    %v3518 = vadd.f32 %v3429, %v3517
    %3519 = vdwg.mxu0
    %3520 = vmatpush.bf16.msra.mxu0 %v2905
    %3521 = vmatpush.bf16.msra.mxu0 %v2903
    %3522 = vmatpush.bf16.msra.mxu0 %v2901
    %3523 = vmatpush.bf16.msra.mxu0 %v2899
    %3524 = vmatpush.bf16.msra.mxu0 %v2897
    %3525 = vmatpush.bf16.msra.mxu0 %v2895
    %3526 = vmatpush.bf16.msra.mxu0 %v2893
    %3527 = vmatpush.bf16.msra.mxu0 %v2891
    %3528 = vmatmul.bf16.gmra.mxu0 %v2534
    %v3529 = vpop.f32.mrf.mxu0
    %v3530 = vadd.f32 %v3441, %v3529
    %v3531 = vpop.f32.mrf.mxu0
    %v3532 = vadd.f32 %v3443, %v3531
    %3533 = vmatmul.bf16.gmra.mxu0 %v2538
    %v3534 = vpop.f32.mrf.mxu0
    %v3535 = vadd.f32 %v3446, %v3534
    %v3536 = vpop.f32.mrf.mxu0
    %v3537 = vadd.f32 %v3448, %v3536
    %3538 = vmatmul.bf16.gmra.mxu0 %v2542
    %v3539 = vpop.f32.mrf.mxu0
    %v3540 = vadd.f32 %v3451, %v3539
    %v3541 = vpop.f32.mrf.mxu0
    %v3542 = vadd.f32 %v3453, %v3541
    %3543 = vmatmul.bf16.gmra.mxu0 %v2546
    %v3544 = vpop.f32.mrf.mxu0
    %v3545 = vadd.f32 %v3456, %v3544
    %v3546 = vpop.f32.mrf.mxu0
    %v3547 = vadd.f32 %v3458, %v3546
    %3548 = vmatmul.bf16.gmra.mxu0 %v2550
    %v3549 = vpop.f32.mrf.mxu0
    %v3550 = vadd.f32 %v3461, %v3549
    %v3551 = vpop.f32.mrf.mxu0
    %v3552 = vadd.f32 %v3463, %v3551
    %3553 = vmatmul.bf16.gmra.mxu0 %v2554
    %v3554 = vpop.f32.mrf.mxu0
    %v3555 = vadd.f32 %v3466, %v3554
    %v3556 = vpop.f32.mrf.mxu0
    %v3557 = vadd.f32 %v3468, %v3556
    %3558 = vmatmul.bf16.gmra.mxu0 %v2558
    %v3559 = vpop.f32.mrf.mxu0
    %v3560 = vadd.f32 %v3471, %v3559
    %v3561 = vpop.f32.mrf.mxu0
    %v3562 = vadd.f32 %v3473, %v3561
    %3563 = vmatmul.bf16.gmra.mxu0 %v2562
    %v3564 = vpop.f32.mrf.mxu0
    %v3565 = vadd.f32 %v3476, %v3564
    %v3566 = vpop.f32.mrf.mxu0
    %v3567 = vadd.f32 %v3478, %v3566
    %3568 = vmatmul.bf16.gmra.mxu0 %v2566
    %v3569 = vpop.f32.mrf.mxu0
    %v3570 = vadd.f32 %v3481, %v3569
    %v3571 = vpop.f32.mrf.mxu0
    %v3572 = vadd.f32 %v3483, %v3571
    %3573 = vmatmul.bf16.gmra.mxu0 %v2570
    %v3574 = vpop.f32.mrf.mxu0
    %v3575 = vadd.f32 %v3486, %v3574
    %v3576 = vpop.f32.mrf.mxu0
    %v3577 = vadd.f32 %v3488, %v3576
    %3578 = vmatmul.bf16.gmra.mxu0 %v2574
    %v3579 = vpop.f32.mrf.mxu0
    %v3580 = vadd.f32 %v3491, %v3579
    %v3581 = vpop.f32.mrf.mxu0
    %v3582 = vadd.f32 %v3493, %v3581
    %3583 = vmatmul.bf16.gmra.mxu0 %v2578
    %v3584 = vpop.f32.mrf.mxu0
    %v3585 = vadd.f32 %v3496, %v3584
    %v3586 = vpop.f32.mrf.mxu0
    %v3587 = vadd.f32 %v3498, %v3586
    %3588 = vmatmul.bf16.gmra.mxu0 %v2582
    %v3589 = vpop.f32.mrf.mxu0
    %v3590 = vadd.f32 %v3501, %v3589
    %v3591 = vpop.f32.mrf.mxu0
    %v3592 = vadd.f32 %v3503, %v3591
    %3593 = vmatmul.bf16.gmra.mxu0 %v2586
    %v3594 = vpop.f32.mrf.mxu0
    %v3595 = vadd.f32 %v3506, %v3594
    %v3596 = vpop.f32.mrf.mxu0
    %v3597 = vadd.f32 %v3508, %v3596
    %3598 = vmatmul.bf16.gmra.mxu0 %v2590
    %v3599 = vpop.f32.mrf.mxu0
    %v3600 = vadd.f32 %v3511, %v3599
    %v3601 = vpop.f32.mrf.mxu0
    %v3602 = vadd.f32 %v3513, %v3601
    %3603 = vmatmul.bf16.gmra.mxu0 %v2594
    %v3604 = vpop.f32.mrf.mxu0
    %v3605 = vadd.f32 %v3516, %v3604
    %v3606 = vpop.f32.mrf.mxu0
    %v3607 = vadd.f32 %v3518, %v3606
    %3608 = vdwg.mxu0
    %3609 = vmatpush.bf16.msra.mxu0 %v2921
    %3610 = vmatpush.bf16.msra.mxu0 %v2919
    %3611 = vmatpush.bf16.msra.mxu0 %v2917
    %3612 = vmatpush.bf16.msra.mxu0 %v2915
    %3613 = vmatpush.bf16.msra.mxu0 %v2913
    %3614 = vmatpush.bf16.msra.mxu0 %v2911
    %3615 = vmatpush.bf16.msra.mxu0 %v2909
    %3616 = vmatpush.bf16.msra.mxu0 %v2907
    %3617 = vmatmul.bf16.gmra.mxu0 %v2535
    %v3618 = vpop.f32.mrf.mxu0
    %v3619 = vadd.f32 %v3530, %v3618
    %v3620 = vpop.f32.mrf.mxu0
    %v3621 = vadd.f32 %v3532, %v3620
    %3622 = vmatmul.bf16.gmra.mxu0 %v2539
    %v3623 = vpop.f32.mrf.mxu0
    %v3624 = vadd.f32 %v3535, %v3623
    %v3625 = vpop.f32.mrf.mxu0
    %v3626 = vadd.f32 %v3537, %v3625
    %3627 = vmatmul.bf16.gmra.mxu0 %v2543
    %v3628 = vpop.f32.mrf.mxu0
    %v3629 = vadd.f32 %v3540, %v3628
    %v3630 = vpop.f32.mrf.mxu0
    %v3631 = vadd.f32 %v3542, %v3630
    %3632 = vmatmul.bf16.gmra.mxu0 %v2547
    %v3633 = vpop.f32.mrf.mxu0
    %v3634 = vadd.f32 %v3545, %v3633
    %v3635 = vpop.f32.mrf.mxu0
    %v3636 = vadd.f32 %v3547, %v3635
    %3637 = vmatmul.bf16.gmra.mxu0 %v2551
    %v3638 = vpop.f32.mrf.mxu0
    %v3639 = vadd.f32 %v3550, %v3638
    %v3640 = vpop.f32.mrf.mxu0
    %v3641 = vadd.f32 %v3552, %v3640
    %3642 = vmatmul.bf16.gmra.mxu0 %v2555
    %v3643 = vpop.f32.mrf.mxu0
    %v3644 = vadd.f32 %v3555, %v3643
    %v3645 = vpop.f32.mrf.mxu0
    %v3646 = vadd.f32 %v3557, %v3645
    %3647 = vmatmul.bf16.gmra.mxu0 %v2559
    %v3648 = vpop.f32.mrf.mxu0
    %v3649 = vadd.f32 %v3560, %v3648
    %v3650 = vpop.f32.mrf.mxu0
    %v3651 = vadd.f32 %v3562, %v3650
    %3652 = vmatmul.bf16.gmra.mxu0 %v2563
    %v3653 = vpop.f32.mrf.mxu0
    %v3654 = vadd.f32 %v3565, %v3653
    %v3655 = vpop.f32.mrf.mxu0
    %v3656 = vadd.f32 %v3567, %v3655
    %3657 = vmatmul.bf16.gmra.mxu0 %v2567
    %v3658 = vpop.f32.mrf.mxu0
    %v3659 = vadd.f32 %v3570, %v3658
    %v3660 = vpop.f32.mrf.mxu0
    %v3661 = vadd.f32 %v3572, %v3660
    %3662 = vmatmul.bf16.gmra.mxu0 %v2571
    %v3663 = vpop.f32.mrf.mxu0
    %v3664 = vadd.f32 %v3575, %v3663
    %v3665 = vpop.f32.mrf.mxu0
    %v3666 = vadd.f32 %v3577, %v3665
    %3667 = vmatmul.bf16.gmra.mxu0 %v2575
    %v3668 = vpop.f32.mrf.mxu0
    %v3669 = vadd.f32 %v3580, %v3668
    %v3670 = vpop.f32.mrf.mxu0
    %v3671 = vadd.f32 %v3582, %v3670
    %3672 = vmatmul.bf16.gmra.mxu0 %v2579
    %v3673 = vpop.f32.mrf.mxu0
    %v3674 = vadd.f32 %v3585, %v3673
    %v3675 = vpop.f32.mrf.mxu0
    %v3676 = vadd.f32 %v3587, %v3675
    %3677 = vmatmul.bf16.gmra.mxu0 %v2583
    %v3678 = vpop.f32.mrf.mxu0
    %v3679 = vadd.f32 %v3590, %v3678
    %v3680 = vpop.f32.mrf.mxu0
    %v3681 = vadd.f32 %v3592, %v3680
    %3682 = vmatmul.bf16.gmra.mxu0 %v2587
    %v3683 = vpop.f32.mrf.mxu0
    %v3684 = vadd.f32 %v3595, %v3683
    %v3685 = vpop.f32.mrf.mxu0
    %v3686 = vadd.f32 %v3597, %v3685
    %3687 = vmatmul.bf16.gmra.mxu0 %v2591
    %v3688 = vpop.f32.mrf.mxu0
    %v3689 = vadd.f32 %v3600, %v3688
    %v3690 = vpop.f32.mrf.mxu0
    %v3691 = vadd.f32 %v3602, %v3690
    %3692 = vmatmul.bf16.gmra.mxu0 %v2595
    %v3693 = vpop.f32.mrf.mxu0
    %v3694 = vadd.f32 %v3605, %v3693
    %v3695 = vpop.f32.mrf.mxu0
    %v3696 = vadd.f32 %v3607, %v3695
    %3697 = vdwg.mxu0
    %v3698 = vpack.c.bf16 %v3619, %v3263
    %v3699 = vpack.c.bf16 %v3621, %v3265
    %v3700 = vpack.c.bf16 %v3624, %v3268
    %v3701 = vpack.c.bf16 %v3626, %v3270
    %v3702 = vpack.c.bf16 %v3629, %v3273
    %v3703 = vpack.c.bf16 %v3631, %v3275
    %v3704 = vpack.c.bf16 %v3634, %v3278
    %v3705 = vpack.c.bf16 %v3636, %v3280
    %v3706 = vpack.c.bf16 %v3639, %v3283
    %v3707 = vpack.c.bf16 %v3641, %v3285
    %v3708 = vpack.c.bf16 %v3644, %v3288
    %v3709 = vpack.c.bf16 %v3646, %v3290
    %v3710 = vpack.c.bf16 %v3649, %v3293
    %v3711 = vpack.c.bf16 %v3651, %v3295
    %v3712 = vpack.c.bf16 %v3654, %v3298
    %v3713 = vpack.c.bf16 %v3656, %v3300
    %v3714 = vpack.c.bf16 %v3659, %v3303
    %v3715 = vpack.c.bf16 %v3661, %v3305
    %v3716 = vpack.c.bf16 %v3664, %v3308
    %v3717 = vpack.c.bf16 %v3666, %v3310
    %v3718 = vpack.c.bf16 %v3669, %v3313
    %v3719 = vpack.c.bf16 %v3671, %v3315
    %v3720 = vpack.c.bf16 %v3674, %v3318
    %v3721 = vpack.c.bf16 %v3676, %v3320
    %v3722 = vpack.c.bf16 %v3679, %v3323
    %v3723 = vpack.c.bf16 %v3681, %v3325
    %v3724 = vpack.c.bf16 %v3684, %v3328
    %v3725 = vpack.c.bf16 %v3686, %v3330
    %v3726 = vpack.c.bf16 %v3689, %v3333
    %v3727 = vpack.c.bf16 %v3691, %v3335
    %v3728 = vpack.c.bf16 %v3694, %v3338
    %v3729 = vpack.c.bf16 %v3696, %v3340
    %3730 = vst [vmem:[#allocation10] sm:$0xff] %v3698
    %3731 = vst [vmem:[#allocation10 + $0x8] sm:$0xff] %v3699
    %3732 = vst [vmem:[#allocation10 + $0x10] sm:$0xff] %v3700
    %3733 = vst [vmem:[#allocation10 + $0x18] sm:$0xff] %v3701
    %3734 = vst [vmem:[#allocation10 + $0x20] sm:$0xff] %v3702
    %3735 = vst [vmem:[#allocation10 + $0x28] sm:$0xff] %v3703
    %3736 = vst [vmem:[#allocation10 + $0x30] sm:$0xff] %v3704
    %3737 = vst [vmem:[#allocation10 + $0x38] sm:$0xff] %v3705
    %3738 = vst [vmem:[#allocation10 + $0x40] sm:$0xff] %v3706
    %3739 = vst [vmem:[#allocation10 + $0x48] sm:$0xff] %v3707
    %3740 = vst [vmem:[#allocation10 + $0x50] sm:$0xff] %v3708
    %3741 = vst [vmem:[#allocation10 + $0x58] sm:$0xff] %v3709
    %3742 = vst [vmem:[#allocation10 + $0x60] sm:$0xff] %v3710
    %3743 = vst [vmem:[#allocation10 + $0x68] sm:$0xff] %v3711
    %3744 = vst [vmem:[#allocation10 + $0x70] sm:$0xff] %v3712
    %3745 = vst [vmem:[#allocation10 + $0x78] sm:$0xff] %v3713
    %3746 = vst [vmem:[#allocation10 + $0x80] sm:$0xff] %v3714
    %3747 = vst [vmem:[#allocation10 + $0x88] sm:$0xff] %v3715
    %3748 = vst [vmem:[#allocation10 + $0x90] sm:$0xff] %v3716
    %3749 = vst [vmem:[#allocation10 + $0x98] sm:$0xff] %v3717
    %3750 = vst [vmem:[#allocation10 + $0xa0] sm:$0xff] %v3718
    %3751 = vst [vmem:[#allocation10 + $0xa8] sm:$0xff] %v3719
    %3752 = vst [vmem:[#allocation10 + $0xb0] sm:$0xff] %v3720
    %3753 = vst [vmem:[#allocation10 + $0xb8] sm:$0xff] %v3721
    %3754 = vst [vmem:[#allocation10 + $0xc0] sm:$0xff] %v3722
    %3755 = vst [vmem:[#allocation10 + $0xc8] sm:$0xff] %v3723
    %3756 = vst [vmem:[#allocation10 + $0xd0] sm:$0xff] %v3724
    %3757 = vst [vmem:[#allocation10 + $0xd8] sm:$0xff] %v3725
    %3758 = vst [vmem:[#allocation10 + $0xe0] sm:$0xff] %v3726
    %3759 = vst [vmem:[#allocation10 + $0xe8] sm:$0xff] %v3727
    %3760 = vst [vmem:[#allocation10 + $0xf0] sm:$0xff] %v3728
    %3761 = vst [vmem:[#allocation10 + $0xf8] sm:$0xff] %v3729
    // Predicated region
    $region38: #{tpu_custom_call.1} parent=1 // pred_check
      _
    $region39: #{tpu_custom_call.1} parent=1 // pred_check_branch
      %3763 = sbr.rel (0) target = $region41
    $region40: #{tpu_custom_call.1} parent=1 // pred_region
      %3765 = vsyncadd [#allocation4], 0
      %s3766 = sshll.u32 [#allocation10], 4
      %s3767 = int_to_ptr.vmem [resolvable:$true] %s3766
      %s3768 = sshll.u32 %s5, 4
      %s3769 = int_to_ptr.hbm [resolvable:$true] %s3768
      %3774 = dma.vmem_to_hbm [thread:$0]  %s3767, 4096, %s3769, [#allocation4], 128, 128, 8
    $region41: #{tpu_custom_call.1} parent=1 // pred_fallthru
      _
    // Predicated region
    $region42: #{tpu_custom_call.1} parent=1 // pred_check
      _
    $region43: #{tpu_custom_call.1} parent=1 // pred_check_branch
      %3776 = sbr.rel (0) target = $region45
    $region44: #{tpu_custom_call.1} parent=1 // pred_region
      %3778 = dma.done [#allocation4], 4096
    $region45: #{tpu_custom_call.1} parent=1 // pred_fallthru
      _
    %3779 = vsyncpa [#allocation3], 1
    %3780 = vsyncpa [#allocation6], 1
    %3781 = vsyncpa [#allocation9], 1
    %3782 = vsyncpa [#allocation4], 1

</llo_original>
